<compile_context>
chip_gen: v7x
topology: tpu7x:2x2x1
jax: 0.10.0
libtpu: 0.0.40
codegen_flags: <defaults>
</compile_context>

<pallas_src>
import numpy as np

import jax
import jax.numpy as jnp
from jax.experimental import pallas as pl
from jax.experimental.pallas import tpu as pltpu


# --------------------------------------------------------------------------------------
# Fused kernel: embedding gather -> feature encoder -> folded gate projection -> GRU
# Grid: (batch-split n [parallel], time-chunk c [arbitrary]).
# --------------------------------------------------------------------------------------
def tabformer_fused_kernel(ids_ref, lens_ref,
                           rep_ref, iota_ref, emb_ref,
                           wq_ref, bq_ref, wk_ref, bk_ref, wv_ref, bv_ref,
                           sred_ref, dbc_ref, pexp_ref, wo_ref, bo_ref,
                           pool_ref, ln1g_ref, ln1b_ref,
                           w1_ref, b1_ref, w2_ref, b2_ref, ln2g_ref, ln2b_ref,
                           wg_ref, bg_ref, wh_ref, bh_ref,
                           o_ref, h_ref, gates_ref):
    c = pl.program_id(1)
    TC, Bsub, Gp = gates_ref.shape
    Hp = h_ref.shape[-1]

    @pl.when(c == 0)
    def _():
        h_ref[...] = jnp.zeros_like(h_ref)

    def mm_bf16(a, w_ref, b_ref=None):
        # big dense weights live in bf16; accumulate in f32 on the MXU
        y = jnp.dot(a.astype(jnp.bfloat16), w_ref[...],
                    preferred_element_type=jnp.float32)
        return y if b_ref is None else y + b_ref[...]

    def mm_f32(a, w_ref):
        return jnp.dot(a, w_ref[...], preferred_element_type=jnp.float32)

    def feat_ln(a, gamma_ref, beta_ref):
        # pool_ref = kron(I_F, ones(E,E)/E): per-(token, feature) mean broadcast over E lanes
        mu = mm_f32(a, pool_ref)
        var = mm_f32((a - mu) ** 2, pool_ref)
        return (a - mu) * jax.lax.rsqrt(var + 1e-5) * gamma_ref[...] + beta_ref[...]

    # ---- trx_encoder: in-kernel embedding gather via one-hot matmul -------------------
    ids_f = ids_ref[...].astype(jnp.float32)                       # (TOK, F)
    onehot = (mm_f32(ids_f, rep_ref) == iota_ref[...]).astype(jnp.float32)  # (TOK, F*V)
    x = mm_f32(onehot, emb_ref)                                    # (TOK, D) exact gather

    # ---- feature_encoder: single-head attention over F features, lane-dense -----------
    # q_rep/k_rep/v_rep are (TOK, F^2*E): entry (f*F+g)*E+e = q[f,e]/sqrt(E) / k[g,e] / v[g,e]
    q_rep = mm_bf16(x, wq_ref, bq_ref)
    k_rep = mm_bf16(x, wk_ref, bk_ref)
    v_rep = mm_bf16(x, wv_ref, bv_ref)
    scores = mm_f32(q_rep * k_rep, sred_ref)                       # (TOK, F^2): s[f,g]
    es = jnp.exp(scores - jnp.max(scores, axis=-1, keepdims=True))
    inv_b = pl.reciprocal(mm_f32(es, dbc_ref), approx=True)        # per-f denom, broadcast to F^2
    p_exp = mm_f32(es * inv_b, pexp_ref)                           # (TOK, F^2*E): a[f,g] per lane
    attn = mm_bf16(p_exp * v_rep, wo_ref, bo_ref)                  # Red2 & Wo folded: (TOK, D)

    h1 = feat_ln(x + attn, ln1g_ref, ln1b_ref)
    ff = mm_bf16(jnp.maximum(mm_bf16(h1, w1_ref, b1_ref), 0.0), w2_ref, b2_ref)
    h2 = feat_ln(h1 + ff, ln2g_ref, ln2b_ref)

    # ---- lin_proj + GRU input projections folded into one matmul; stays in VMEM -------
    gates_ref[...] = mm_bf16(h2, wg_ref, bg_ref).reshape(TC, Bsub, Gp)

    # ---- GRU over this chunk's time steps (hidden-side matmul only) --------------------
    lens = lens_ref[...]                                           # (Bsub, 1) int32
    wh = wh_ref[...]                                               # (Hp, 3Hp) fused [Whr|Whz|Whn]
    bh = bh_ref[...]                                               # (1, 3Hp)

    def step(tt, carry):
        t = c * TC + tt
        gx = gates_ref[tt]                                         # (Bsub, 3Hp)
        h = h_ref[...]
        gh = jnp.dot(h, wh, preferred_element_type=jnp.float32) + bh
        r = jax.nn.sigmoid(gx[:, :Hp] + gh[:, :Hp])
        z = jax.nn.sigmoid(gx[:, Hp:2 * Hp] + gh[:, Hp:2 * Hp])
        n = jnp.tanh(gx[:, 2 * Hp:] + r * gh[:, 2 * Hp:])
        h_new = (1.0 - z) * n + z * h
        h_ref[...] = jnp.where(t < lens, h_new, h)                 # freeze finished / padded rows
        return carry

    jax.lax.fori_loop(0, TC, step, 0, unroll=(TC <= 32))

    @pl.when(c == pl.num_programs(1) - 1)
    def _():
        h = h_ref[...]
        o_ref[...] = h * jax.lax.rsqrt(jnp.sum(h * h, axis=-1, keepdims=True) + 1e-9)


# --------------------------------------------------------------------------------------
# Wrapper: padding, weight folding (f32 folds, bf16 casts), placement matrices, pallas_call
# --------------------------------------------------------------------------------------
def _round_up(x, m):
    return ((x + m - 1) // m) * m


def _pad_axis(a, axis, new_size):
    pad = [(0, 0)] * a.ndim
    pad[axis] = (0, new_size - a.shape[axis])
    return jnp.pad(a, pad)


def tabformer_inference(ids, seq_lens, p, *, token_tile=2048):
    B, T, F = ids.shape
    V = p["emb"].shape[1]
    E = p["emb"].shape[-1]
    D = F * E
    FFD = p["w1"].shape[-1]
    H = p["whr"].shape[0]

    # --- padded / tiled sizes -----------------------------------------------------------
    Bp = _round_up(max(B, 8), 8)                    # sublane-aligned batch
    NB = 2 if Bp % 16 == 0 else 1                   # batch split -> 2nd TensorCore on v7x
    Bsub = Bp // NB
    Hp = _round_up(H, 128)                          # lane-aligned GRU hidden
    Gp = 3 * Hp
    TC = max(1, min(T, token_tile // Bsub))         # time steps / grid step (~token_tile tokens)
    Tp = _round_up(T, TC)
    TOK = TC * Bsub
    n_chunks = Tp // TC
    FSQ = F * F
    FFp = _round_up(F * FFD, 128)                   # lane-padded FFN hidden

    # --- pad ids / lens; lay out (n, t, b) so each grid step reads one contiguous slab ---
    ids_p = _pad_axis(_pad_axis(ids.astype(jnp.int32), 0, Bp), 1, Tp)       # (Bp, Tp, F)
    ids_2d = (ids_p.reshape(NB, Bsub, Tp, F)
              .transpose(0, 2, 1, 3)
              .reshape(NB * Tp * Bsub, F))
    lens_p = _pad_axis(seq_lens.astype(jnp.int32), 0, Bp).reshape(Bp, 1)

    # --- constant placement / reduction matrices (trace-time numpy constants) -----------
    i_f = np.eye(F, dtype=np.float32)
    i_e = np.eye(E, dtype=np.float32)
    i_d = np.eye(D, dtype=np.float32)
    Rq = jnp.asarray(np.kron(i_f, np.kron(np.ones((1, F), np.float32), i_e)))   # (D, F^2E)
    Rk = jnp.asarray(np.kron(np.ones((1, F), np.float32), i_d))                 # (D, F^2E)
    Red2 = jnp.asarray(np.kron(i_f, np.kron(np.ones((F, 1), np.float32), i_e))) # (F^2E, D)
    sred = jnp.asarray(np.kron(np.eye(FSQ, dtype=np.float32), np.ones((E, 1), np.float32)))
    dbc = jnp.asarray(np.kron(i_f, np.ones((F, F), np.float32)))
    pexp = jnp.asarray(np.kron(np.eye(FSQ, dtype=np.float32), np.ones((1, E), np.float32)))
    rep = jnp.asarray(np.kron(i_f, np.ones((1, V), np.float32)))                # (F, F*V)
    iota = jnp.asarray(np.tile(np.arange(V, dtype=np.float32), F).reshape(1, F * V))

    # --- fold per-feature weights (f32 folds, cast big matmul weights to bf16) ----------
    f32 = jnp.float32
    bdiag = lambda w: jnp.kron(jnp.eye(F, dtype=f32), w.astype(f32))
    tile_f = lambda b: jnp.tile(b.astype(f32), (1, F))
    bf16 = lambda w: w.astype(jnp.bfloat16)
    scale = 1.0 / np.sqrt(E)

    emb_bd = jnp.zeros((F * V, D), f32)                            # block-diag embedding table
    for f in range(F):
        emb_bd = emb_bd.at[f * V:(f + 1) * V, f * E:(f + 1) * E].set(p["emb"][f].astype(f32))

    wq_rep = bf16((bdiag(p["wq"]) @ Rq) * scale)                   # 1/sqrt(E) folded into Q
    bq_rep = (tile_f(p["bq"]) @ Rq) * scale
    wk_rep = bf16(bdiag(p["wk"]) @ Rk)
    bk_rep = tile_f(p["bk"]) @ Rk
    wv_rep = bf16(bdiag(p["wv"]) @ Rk)
    bv_rep = tile_f(p["bv"]) @ Rk
    wo_red = bf16(Red2 @ bdiag(p["wo"]))                           # g-reduction + out-proj fused
    bo_t = tile_f(p["bo"])

    pool = jnp.kron(jnp.eye(F, dtype=f32), jnp.ones((E, E), f32) / E)
    ln1g, ln1b = tile_f(p["ln1g"]), tile_f(p["ln1b"])
    ln2g, ln2b = tile_f(p["ln2g"]), tile_f(p["ln2b"])
    w1p = bf16(_pad_axis(bdiag(p["w1"]), 1, FFp))                  # lane-padded FFN
    b1p = _pad_axis(tile_f(p["b1"]), 1, FFp)
    w2p = bf16(_pad_axis(bdiag(p["w2"]), 0, FFp))
    b2t = tile_f(p["b2"])

    pad_h = lambda w: _pad_axis(w.astype(f32), 1, Hp)
    wi_f = jnp.concatenate([pad_h(p["wir"]), pad_h(p["wiz"]), pad_h(p["win"])], axis=1)
    bi_f = jnp.concatenate([pad_h(p["bir"]), pad_h(p["biz"]), pad_h(p["bin"])], axis=1)
    w_gate = bf16(p["wp"].astype(f32) @ wi_f)                      # lin_proj folded into GRU input
    b_gate = p["bp"].astype(f32) @ wi_f + bi_f

    pad_hh = lambda w: _pad_axis(_pad_axis(w.astype(f32), 0, Hp), 1, Hp)
    w_hh = jnp.concatenate([pad_hh(p["whr"]), pad_hh(p["whz"]), pad_hh(p["whn"])], axis=1)
    b_hh = jnp.concatenate([pad_h(p["bhr"]), pad_h(p["bhz"]), pad_h(p["bhn"])], axis=1)

    weights = (rep, iota, emb_bd,
               wq_rep, bq_rep, wk_rep, bk_rep, wv_rep, bv_rep,
               sred, dbc, pexp, wo_red, bo_t,
               pool, ln1g, ln1b, w1p, b1p, w2p, b2t, ln2g, ln2b,
               w_gate, b_gate, w_hh, b_hh)

    def wspec(a):
        return pl.BlockSpec(a.shape, lambda n, c: (0,) * a.ndim)   # resident weights

    out_p = pl.pallas_call(
        tabformer_fused_kernel,
        out_shape=jax.ShapeDtypeStruct((Bp, Hp), jnp.float32),
        grid=(NB, n_chunks),
        in_specs=[pl.BlockSpec((TOK, F), lambda n, c: (n * n_chunks + c, 0)),   # ids slab
                  pl.BlockSpec((Bsub, 1), lambda n, c: (n, 0))]                 # seq_lens
                 + [wspec(a) for a in weights],
        out_specs=pl.BlockSpec((Bsub, Hp), lambda n, c: (n, 0)),
        scratch_shapes=[pltpu.VMEM((Bsub, Hp), jnp.float32),        # GRU hidden carry
                        pltpu.VMEM((TC, Bsub, Gp), jnp.float32)],   # per-chunk gate pre-acts
        compiler_params=pltpu.CompilerParams(
            dimension_semantics=("parallel", "arbitrary"),
            vmem_limit_bytes=40 * 1024 * 1024),
    )(ids_2d, lens_p, *weights)

    return out_p[:B, :H]


# --------------------------------------------------------------------------------------
# Pure-JAX reference (same math, no Pallas, no padding/fusion) for a correctness check
# --------------------------------------------------------------------------------------
def reference_forward(ids, seq_lens, p):
    B, T, F = ids.shape
    E = p["emb"].shape[-1]
    H = p["whr"].shape[0]
    embs = jnp.stack([p["emb"][f][ids[:, :, f]] for f in range(F)], axis=2)
    x = embs.reshape(B * T, F, E).astype(jnp.float32)

    def dense(a, w, b):
        return a @ w + b

    def ln(a, g, b):
        mu = a.mean(-1, keepdims=True)
        var = ((a - mu) ** 2).mean(-1, keepdims=True)
        return (a - mu) / jnp.sqrt(var + 1e-5) * g + b

    q = dense(x, p["wq"], p["bq"]); k = dense(x, p["wk"], p["bk"]); v = dense(x, p["wv"], p["bv"])
    s = jnp.einsum("nfe,nge->nfg", q, k) / (E ** 0.5)
    a = jax.nn.softmax(s, axis=-1)
    attn = dense(jnp.einsum("nfg,nge->nfe", a, v), p["wo"], p["bo"])
    h1 = ln(x + attn, p["ln1g"], p["ln1b"])
    ff = dense(jnp.maximum(dense(h1, p["w1"], p["b1"]), 0.0), p["w2"], p["b2"])
    h2 = ln(h1 + ff, p["ln2g"], p["ln2b"])

    feat = h2.reshape(B, T, F * E)
    xproj = feat @ p["wp"] + p["bp"]
    h = jnp.zeros((B, H), jnp.float32)
    for t in range(T):
        xt = xproj[:, t, :]
        r = jax.nn.sigmoid(xt @ p["wir"] + p["bir"] + h @ p["whr"] + p["bhr"])
        z = jax.nn.sigmoid(xt @ p["wiz"] + p["biz"] + h @ p["whz"] + p["bhz"])
        n = jnp.tanh(xt @ p["win"] + p["bin"] + r * (h @ p["whn"] + p["bhn"]))
        h_new = (1.0 - z) * n + z * h
        h = jnp.where((t < seq_lens)[:, None], h_new, h)
    denom = jnp.sum(h * h, axis=-1, keepdims=True) + 1e-9
    return h / jnp.sqrt(denom)


def init_params(key, F, E, V, FF, D, H):
    keys = iter(jax.random.split(key, 32))

    def rnd(shape, scale=0.2):
        return (scale * jax.random.normal(next(keys), shape)).astype(jnp.float32)

    return dict(
        emb=rnd((F, V, E), 0.5),
        wq=rnd((E, E)), wk=rnd((E, E)), wv=rnd((E, E)), wo=rnd((E, E)),
        bq=rnd((1, E), 0.05), bk=rnd((1, E), 0.05), bv=rnd((1, E), 0.05), bo=rnd((1, E), 0.05),
        ln1g=(1.0 + rnd((1, E), 0.05)), ln1b=rnd((1, E), 0.05),
        w1=rnd((E, FF)), b1=rnd((1, FF), 0.05),
        w2=rnd((FF, E)), b2=rnd((1, E), 0.05),
        ln2g=(1.0 + rnd((1, E), 0.05)), ln2b=rnd((1, E), 0.05),
        wp=rnd((D, D), 0.1), bp=rnd((1, D), 0.05),
        wir=rnd((D, H), 0.1), wiz=rnd((D, H), 0.1), win=rnd((D, H), 0.1),
        whr=rnd((H, H), 0.1), whz=rnd((H, H), 0.1), whn=rnd((H, H), 0.1),
        bir=rnd((1, H), 0.05), biz=rnd((1, H), 0.05), bin=rnd((1, H), 0.05),
        bhr=rnd((1, H), 0.05), bhz=rnd((1, H), 0.05), bhn=rnd((1, H), 0.05),
    )


if __name__ == "__main__":
    B, T, F, E = 16, 8, 4, 8       # batch, seq len, n categorical features, feature_emb_dim
    V, FF = 16, 16                 # vocab per feature, transformer feedforward dim
    D = F * E                      # token embedding after feature encoder (= 32)
    H = D                          # GRU hidden size (= seq-encoder output dim)

    key = jax.random.PRNGKey(0)
    k_ids, k_len, k_par = jax.random.split(key, 3)
    ids = jax.random.randint(k_ids, (B, T, F), 0, V, dtype=jnp.int32)
    seq_lens = jax.random.randint(k_len, (B,), 1, T + 1, dtype=jnp.int32)
    params = init_params(k_par, F, E, V, FF, D, H)

    out = jax.jit(tabformer_inference)(ids, seq_lens, params)
    jax.block_until_ready(out)

    ref = reference_forward(ids, seq_lens, params)
    np.testing.assert_allclose(np.asarray(out), np.asarray(ref), rtol=2e-2, atol=2e-2)
    print("KERNEL_OK")
</pallas_src>

<mosaic_0001>
module attributes {stable_mosaic.version = 11 : i64} {
  func.func @tabformer_fused_kernel(%arg0: i32, %arg1: i32, %arg2: memref<64x4xi32, #tpu.memory_space<vmem>>, %arg3: memref<8x1xi32, #tpu.memory_space<vmem>>, %arg4: memref<4x64xf32, #tpu.memory_space<vmem>>, %arg5: memref<1x64xf32, #tpu.memory_space<vmem>>, %arg6: memref<64x32xf32, #tpu.memory_space<vmem>>, %arg7: memref<32x128xbf16, #tpu.memory_space<vmem>>, %arg8: memref<1x128xf32, #tpu.memory_space<vmem>>, %arg9: memref<32x128xbf16, #tpu.memory_space<vmem>>, %arg10: memref<1x128xf32, #tpu.memory_space<vmem>>, %arg11: memref<32x128xbf16, #tpu.memory_space<vmem>>, %arg12: memref<1x128xf32, #tpu.memory_space<vmem>>, %arg13: memref<128x16xf32, #tpu.memory_space<vmem>>, %arg14: memref<16x16xf32, #tpu.memory_space<vmem>>, %arg15: memref<16x128xf32, #tpu.memory_space<vmem>>, %arg16: memref<128x32xbf16, #tpu.memory_space<vmem>>, %arg17: memref<1x32xf32, #tpu.memory_space<vmem>>, %arg18: memref<32x32xf32, #tpu.memory_space<vmem>>, %arg19: memref<1x32xf32, #tpu.memory_space<vmem>>, %arg20: memref<1x32xf32, #tpu.memory_space<vmem>>, %arg21: memref<32x128xbf16, #tpu.memory_space<vmem>>, %arg22: memref<1x128xf32, #tpu.memory_space<vmem>>, %arg23: memref<128x32xbf16, #tpu.memory_space<vmem>>, %arg24: memref<1x32xf32, #tpu.memory_space<vmem>>, %arg25: memref<1x32xf32, #tpu.memory_space<vmem>>, %arg26: memref<1x32xf32, #tpu.memory_space<vmem>>, %arg27: memref<32x384xbf16, #tpu.memory_space<vmem>>, %arg28: memref<1x384xf32, #tpu.memory_space<vmem>>, %arg29: memref<128x384xf32, #tpu.memory_space<vmem>>, %arg30: memref<1x384xf32, #tpu.memory_space<vmem>>, %arg31: memref<8x128xf32, #tpu.memory_space<vmem>>, %arg32: memref<8x128xf32, #tpu.memory_space<vmem>>, %arg33: memref<8x8x384xf32, #tpu.memory_space<vmem>>) attributes {dimension_semantics = [#tpu.dimension_semantics<parallel>, #tpu.dimension_semantics<arbitrary>], iteration_bounds = array<i64: 2, 1>, scalar_prefetch = 0 : i64, scratch_operands = 2 : i64, tpu.core_type = #tpu.core_type<tc>, window_params = [{transform_indices = @transform_0, window_bounds = array<i64: 64, 4>}, {transform_indices = @transform_1, window_bounds = array<i64: 8, 1>}, {pipeline_mode = #tpu.pipeline_mode<synchronous>, transform_indices = @transform_2, window_bounds = array<i64: 4, 64>}, {pipeline_mode = #tpu.pipeline_mode<synchronous>, transform_indices = @transform_3, window_bounds = array<i64: 1, 64>}, {pipeline_mode = #tpu.pipeline_mode<synchronous>, transform_indices = @transform_4, window_bounds = array<i64: 64, 32>}, {pipeline_mode = #tpu.pipeline_mode<synchronous>, transform_indices = @transform_5, window_bounds = array<i64: 32, 128>}, {pipeline_mode = #tpu.pipeline_mode<synchronous>, transform_indices = @transform_6, window_bounds = array<i64: 1, 128>}, {pipeline_mode = #tpu.pipeline_mode<synchronous>, transform_indices = @transform_7, window_bounds = array<i64: 32, 128>}, {pipeline_mode = #tpu.pipeline_mode<synchronous>, transform_indices = @transform_8, window_bounds = array<i64: 1, 128>}, {pipeline_mode = #tpu.pipeline_mode<synchronous>, transform_indices = @transform_9, window_bounds = array<i64: 32, 128>}, {pipeline_mode = #tpu.pipeline_mode<synchronous>, transform_indices = @transform_10, window_bounds = array<i64: 1, 128>}, {pipeline_mode = #tpu.pipeline_mode<synchronous>, transform_indices = @transform_11, window_bounds = array<i64: 128, 16>}, {pipeline_mode = #tpu.pipeline_mode<synchronous>, transform_indices = @transform_12, window_bounds = array<i64: 16, 16>}, {pipeline_mode = #tpu.pipeline_mode<synchronous>, transform_indices = @transform_13, window_bounds = array<i64: 16, 128>}, {pipeline_mode = #tpu.pipeline_mode<synchronous>, transform_indices = @transform_14, window_bounds = array<i64: 128, 32>}, {pipeline_mode = #tpu.pipeline_mode<synchronous>, transform_indices = @transform_15, window_bounds = array<i64: 1, 32>}, {pipeline_mode = #tpu.pipeline_mode<synchronous>, transform_indices = @transform_16, window_bounds = array<i64: 32, 32>}, {pipeline_mode = #tpu.pipeline_mode<synchronous>, transform_indices = @transform_17, window_bounds = array<i64: 1, 32>}, {pipeline_mode = #tpu.pipeline_mode<synchronous>, transform_indices = @transform_18, window_bounds = array<i64: 1, 32>}, {pipeline_mode = #tpu.pipeline_mode<synchronous>, transform_indices = @transform_19, window_bounds = array<i64: 32, 128>}, {pipeline_mode = #tpu.pipeline_mode<synchronous>, transform_indices = @transform_20, window_bounds = array<i64: 1, 128>}, {pipeline_mode = #tpu.pipeline_mode<synchronous>, transform_indices = @transform_21, window_bounds = array<i64: 128, 32>}, {pipeline_mode = #tpu.pipeline_mode<synchronous>, transform_indices = @transform_22, window_bounds = array<i64: 1, 32>}, {pipeline_mode = #tpu.pipeline_mode<synchronous>, transform_indices = @transform_23, window_bounds = array<i64: 1, 32>}, {pipeline_mode = #tpu.pipeline_mode<synchronous>, transform_indices = @transform_24, window_bounds = array<i64: 1, 32>}, {pipeline_mode = #tpu.pipeline_mode<synchronous>, transform_indices = @transform_25, window_bounds = array<i64: 32, 384>}, {pipeline_mode = #tpu.pipeline_mode<synchronous>, transform_indices = @transform_26, window_bounds = array<i64: 1, 384>}, {pipeline_mode = #tpu.pipeline_mode<synchronous>, transform_indices = @transform_27, window_bounds = array<i64: 128, 384>}, {pipeline_mode = #tpu.pipeline_mode<synchronous>, transform_indices = @transform_28, window_bounds = array<i64: 1, 384>}, {transform_indices = @transform_29, window_bounds = array<i64: 8, 128>}]} {
    %c0_i32 = arith.constant 0 : i32
    %0 = arith.cmpi eq, %arg1, %c0_i32 : i32
    %1 = arith.extui %0 : i1 to i32
    %c0_i32_0 = arith.constant 0 : i32
    %2 = arith.cmpi ne, %1, %c0_i32_0 : i32
    scf.if %2 {
      %cst_177 = arith.constant 0.000000e+00 : f32
      %445 = vector.broadcast %cst_177 : f32 to vector<8x128xf32>
      %c0_178 = arith.constant 0 : index
      %c0_179 = arith.constant 0 : index
      %446 = vector.load %arg32[%c0_178, %c0_179] : memref<8x128xf32, #tpu.memory_space<vmem>>, vector<8x128xf32>
      tpu.vector_store %arg32[%c0_178, %c0_179], %445 {strides = array<i32>} : memref<8x128xf32, #tpu.memory_space<vmem>>, vector<8x128xf32>,
    } else {
    }
    %c0 = arith.constant 0 : index
    %c0_1 = arith.constant 0 : index
    %3 = vector.load %arg2[%c0, %c0_1] : memref<64x4xi32, #tpu.memory_space<vmem>>, vector<64x4xi32>
    %4 = arith.sitofp %3 : vector<64x4xi32> to vector<64x4xf32>
    %c0_2 = arith.constant 0 : index
    %c0_3 = arith.constant 0 : index
    %5 = vector.load %arg4[%c0_2, %c0_3] : memref<4x64xf32, #tpu.memory_space<vmem>>, vector<4x64xf32>
    %cst = arith.constant dense<0.000000e+00> : vector<64x64xf32>
    %6 = tpu.matmul %4, %5, %cst {dimension_numbers = #tpu.dot_dimension_numbers<[1], [0], [0], [1], [0, 0, 1, 1], [], []>} : vector<64x4xf32>, vector<4x64xf32>, vector<64x64xf32> -> vector<64x64xf32>
    %c0_4 = arith.constant 0 : index
    %c0_5 = arith.constant 0 : index
    %7 = vector.load %arg5[%c0_4, %c0_5] : memref<1x64xf32, #tpu.memory_space<vmem>>, vector<1x64xf32>
    %8 = vector.broadcast %7 : vector<1x64xf32> to vector<64x64xf32>
    %9 = arith.cmpf oeq, %6, %8 : vector<64x64xf32>
    %10 = arith.extui %9 : vector<64x64xi1> to vector<64x64xi32>
    %11 = arith.sitofp %10 : vector<64x64xi32> to vector<64x64xf32>
    %c0_6 = arith.constant 0 : index
    %c0_7 = arith.constant 0 : index
    %12 = vector.load %arg6[%c0_6, %c0_7] : memref<64x32xf32, #tpu.memory_space<vmem>>, vector<64x32xf32>
    %cst_8 = arith.constant dense<0.000000e+00> : vector<64x32xf32>
    %13 = tpu.matmul %11, %12, %cst_8 {dimension_numbers = #tpu.dot_dimension_numbers<[1], [0], [0], [1], [0, 0, 1, 1], [], []>} : vector<64x64xf32>, vector<64x32xf32>, vector<64x32xf32> -> vector<64x32xf32>
    %14 = arith.truncf %13 : vector<64x32xf32> to vector<64x32xbf16>
    %c0_9 = arith.constant 0 : index
    %c0_10 = arith.constant 0 : index
    %15 = vector.load %arg7[%c0_9, %c0_10] : memref<32x128xbf16, #tpu.memory_space<vmem>>, vector<32x128xbf16>
    %cst_11 = arith.constant dense<0.000000e+00> : vector<64x128xf32>
    %16 = tpu.matmul %14, %15, %cst_11 {dimension_numbers = #tpu.dot_dimension_numbers<[1], [0], [0], [1], [0, 0, 1, 1], [], []>} : vector<64x32xbf16>, vector<32x128xbf16>, vector<64x128xf32> -> vector<64x128xf32>
    %c0_12 = arith.constant 0 : index
    %c0_13 = arith.constant 0 : index
    %17 = vector.load %arg8[%c0_12, %c0_13] : memref<1x128xf32, #tpu.memory_space<vmem>>, vector<1x128xf32>
    %18 = vector.broadcast %17 : vector<1x128xf32> to vector<64x128xf32>
    %19 = arith.addf %16, %18 : vector<64x128xf32>
    %20 = arith.truncf %13 : vector<64x32xf32> to vector<64x32xbf16>
    %c0_14 = arith.constant 0 : index
    %c0_15 = arith.constant 0 : index
    %21 = vector.load %arg9[%c0_14, %c0_15] : memref<32x128xbf16, #tpu.memory_space<vmem>>, vector<32x128xbf16>
    %cst_16 = arith.constant dense<0.000000e+00> : vector<64x128xf32>
    %22 = tpu.matmul %20, %21, %cst_16 {dimension_numbers = #tpu.dot_dimension_numbers<[1], [0], [0], [1], [0, 0, 1, 1], [], []>} : vector<64x32xbf16>, vector<32x128xbf16>, vector<64x128xf32> -> vector<64x128xf32>
    %c0_17 = arith.constant 0 : index
    %c0_18 = arith.constant 0 : index
    %23 = vector.load %arg10[%c0_17, %c0_18] : memref<1x128xf32, #tpu.memory_space<vmem>>, vector<1x128xf32>
    %24 = vector.broadcast %23 : vector<1x128xf32> to vector<64x128xf32>
    %25 = arith.addf %22, %24 : vector<64x128xf32>
    %26 = arith.truncf %13 : vector<64x32xf32> to vector<64x32xbf16>
    %c0_19 = arith.constant 0 : index
    %c0_20 = arith.constant 0 : index
    %27 = vector.load %arg11[%c0_19, %c0_20] : memref<32x128xbf16, #tpu.memory_space<vmem>>, vector<32x128xbf16>
    %cst_21 = arith.constant dense<0.000000e+00> : vector<64x128xf32>
    %28 = tpu.matmul %26, %27, %cst_21 {dimension_numbers = #tpu.dot_dimension_numbers<[1], [0], [0], [1], [0, 0, 1, 1], [], []>} : vector<64x32xbf16>, vector<32x128xbf16>, vector<64x128xf32> -> vector<64x128xf32>
    %c0_22 = arith.constant 0 : index
    %c0_23 = arith.constant 0 : index
    %29 = vector.load %arg12[%c0_22, %c0_23] : memref<1x128xf32, #tpu.memory_space<vmem>>, vector<1x128xf32>
    %30 = vector.broadcast %29 : vector<1x128xf32> to vector<64x128xf32>
    %31 = arith.addf %28, %30 : vector<64x128xf32>
    %32 = arith.mulf %19, %25 : vector<64x128xf32>
    %c0_24 = arith.constant 0 : index
    %c0_25 = arith.constant 0 : index
    %33 = vector.load %arg13[%c0_24, %c0_25] : memref<128x16xf32, #tpu.memory_space<vmem>>, vector<128x16xf32>
    %cst_26 = arith.constant dense<0.000000e+00> : vector<64x16xf32>
    %34 = tpu.matmul %32, %33, %cst_26 {dimension_numbers = #tpu.dot_dimension_numbers<[1], [0], [0], [1], [0, 0, 1, 1], [], []>} : vector<64x128xf32>, vector<128x16xf32>, vector<64x16xf32> -> vector<64x16xf32>
    %cst_27 = arith.constant dense<0xFF800000> : vector<64xf32>
    %35 = vector.multi_reduction <maximumf>, %34, %cst_27 [1] : vector<64x16xf32> to vector<64xf32>
    %36 = vector.shape_cast %35 : vector<64xf32> to vector<64x1xf32>
    %37 = vector.broadcast %36 : vector<64x1xf32> to vector<64x16xf32>
    %38 = arith.subf %34, %37 : vector<64x16xf32>
    %39 = math.exp %38 : vector<64x16xf32>
    %c0_28 = arith.constant 0 : index
    %c0_29 = arith.constant 0 : index
    %40 = vector.load %arg14[%c0_28, %c0_29] : memref<16x16xf32, #tpu.memory_space<vmem>>, vector<16x16xf32>
    %cst_30 = arith.constant dense<0.000000e+00> : vector<64x16xf32>
    %41 = tpu.matmul %39, %40, %cst_30 {dimension_numbers = #tpu.dot_dimension_numbers<[1], [0], [0], [1], [0, 0, 1, 1], [], []>} : vector<64x16xf32>, vector<16x16xf32>, vector<64x16xf32> -> vector<64x16xf32>
    %42 = tpu.reciprocal %41 {approx = true} : vector<64x16xf32> -> vector<64x16xf32>
    %43 = arith.mulf %39, %42 : vector<64x16xf32>
    %c0_31 = arith.constant 0 : index
    %c0_32 = arith.constant 0 : index
    %44 = vector.load %arg15[%c0_31, %c0_32] : memref<16x128xf32, #tpu.memory_space<vmem>>, vector<16x128xf32>
    %cst_33 = arith.constant dense<0.000000e+00> : vector<64x128xf32>
    %45 = tpu.matmul %43, %44, %cst_33 {dimension_numbers = #tpu.dot_dimension_numbers<[1], [0], [0], [1], [0, 0, 1, 1], [], []>} : vector<64x16xf32>, vector<16x128xf32>, vector<64x128xf32> -> vector<64x128xf32>
    %46 = arith.mulf %45, %31 : vector<64x128xf32>
    %47 = arith.truncf %46 : vector<64x128xf32> to vector<64x128xbf16>
    %c0_34 = arith.constant 0 : index
    %c0_35 = arith.constant 0 : index
    %48 = vector.load %arg16[%c0_34, %c0_35] : memref<128x32xbf16, #tpu.memory_space<vmem>>, vector<128x32xbf16>
    %cst_36 = arith.constant dense<0.000000e+00> : vector<64x32xf32>
    %49 = tpu.matmul %47, %48, %cst_36 {dimension_numbers = #tpu.dot_dimension_numbers<[1], [0], [0], [1], [0, 0, 1, 1], [], []>} : vector<64x128xbf16>, vector<128x32xbf16>, vector<64x32xf32> -> vector<64x32xf32>
    %c0_37 = arith.constant 0 : index
    %c0_38 = arith.constant 0 : index
    %50 = vector.load %arg17[%c0_37, %c0_38] : memref<1x32xf32, #tpu.memory_space<vmem>>, vector<1x32xf32>
    %51 = vector.broadcast %50 : vector<1x32xf32> to vector<64x32xf32>
    %52 = arith.addf %49, %51 : vector<64x32xf32>
    %53 = arith.addf %13, %52 : vector<64x32xf32>
    %c0_39 = arith.constant 0 : index
    %c0_40 = arith.constant 0 : index
    %54 = vector.load %arg18[%c0_39, %c0_40] : memref<32x32xf32, #tpu.memory_space<vmem>>, vector<32x32xf32>
    %cst_41 = arith.constant dense<0.000000e+00> : vector<64x32xf32>
    %55 = tpu.matmul %53, %54, %cst_41 {dimension_numbers = #tpu.dot_dimension_numbers<[1], [0], [0], [1], [0, 0, 1, 1], [], []>} : vector<64x32xf32>, vector<32x32xf32>, vector<64x32xf32> -> vector<64x32xf32>
    %56 = arith.subf %53, %55 : vector<64x32xf32>
    %57 = arith.mulf %56, %56 : vector<64x32xf32>
    %c0_42 = arith.constant 0 : index
    %c0_43 = arith.constant 0 : index
    %58 = vector.load %arg18[%c0_42, %c0_43] : memref<32x32xf32, #tpu.memory_space<vmem>>, vector<32x32xf32>
    %cst_44 = arith.constant dense<0.000000e+00> : vector<64x32xf32>
    %59 = tpu.matmul %57, %58, %cst_44 {dimension_numbers = #tpu.dot_dimension_numbers<[1], [0], [0], [1], [0, 0, 1, 1], [], []>} : vector<64x32xf32>, vector<32x32xf32>, vector<64x32xf32> -> vector<64x32xf32>
    %60 = arith.subf %53, %55 : vector<64x32xf32>
    %cst_45 = arith.constant 9.99999974E-6 : f32
    %61 = vector.broadcast %cst_45 : f32 to vector<64x32xf32>
    %62 = arith.addf %59, %61 : vector<64x32xf32>
    %63 = math.rsqrt %62 : vector<64x32xf32>
    %64 = arith.mulf %60, %63 : vector<64x32xf32>
    %c0_46 = arith.constant 0 : index
    %c0_47 = arith.constant 0 : index
    %65 = vector.load %arg19[%c0_46, %c0_47] : memref<1x32xf32, #tpu.memory_space<vmem>>, vector<1x32xf32>
    %66 = vector.broadcast %65 : vector<1x32xf32> to vector<64x32xf32>
    %67 = arith.mulf %64, %66 : vector<64x32xf32>
    %c0_48 = arith.constant 0 : index
    %c0_49 = arith.constant 0 : index
    %68 = vector.load %arg20[%c0_48, %c0_49] : memref<1x32xf32, #tpu.memory_space<vmem>>, vector<1x32xf32>
    %69 = vector.broadcast %68 : vector<1x32xf32> to vector<64x32xf32>
    %70 = arith.addf %67, %69 : vector<64x32xf32>
    %71 = arith.truncf %70 : vector<64x32xf32> to vector<64x32xbf16>
    %c0_50 = arith.constant 0 : index
    %c0_51 = arith.constant 0 : index
    %72 = vector.load %arg21[%c0_50, %c0_51] : memref<32x128xbf16, #tpu.memory_space<vmem>>, vector<32x128xbf16>
    %cst_52 = arith.constant dense<0.000000e+00> : vector<64x128xf32>
    %73 = tpu.matmul %71, %72, %cst_52 {dimension_numbers = #tpu.dot_dimension_numbers<[1], [0], [0], [1], [0, 0, 1, 1], [], []>} : vector<64x32xbf16>, vector<32x128xbf16>, vector<64x128xf32> -> vector<64x128xf32>
    %c0_53 = arith.constant 0 : index
    %c0_54 = arith.constant 0 : index
    %74 = vector.load %arg22[%c0_53, %c0_54] : memref<1x128xf32, #tpu.memory_space<vmem>>, vector<1x128xf32>
    %75 = vector.broadcast %74 : vector<1x128xf32> to vector<64x128xf32>
    %76 = arith.addf %73, %75 : vector<64x128xf32>
    %cst_55 = arith.constant 0.000000e+00 : f32
    %77 = vector.broadcast %cst_55 : f32 to vector<64x128xf32>
    %78 = arith.maximumf %76, %77 : vector<64x128xf32>
    %79 = arith.truncf %78 : vector<64x128xf32> to vector<64x128xbf16>
    %c0_56 = arith.constant 0 : index
    %c0_57 = arith.constant 0 : index
    %80 = vector.load %arg23[%c0_56, %c0_57] : memref<128x32xbf16, #tpu.memory_space<vmem>>, vector<128x32xbf16>
    %cst_58 = arith.constant dense<0.000000e+00> : vector<64x32xf32>
    %81 = tpu.matmul %79, %80, %cst_58 {dimension_numbers = #tpu.dot_dimension_numbers<[1], [0], [0], [1], [0, 0, 1, 1], [], []>} : vector<64x128xbf16>, vector<128x32xbf16>, vector<64x32xf32> -> vector<64x32xf32>
    %c0_59 = arith.constant 0 : index
    %c0_60 = arith.constant 0 : index
    %82 = vector.load %arg24[%c0_59, %c0_60] : memref<1x32xf32, #tpu.memory_space<vmem>>, vector<1x32xf32>
    %83 = vector.broadcast %82 : vector<1x32xf32> to vector<64x32xf32>
    %84 = arith.addf %81, %83 : vector<64x32xf32>
    %85 = arith.addf %70, %84 : vector<64x32xf32>
    %c0_61 = arith.constant 0 : index
    %c0_62 = arith.constant 0 : index
    %86 = vector.load %arg18[%c0_61, %c0_62] : memref<32x32xf32, #tpu.memory_space<vmem>>, vector<32x32xf32>
    %cst_63 = arith.constant dense<0.000000e+00> : vector<64x32xf32>
    %87 = tpu.matmul %85, %86, %cst_63 {dimension_numbers = #tpu.dot_dimension_numbers<[1], [0], [0], [1], [0, 0, 1, 1], [], []>} : vector<64x32xf32>, vector<32x32xf32>, vector<64x32xf32> -> vector<64x32xf32>
    %88 = arith.subf %85, %87 : vector<64x32xf32>
    %89 = arith.mulf %88, %88 : vector<64x32xf32>
    %c0_64 = arith.constant 0 : index
    %c0_65 = arith.constant 0 : index
    %90 = vector.load %arg18[%c0_64, %c0_65] : memref<32x32xf32, #tpu.memory_space<vmem>>, vector<32x32xf32>
    %cst_66 = arith.constant dense<0.000000e+00> : vector<64x32xf32>
    %91 = tpu.matmul %89, %90, %cst_66 {dimension_numbers = #tpu.dot_dimension_numbers<[1], [0], [0], [1], [0, 0, 1, 1], [], []>} : vector<64x32xf32>, vector<32x32xf32>, vector<64x32xf32> -> vector<64x32xf32>
    %92 = arith.subf %85, %87 : vector<64x32xf32>
    %cst_67 = arith.constant 9.99999974E-6 : f32
    %93 = vector.broadcast %cst_67 : f32 to vector<64x32xf32>
    %94 = arith.addf %91, %93 : vector<64x32xf32>
    %95 = math.rsqrt %94 : vector<64x32xf32>
    %96 = arith.mulf %92, %95 : vector<64x32xf32>
    %c0_68 = arith.constant 0 : index
    %c0_69 = arith.constant 0 : index
    %97 = vector.load %arg25[%c0_68, %c0_69] : memref<1x32xf32, #tpu.memory_space<vmem>>, vector<1x32xf32>
    %98 = vector.broadcast %97 : vector<1x32xf32> to vector<64x32xf32>
    %99 = arith.mulf %96, %98 : vector<64x32xf32>
    %c0_70 = arith.constant 0 : index
    %c0_71 = arith.constant 0 : index
    %100 = vector.load %arg26[%c0_70, %c0_71] : memref<1x32xf32, #tpu.memory_space<vmem>>, vector<1x32xf32>
    %101 = vector.broadcast %100 : vector<1x32xf32> to vector<64x32xf32>
    %102 = arith.addf %99, %101 : vector<64x32xf32>
    %103 = arith.truncf %102 : vector<64x32xf32> to vector<64x32xbf16>
    %c0_72 = arith.constant 0 : index
    %c0_73 = arith.constant 0 : index
    %104 = vector.load %arg27[%c0_72, %c0_73] : memref<32x384xbf16, #tpu.memory_space<vmem>>, vector<32x384xbf16>
    %cst_74 = arith.constant dense<0.000000e+00> : vector<64x384xf32>
    %105 = tpu.matmul %103, %104, %cst_74 {dimension_numbers = #tpu.dot_dimension_numbers<[1], [0], [0], [1], [0, 0, 1, 1], [], []>} : vector<64x32xbf16>, vector<32x384xbf16>, vector<64x384xf32> -> vector<64x384xf32>
    %c0_75 = arith.constant 0 : index
    %c0_76 = arith.constant 0 : index
    %106 = vector.load %arg28[%c0_75, %c0_76] : memref<1x384xf32, #tpu.memory_space<vmem>>, vector<1x384xf32>
    %107 = vector.broadcast %106 : vector<1x384xf32> to vector<64x384xf32>
    %108 = arith.addf %105, %107 : vector<64x384xf32>
    %109 = vector.shape_cast %108 : vector<64x384xf32> to vector<8x8x384xf32>
    %c0_77 = arith.constant 0 : index
    %c0_78 = arith.constant 0 : index
    %c0_79 = arith.constant 0 : index
    %110 = vector.load %arg33[%c0_77, %c0_78, %c0_79] : memref<8x8x384xf32, #tpu.memory_space<vmem>>, vector<8x8x384xf32>
    tpu.vector_store %arg33[%c0_77, %c0_78, %c0_79], %109 {strides = array<i32>} : memref<8x8x384xf32, #tpu.memory_space<vmem>>, vector<8x8x384xf32>,
    %c0_80 = arith.constant 0 : index
    %c0_81 = arith.constant 0 : index
    %111 = vector.load %arg3[%c0_80, %c0_81] : memref<8x1xi32, #tpu.memory_space<vmem>>, vector<8x1xi32>
    %c0_82 = arith.constant 0 : index
    %c0_83 = arith.constant 0 : index
    %112 = vector.load %arg29[%c0_82, %c0_83] : memref<128x384xf32, #tpu.memory_space<vmem>>, vector<128x384xf32>
    %c0_84 = arith.constant 0 : index
    %c0_85 = arith.constant 0 : index
    %113 = vector.load %arg30[%c0_84, %c0_85] : memref<1x384xf32, #tpu.memory_space<vmem>>, vector<1x384xf32>
    %c0_i32_86 = arith.constant 0 : i32
    %c8_i32 = arith.constant 8 : i32
    %114 = arith.muli %arg1, %c8_i32 : i32
    %115 = arith.addi %114, %c0_i32_86 : i32
    %116 = arith.index_cast %c0_i32_86 : i32 to index
    %c0_87 = arith.constant 0 : index
    %c0_88 = arith.constant 0 : index
    %117 = vector.load %arg33[%116, %c0_87, %c0_88] : memref<8x8x384xf32, #tpu.memory_space<vmem>>, vector<1x8x384xf32>
    %118 = vector.shape_cast %117 : vector<1x8x384xf32> to vector<8x384xf32>
    %c0_89 = arith.constant 0 : index
    %c0_90 = arith.constant 0 : index
    %119 = vector.load %arg32[%c0_89, %c0_90] : memref<8x128xf32, #tpu.memory_space<vmem>>, vector<8x128xf32>
    %cst_91 = arith.constant dense<0.000000e+00> : vector<8x384xf32>
    %120 = tpu.matmul %119, %112, %cst_91 {dimension_numbers = #tpu.dot_dimension_numbers<[1], [0], [0], [1], [0, 0, 1, 1], [], []>} : vector<8x128xf32>, vector<128x384xf32>, vector<8x384xf32> -> vector<8x384xf32>
    %121 = vector.broadcast %113 : vector<1x384xf32> to vector<8x384xf32>
    %122 = arith.addf %120, %121 : vector<8x384xf32>
    %123 = vector.extract_strided_slice %118 {offsets = [0, 0], sizes = [8, 128], strides = [1, 1]} : vector<8x384xf32> to vector<8x128xf32>
    %124 = vector.extract_strided_slice %122 {offsets = [0, 0], sizes = [8, 128], strides = [1, 1]} : vector<8x384xf32> to vector<8x128xf32>
    %125 = arith.addf %123, %124 : vector<8x128xf32>
    %126 = arith.negf %125 : vector<8x128xf32>
    %127 = math.exp %126 : vector<8x128xf32>
    %cst_92 = arith.constant 1.000000e+00 : f32
    %128 = vector.broadcast %cst_92 : f32 to vector<8x128xf32>
    %129 = arith.addf %128, %127 : vector<8x128xf32>
    %130 = arith.divf %128, %129 : vector<8x128xf32>
    %131 = vector.extract_strided_slice %118 {offsets = [0, 128], sizes = [8, 128], strides = [1, 1]} : vector<8x384xf32> to vector<8x128xf32>
    %132 = vector.extract_strided_slice %122 {offsets = [0, 128], sizes = [8, 128], strides = [1, 1]} : vector<8x384xf32> to vector<8x128xf32>
    %133 = arith.addf %131, %132 : vector<8x128xf32>
    %134 = arith.negf %133 : vector<8x128xf32>
    %135 = math.exp %134 : vector<8x128xf32>
    %cst_93 = arith.constant 1.000000e+00 : f32
    %136 = vector.broadcast %cst_93 : f32 to vector<8x128xf32>
    %137 = arith.addf %136, %135 : vector<8x128xf32>
    %138 = arith.divf %136, %137 : vector<8x128xf32>
    %139 = vector.extract_strided_slice %118 {offsets = [0, 256], sizes = [8, 128], strides = [1, 1]} : vector<8x384xf32> to vector<8x128xf32>
    %140 = vector.extract_strided_slice %122 {offsets = [0, 256], sizes = [8, 128], strides = [1, 1]} : vector<8x384xf32> to vector<8x128xf32>
    %141 = arith.mulf %130, %140 : vector<8x128xf32>
    %142 = arith.addf %139, %141 : vector<8x128xf32>
    %143 = math.tanh %142 : vector<8x128xf32>
    %cst_94 = arith.constant 1.000000e+00 : f32
    %144 = vector.broadcast %cst_94 : f32 to vector<8x128xf32>
    %145 = arith.subf %144, %138 : vector<8x128xf32>
    %146 = arith.mulf %145, %143 : vector<8x128xf32>
    %147 = arith.mulf %138, %119 : vector<8x128xf32>
    %148 = arith.addf %146, %147 : vector<8x128xf32>
    %149 = vector.broadcast %115 : i32 to vector<8x1xi32>
    %150 = arith.cmpi slt, %149, %111 : vector<8x1xi32>
    %151 = vector.shape_cast %150 : vector<8x1xi1> to vector<8x1xi1>
    %152 = vector.broadcast %151 : vector<8x1xi1> to vector<8x128xi1>
    %153 = arith.select %152, %148, %119 : vector<8x128xi1>, vector<8x128xf32>
    %c0_95 = arith.constant 0 : index
    %c0_96 = arith.constant 0 : index
    %154 = vector.load %arg32[%c0_95, %c0_96] : memref<8x128xf32, #tpu.memory_space<vmem>>, vector<8x128xf32>
    tpu.vector_store %arg32[%c0_95, %c0_96], %153 {strides = array<i32>} : memref<8x128xf32, #tpu.memory_space<vmem>>, vector<8x128xf32>,
    %c1_i32 = arith.constant 1 : i32
    %c8_i32_97 = arith.constant 8 : i32
    %155 = arith.muli %arg1, %c8_i32_97 : i32
    %156 = arith.addi %155, %c1_i32 : i32
    %157 = arith.index_cast %c1_i32 : i32 to index
    %c0_98 = arith.constant 0 : index
    %c0_99 = arith.constant 0 : index
    %158 = vector.load %arg33[%157, %c0_98, %c0_99] : memref<8x8x384xf32, #tpu.memory_space<vmem>>, vector<1x8x384xf32>
    %159 = vector.shape_cast %158 : vector<1x8x384xf32> to vector<8x384xf32>
    %c0_100 = arith.constant 0 : index
    %c0_101 = arith.constant 0 : index
    %160 = vector.load %arg32[%c0_100, %c0_101] : memref<8x128xf32, #tpu.memory_space<vmem>>, vector<8x128xf32>
    %cst_102 = arith.constant dense<0.000000e+00> : vector<8x384xf32>
    %161 = tpu.matmul %160, %112, %cst_102 {dimension_numbers = #tpu.dot_dimension_numbers<[1], [0], [0], [1], [0, 0, 1, 1], [], []>} : vector<8x128xf32>, vector<128x384xf32>, vector<8x384xf32> -> vector<8x384xf32>
    %162 = vector.broadcast %113 : vector<1x384xf32> to vector<8x384xf32>
    %163 = arith.addf %161, %162 : vector<8x384xf32>
    %164 = vector.extract_strided_slice %159 {offsets = [0, 0], sizes = [8, 128], strides = [1, 1]} : vector<8x384xf32> to vector<8x128xf32>
    %165 = vector.extract_strided_slice %163 {offsets = [0, 0], sizes = [8, 128], strides = [1, 1]} : vector<8x384xf32> to vector<8x128xf32>
    %166 = arith.addf %164, %165 : vector<8x128xf32>
    %167 = arith.negf %166 : vector<8x128xf32>
    %168 = math.exp %167 : vector<8x128xf32>
    %cst_103 = arith.constant 1.000000e+00 : f32
    %169 = vector.broadcast %cst_103 : f32 to vector<8x128xf32>
    %170 = arith.addf %169, %168 : vector<8x128xf32>
    %171 = arith.divf %169, %170 : vector<8x128xf32>
    %172 = vector.extract_strided_slice %159 {offsets = [0, 128], sizes = [8, 128], strides = [1, 1]} : vector<8x384xf32> to vector<8x128xf32>
    %173 = vector.extract_strided_slice %163 {offsets = [0, 128], sizes = [8, 128], strides = [1, 1]} : vector<8x384xf32> to vector<8x128xf32>
    %174 = arith.addf %172, %173 : vector<8x128xf32>
    %175 = arith.negf %174 : vector<8x128xf32>
    %176 = math.exp %175 : vector<8x128xf32>
    %cst_104 = arith.constant 1.000000e+00 : f32
    %177 = vector.broadcast %cst_104 : f32 to vector<8x128xf32>
    %178 = arith.addf %177, %176 : vector<8x128xf32>
    %179 = arith.divf %177, %178 : vector<8x128xf32>
    %180 = vector.extract_strided_slice %159 {offsets = [0, 256], sizes = [8, 128], strides = [1, 1]} : vector<8x384xf32> to vector<8x128xf32>
    %181 = vector.extract_strided_slice %163 {offsets = [0, 256], sizes = [8, 128], strides = [1, 1]} : vector<8x384xf32> to vector<8x128xf32>
    %182 = arith.mulf %171, %181 : vector<8x128xf32>
    %183 = arith.addf %180, %182 : vector<8x128xf32>
    %184 = math.tanh %183 : vector<8x128xf32>
    %cst_105 = arith.constant 1.000000e+00 : f32
    %185 = vector.broadcast %cst_105 : f32 to vector<8x128xf32>
    %186 = arith.subf %185, %179 : vector<8x128xf32>
    %187 = arith.mulf %186, %184 : vector<8x128xf32>
    %188 = arith.mulf %179, %160 : vector<8x128xf32>
    %189 = arith.addf %187, %188 : vector<8x128xf32>
    %190 = vector.broadcast %156 : i32 to vector<8x1xi32>
    %191 = arith.cmpi slt, %190, %111 : vector<8x1xi32>
    %192 = vector.shape_cast %191 : vector<8x1xi1> to vector<8x1xi1>
    %193 = vector.broadcast %192 : vector<8x1xi1> to vector<8x128xi1>
    %194 = arith.select %193, %189, %160 : vector<8x128xi1>, vector<8x128xf32>
    %c0_106 = arith.constant 0 : index
    %c0_107 = arith.constant 0 : index
    %195 = vector.load %arg32[%c0_106, %c0_107] : memref<8x128xf32, #tpu.memory_space<vmem>>, vector<8x128xf32>
    tpu.vector_store %arg32[%c0_106, %c0_107], %194 {strides = array<i32>} : memref<8x128xf32, #tpu.memory_space<vmem>>, vector<8x128xf32>,
    %c2_i32 = arith.constant 2 : i32
    %c8_i32_108 = arith.constant 8 : i32
    %196 = arith.muli %arg1, %c8_i32_108 : i32
    %197 = arith.addi %196, %c2_i32 : i32
    %198 = arith.index_cast %c2_i32 : i32 to index
    %c0_109 = arith.constant 0 : index
    %c0_110 = arith.constant 0 : index
    %199 = vector.load %arg33[%198, %c0_109, %c0_110] : memref<8x8x384xf32, #tpu.memory_space<vmem>>, vector<1x8x384xf32>
    %200 = vector.shape_cast %199 : vector<1x8x384xf32> to vector<8x384xf32>
    %c0_111 = arith.constant 0 : index
    %c0_112 = arith.constant 0 : index
    %201 = vector.load %arg32[%c0_111, %c0_112] : memref<8x128xf32, #tpu.memory_space<vmem>>, vector<8x128xf32>
    %cst_113 = arith.constant dense<0.000000e+00> : vector<8x384xf32>
    %202 = tpu.matmul %201, %112, %cst_113 {dimension_numbers = #tpu.dot_dimension_numbers<[1], [0], [0], [1], [0, 0, 1, 1], [], []>} : vector<8x128xf32>, vector<128x384xf32>, vector<8x384xf32> -> vector<8x384xf32>
    %203 = vector.broadcast %113 : vector<1x384xf32> to vector<8x384xf32>
    %204 = arith.addf %202, %203 : vector<8x384xf32>
    %205 = vector.extract_strided_slice %200 {offsets = [0, 0], sizes = [8, 128], strides = [1, 1]} : vector<8x384xf32> to vector<8x128xf32>
    %206 = vector.extract_strided_slice %204 {offsets = [0, 0], sizes = [8, 128], strides = [1, 1]} : vector<8x384xf32> to vector<8x128xf32>
    %207 = arith.addf %205, %206 : vector<8x128xf32>
    %208 = arith.negf %207 : vector<8x128xf32>
    %209 = math.exp %208 : vector<8x128xf32>
    %cst_114 = arith.constant 1.000000e+00 : f32
    %210 = vector.broadcast %cst_114 : f32 to vector<8x128xf32>
    %211 = arith.addf %210, %209 : vector<8x128xf32>
    %212 = arith.divf %210, %211 : vector<8x128xf32>
    %213 = vector.extract_strided_slice %200 {offsets = [0, 128], sizes = [8, 128], strides = [1, 1]} : vector<8x384xf32> to vector<8x128xf32>
    %214 = vector.extract_strided_slice %204 {offsets = [0, 128], sizes = [8, 128], strides = [1, 1]} : vector<8x384xf32> to vector<8x128xf32>
    %215 = arith.addf %213, %214 : vector<8x128xf32>
    %216 = arith.negf %215 : vector<8x128xf32>
    %217 = math.exp %216 : vector<8x128xf32>
    %cst_115 = arith.constant 1.000000e+00 : f32
    %218 = vector.broadcast %cst_115 : f32 to vector<8x128xf32>
    %219 = arith.addf %218, %217 : vector<8x128xf32>
    %220 = arith.divf %218, %219 : vector<8x128xf32>
    %221 = vector.extract_strided_slice %200 {offsets = [0, 256], sizes = [8, 128], strides = [1, 1]} : vector<8x384xf32> to vector<8x128xf32>
    %222 = vector.extract_strided_slice %204 {offsets = [0, 256], sizes = [8, 128], strides = [1, 1]} : vector<8x384xf32> to vector<8x128xf32>
    %223 = arith.mulf %212, %222 : vector<8x128xf32>
    %224 = arith.addf %221, %223 : vector<8x128xf32>
    %225 = math.tanh %224 : vector<8x128xf32>
    %cst_116 = arith.constant 1.000000e+00 : f32
    %226 = vector.broadcast %cst_116 : f32 to vector<8x128xf32>
    %227 = arith.subf %226, %220 : vector<8x128xf32>
    %228 = arith.mulf %227, %225 : vector<8x128xf32>
    %229 = arith.mulf %220, %201 : vector<8x128xf32>
    %230 = arith.addf %228, %229 : vector<8x128xf32>
    %231 = vector.broadcast %197 : i32 to vector<8x1xi32>
    %232 = arith.cmpi slt, %231, %111 : vector<8x1xi32>
    %233 = vector.shape_cast %232 : vector<8x1xi1> to vector<8x1xi1>
    %234 = vector.broadcast %233 : vector<8x1xi1> to vector<8x128xi1>
    %235 = arith.select %234, %230, %201 : vector<8x128xi1>, vector<8x128xf32>
    %c0_117 = arith.constant 0 : index
    %c0_118 = arith.constant 0 : index
    %236 = vector.load %arg32[%c0_117, %c0_118] : memref<8x128xf32, #tpu.memory_space<vmem>>, vector<8x128xf32>
    tpu.vector_store %arg32[%c0_117, %c0_118], %235 {strides = array<i32>} : memref<8x128xf32, #tpu.memory_space<vmem>>, vector<8x128xf32>,
    %c3_i32 = arith.constant 3 : i32
    %c8_i32_119 = arith.constant 8 : i32
    %237 = arith.muli %arg1, %c8_i32_119 : i32
    %238 = arith.addi %237, %c3_i32 : i32
    %239 = arith.index_cast %c3_i32 : i32 to index
    %c0_120 = arith.constant 0 : index
    %c0_121 = arith.constant 0 : index
    %240 = vector.load %arg33[%239, %c0_120, %c0_121] : memref<8x8x384xf32, #tpu.memory_space<vmem>>, vector<1x8x384xf32>
    %241 = vector.shape_cast %240 : vector<1x8x384xf32> to vector<8x384xf32>
    %c0_122 = arith.constant 0 : index
    %c0_123 = arith.constant 0 : index
    %242 = vector.load %arg32[%c0_122, %c0_123] : memref<8x128xf32, #tpu.memory_space<vmem>>, vector<8x128xf32>
    %cst_124 = arith.constant dense<0.000000e+00> : vector<8x384xf32>
    %243 = tpu.matmul %242, %112, %cst_124 {dimension_numbers = #tpu.dot_dimension_numbers<[1], [0], [0], [1], [0, 0, 1, 1], [], []>} : vector<8x128xf32>, vector<128x384xf32>, vector<8x384xf32> -> vector<8x384xf32>
    %244 = vector.broadcast %113 : vector<1x384xf32> to vector<8x384xf32>
    %245 = arith.addf %243, %244 : vector<8x384xf32>
    %246 = vector.extract_strided_slice %241 {offsets = [0, 0], sizes = [8, 128], strides = [1, 1]} : vector<8x384xf32> to vector<8x128xf32>
    %247 = vector.extract_strided_slice %245 {offsets = [0, 0], sizes = [8, 128], strides = [1, 1]} : vector<8x384xf32> to vector<8x128xf32>
    %248 = arith.addf %246, %247 : vector<8x128xf32>
    %249 = arith.negf %248 : vector<8x128xf32>
    %250 = math.exp %249 : vector<8x128xf32>
    %cst_125 = arith.constant 1.000000e+00 : f32
    %251 = vector.broadcast %cst_125 : f32 to vector<8x128xf32>
    %252 = arith.addf %251, %250 : vector<8x128xf32>
    %253 = arith.divf %251, %252 : vector<8x128xf32>
    %254 = vector.extract_strided_slice %241 {offsets = [0, 128], sizes = [8, 128], strides = [1, 1]} : vector<8x384xf32> to vector<8x128xf32>
    %255 = vector.extract_strided_slice %245 {offsets = [0, 128], sizes = [8, 128], strides = [1, 1]} : vector<8x384xf32> to vector<8x128xf32>
    %256 = arith.addf %254, %255 : vector<8x128xf32>
    %257 = arith.negf %256 : vector<8x128xf32>
    %258 = math.exp %257 : vector<8x128xf32>
    %cst_126 = arith.constant 1.000000e+00 : f32
    %259 = vector.broadcast %cst_126 : f32 to vector<8x128xf32>
    %260 = arith.addf %259, %258 : vector<8x128xf32>
    %261 = arith.divf %259, %260 : vector<8x128xf32>
    %262 = vector.extract_strided_slice %241 {offsets = [0, 256], sizes = [8, 128], strides = [1, 1]} : vector<8x384xf32> to vector<8x128xf32>
    %263 = vector.extract_strided_slice %245 {offsets = [0, 256], sizes = [8, 128], strides = [1, 1]} : vector<8x384xf32> to vector<8x128xf32>
    %264 = arith.mulf %253, %263 : vector<8x128xf32>
    %265 = arith.addf %262, %264 : vector<8x128xf32>
    %266 = math.tanh %265 : vector<8x128xf32>
    %cst_127 = arith.constant 1.000000e+00 : f32
    %267 = vector.broadcast %cst_127 : f32 to vector<8x128xf32>
    %268 = arith.subf %267, %261 : vector<8x128xf32>
    %269 = arith.mulf %268, %266 : vector<8x128xf32>
    %270 = arith.mulf %261, %242 : vector<8x128xf32>
    %271 = arith.addf %269, %270 : vector<8x128xf32>
    %272 = vector.broadcast %238 : i32 to vector<8x1xi32>
    %273 = arith.cmpi slt, %272, %111 : vector<8x1xi32>
    %274 = vector.shape_cast %273 : vector<8x1xi1> to vector<8x1xi1>
    %275 = vector.broadcast %274 : vector<8x1xi1> to vector<8x128xi1>
    %276 = arith.select %275, %271, %242 : vector<8x128xi1>, vector<8x128xf32>
    %c0_128 = arith.constant 0 : index
    %c0_129 = arith.constant 0 : index
    %277 = vector.load %arg32[%c0_128, %c0_129] : memref<8x128xf32, #tpu.memory_space<vmem>>, vector<8x128xf32>
    tpu.vector_store %arg32[%c0_128, %c0_129], %276 {strides = array<i32>} : memref<8x128xf32, #tpu.memory_space<vmem>>, vector<8x128xf32>,
    %c4_i32 = arith.constant 4 : i32
    %c8_i32_130 = arith.constant 8 : i32
    %278 = arith.muli %arg1, %c8_i32_130 : i32
    %279 = arith.addi %278, %c4_i32 : i32
    %280 = arith.index_cast %c4_i32 : i32 to index
    %c0_131 = arith.constant 0 : index
    %c0_132 = arith.constant 0 : index
    %281 = vector.load %arg33[%280, %c0_131, %c0_132] : memref<8x8x384xf32, #tpu.memory_space<vmem>>, vector<1x8x384xf32>
    %282 = vector.shape_cast %281 : vector<1x8x384xf32> to vector<8x384xf32>
    %c0_133 = arith.constant 0 : index
    %c0_134 = arith.constant 0 : index
    %283 = vector.load %arg32[%c0_133, %c0_134] : memref<8x128xf32, #tpu.memory_space<vmem>>, vector<8x128xf32>
    %cst_135 = arith.constant dense<0.000000e+00> : vector<8x384xf32>
    %284 = tpu.matmul %283, %112, %cst_135 {dimension_numbers = #tpu.dot_dimension_numbers<[1], [0], [0], [1], [0, 0, 1, 1], [], []>} : vector<8x128xf32>, vector<128x384xf32>, vector<8x384xf32> -> vector<8x384xf32>
    %285 = vector.broadcast %113 : vector<1x384xf32> to vector<8x384xf32>
    %286 = arith.addf %284, %285 : vector<8x384xf32>
    %287 = vector.extract_strided_slice %282 {offsets = [0, 0], sizes = [8, 128], strides = [1, 1]} : vector<8x384xf32> to vector<8x128xf32>
    %288 = vector.extract_strided_slice %286 {offsets = [0, 0], sizes = [8, 128], strides = [1, 1]} : vector<8x384xf32> to vector<8x128xf32>
    %289 = arith.addf %287, %288 : vector<8x128xf32>
    %290 = arith.negf %289 : vector<8x128xf32>
    %291 = math.exp %290 : vector<8x128xf32>
    %cst_136 = arith.constant 1.000000e+00 : f32
    %292 = vector.broadcast %cst_136 : f32 to vector<8x128xf32>
    %293 = arith.addf %292, %291 : vector<8x128xf32>
    %294 = arith.divf %292, %293 : vector<8x128xf32>
    %295 = vector.extract_strided_slice %282 {offsets = [0, 128], sizes = [8, 128], strides = [1, 1]} : vector<8x384xf32> to vector<8x128xf32>
    %296 = vector.extract_strided_slice %286 {offsets = [0, 128], sizes = [8, 128], strides = [1, 1]} : vector<8x384xf32> to vector<8x128xf32>
    %297 = arith.addf %295, %296 : vector<8x128xf32>
    %298 = arith.negf %297 : vector<8x128xf32>
    %299 = math.exp %298 : vector<8x128xf32>
    %cst_137 = arith.constant 1.000000e+00 : f32
    %300 = vector.broadcast %cst_137 : f32 to vector<8x128xf32>
    %301 = arith.addf %300, %299 : vector<8x128xf32>
    %302 = arith.divf %300, %301 : vector<8x128xf32>
    %303 = vector.extract_strided_slice %282 {offsets = [0, 256], sizes = [8, 128], strides = [1, 1]} : vector<8x384xf32> to vector<8x128xf32>
    %304 = vector.extract_strided_slice %286 {offsets = [0, 256], sizes = [8, 128], strides = [1, 1]} : vector<8x384xf32> to vector<8x128xf32>
    %305 = arith.mulf %294, %304 : vector<8x128xf32>
    %306 = arith.addf %303, %305 : vector<8x128xf32>
    %307 = math.tanh %306 : vector<8x128xf32>
    %cst_138 = arith.constant 1.000000e+00 : f32
    %308 = vector.broadcast %cst_138 : f32 to vector<8x128xf32>
    %309 = arith.subf %308, %302 : vector<8x128xf32>
    %310 = arith.mulf %309, %307 : vector<8x128xf32>
    %311 = arith.mulf %302, %283 : vector<8x128xf32>
    %312 = arith.addf %310, %311 : vector<8x128xf32>
    %313 = vector.broadcast %279 : i32 to vector<8x1xi32>
    %314 = arith.cmpi slt, %313, %111 : vector<8x1xi32>
    %315 = vector.shape_cast %314 : vector<8x1xi1> to vector<8x1xi1>
    %316 = vector.broadcast %315 : vector<8x1xi1> to vector<8x128xi1>
    %317 = arith.select %316, %312, %283 : vector<8x128xi1>, vector<8x128xf32>
    %c0_139 = arith.constant 0 : index
    %c0_140 = arith.constant 0 : index
    %318 = vector.load %arg32[%c0_139, %c0_140] : memref<8x128xf32, #tpu.memory_space<vmem>>, vector<8x128xf32>
    tpu.vector_store %arg32[%c0_139, %c0_140], %317 {strides = array<i32>} : memref<8x128xf32, #tpu.memory_space<vmem>>, vector<8x128xf32>,
    %c5_i32 = arith.constant 5 : i32
    %c8_i32_141 = arith.constant 8 : i32
    %319 = arith.muli %arg1, %c8_i32_141 : i32
    %320 = arith.addi %319, %c5_i32 : i32
    %321 = arith.index_cast %c5_i32 : i32 to index
    %c0_142 = arith.constant 0 : index
    %c0_143 = arith.constant 0 : index
    %322 = vector.load %arg33[%321, %c0_142, %c0_143] : memref<8x8x384xf32, #tpu.memory_space<vmem>>, vector<1x8x384xf32>
    %323 = vector.shape_cast %322 : vector<1x8x384xf32> to vector<8x384xf32>
    %c0_144 = arith.constant 0 : index
    %c0_145 = arith.constant 0 : index
    %324 = vector.load %arg32[%c0_144, %c0_145] : memref<8x128xf32, #tpu.memory_space<vmem>>, vector<8x128xf32>
    %cst_146 = arith.constant dense<0.000000e+00> : vector<8x384xf32>
    %325 = tpu.matmul %324, %112, %cst_146 {dimension_numbers = #tpu.dot_dimension_numbers<[1], [0], [0], [1], [0, 0, 1, 1], [], []>} : vector<8x128xf32>, vector<128x384xf32>, vector<8x384xf32> -> vector<8x384xf32>
    %326 = vector.broadcast %113 : vector<1x384xf32> to vector<8x384xf32>
    %327 = arith.addf %325, %326 : vector<8x384xf32>
    %328 = vector.extract_strided_slice %323 {offsets = [0, 0], sizes = [8, 128], strides = [1, 1]} : vector<8x384xf32> to vector<8x128xf32>
    %329 = vector.extract_strided_slice %327 {offsets = [0, 0], sizes = [8, 128], strides = [1, 1]} : vector<8x384xf32> to vector<8x128xf32>
    %330 = arith.addf %328, %329 : vector<8x128xf32>
    %331 = arith.negf %330 : vector<8x128xf32>
    %332 = math.exp %331 : vector<8x128xf32>
    %cst_147 = arith.constant 1.000000e+00 : f32
    %333 = vector.broadcast %cst_147 : f32 to vector<8x128xf32>
    %334 = arith.addf %333, %332 : vector<8x128xf32>
    %335 = arith.divf %333, %334 : vector<8x128xf32>
    %336 = vector.extract_strided_slice %323 {offsets = [0, 128], sizes = [8, 128], strides = [1, 1]} : vector<8x384xf32> to vector<8x128xf32>
    %337 = vector.extract_strided_slice %327 {offsets = [0, 128], sizes = [8, 128], strides = [1, 1]} : vector<8x384xf32> to vector<8x128xf32>
    %338 = arith.addf %336, %337 : vector<8x128xf32>
    %339 = arith.negf %338 : vector<8x128xf32>
    %340 = math.exp %339 : vector<8x128xf32>
    %cst_148 = arith.constant 1.000000e+00 : f32
    %341 = vector.broadcast %cst_148 : f32 to vector<8x128xf32>
    %342 = arith.addf %341, %340 : vector<8x128xf32>
    %343 = arith.divf %341, %342 : vector<8x128xf32>
    %344 = vector.extract_strided_slice %323 {offsets = [0, 256], sizes = [8, 128], strides = [1, 1]} : vector<8x384xf32> to vector<8x128xf32>
    %345 = vector.extract_strided_slice %327 {offsets = [0, 256], sizes = [8, 128], strides = [1, 1]} : vector<8x384xf32> to vector<8x128xf32>
    %346 = arith.mulf %335, %345 : vector<8x128xf32>
    %347 = arith.addf %344, %346 : vector<8x128xf32>
    %348 = math.tanh %347 : vector<8x128xf32>
    %cst_149 = arith.constant 1.000000e+00 : f32
    %349 = vector.broadcast %cst_149 : f32 to vector<8x128xf32>
    %350 = arith.subf %349, %343 : vector<8x128xf32>
    %351 = arith.mulf %350, %348 : vector<8x128xf32>
    %352 = arith.mulf %343, %324 : vector<8x128xf32>
    %353 = arith.addf %351, %352 : vector<8x128xf32>
    %354 = vector.broadcast %320 : i32 to vector<8x1xi32>
    %355 = arith.cmpi slt, %354, %111 : vector<8x1xi32>
    %356 = vector.shape_cast %355 : vector<8x1xi1> to vector<8x1xi1>
    %357 = vector.broadcast %356 : vector<8x1xi1> to vector<8x128xi1>
    %358 = arith.select %357, %353, %324 : vector<8x128xi1>, vector<8x128xf32>
    %c0_150 = arith.constant 0 : index
    %c0_151 = arith.constant 0 : index
    %359 = vector.load %arg32[%c0_150, %c0_151] : memref<8x128xf32, #tpu.memory_space<vmem>>, vector<8x128xf32>
    tpu.vector_store %arg32[%c0_150, %c0_151], %358 {strides = array<i32>} : memref<8x128xf32, #tpu.memory_space<vmem>>, vector<8x128xf32>,
    %c6_i32 = arith.constant 6 : i32
    %c8_i32_152 = arith.constant 8 : i32
    %360 = arith.muli %arg1, %c8_i32_152 : i32
    %361 = arith.addi %360, %c6_i32 : i32
    %362 = arith.index_cast %c6_i32 : i32 to index
    %c0_153 = arith.constant 0 : index
    %c0_154 = arith.constant 0 : index
    %363 = vector.load %arg33[%362, %c0_153, %c0_154] : memref<8x8x384xf32, #tpu.memory_space<vmem>>, vector<1x8x384xf32>
    %364 = vector.shape_cast %363 : vector<1x8x384xf32> to vector<8x384xf32>
    %c0_155 = arith.constant 0 : index
    %c0_156 = arith.constant 0 : index
    %365 = vector.load %arg32[%c0_155, %c0_156] : memref<8x128xf32, #tpu.memory_space<vmem>>, vector<8x128xf32>
    %cst_157 = arith.constant dense<0.000000e+00> : vector<8x384xf32>
    %366 = tpu.matmul %365, %112, %cst_157 {dimension_numbers = #tpu.dot_dimension_numbers<[1], [0], [0], [1], [0, 0, 1, 1], [], []>} : vector<8x128xf32>, vector<128x384xf32>, vector<8x384xf32> -> vector<8x384xf32>
    %367 = vector.broadcast %113 : vector<1x384xf32> to vector<8x384xf32>
    %368 = arith.addf %366, %367 : vector<8x384xf32>
    %369 = vector.extract_strided_slice %364 {offsets = [0, 0], sizes = [8, 128], strides = [1, 1]} : vector<8x384xf32> to vector<8x128xf32>
    %370 = vector.extract_strided_slice %368 {offsets = [0, 0], sizes = [8, 128], strides = [1, 1]} : vector<8x384xf32> to vector<8x128xf32>
    %371 = arith.addf %369, %370 : vector<8x128xf32>
    %372 = arith.negf %371 : vector<8x128xf32>
    %373 = math.exp %372 : vector<8x128xf32>
    %cst_158 = arith.constant 1.000000e+00 : f32
    %374 = vector.broadcast %cst_158 : f32 to vector<8x128xf32>
    %375 = arith.addf %374, %373 : vector<8x128xf32>
    %376 = arith.divf %374, %375 : vector<8x128xf32>
    %377 = vector.extract_strided_slice %364 {offsets = [0, 128], sizes = [8, 128], strides = [1, 1]} : vector<8x384xf32> to vector<8x128xf32>
    %378 = vector.extract_strided_slice %368 {offsets = [0, 128], sizes = [8, 128], strides = [1, 1]} : vector<8x384xf32> to vector<8x128xf32>
    %379 = arith.addf %377, %378 : vector<8x128xf32>
    %380 = arith.negf %379 : vector<8x128xf32>
    %381 = math.exp %380 : vector<8x128xf32>
    %cst_159 = arith.constant 1.000000e+00 : f32
    %382 = vector.broadcast %cst_159 : f32 to vector<8x128xf32>
    %383 = arith.addf %382, %381 : vector<8x128xf32>
    %384 = arith.divf %382, %383 : vector<8x128xf32>
    %385 = vector.extract_strided_slice %364 {offsets = [0, 256], sizes = [8, 128], strides = [1, 1]} : vector<8x384xf32> to vector<8x128xf32>
    %386 = vector.extract_strided_slice %368 {offsets = [0, 256], sizes = [8, 128], strides = [1, 1]} : vector<8x384xf32> to vector<8x128xf32>
    %387 = arith.mulf %376, %386 : vector<8x128xf32>
    %388 = arith.addf %385, %387 : vector<8x128xf32>
    %389 = math.tanh %388 : vector<8x128xf32>
    %cst_160 = arith.constant 1.000000e+00 : f32
    %390 = vector.broadcast %cst_160 : f32 to vector<8x128xf32>
    %391 = arith.subf %390, %384 : vector<8x128xf32>
    %392 = arith.mulf %391, %389 : vector<8x128xf32>
    %393 = arith.mulf %384, %365 : vector<8x128xf32>
    %394 = arith.addf %392, %393 : vector<8x128xf32>
    %395 = vector.broadcast %361 : i32 to vector<8x1xi32>
    %396 = arith.cmpi slt, %395, %111 : vector<8x1xi32>
    %397 = vector.shape_cast %396 : vector<8x1xi1> to vector<8x1xi1>
    %398 = vector.broadcast %397 : vector<8x1xi1> to vector<8x128xi1>
    %399 = arith.select %398, %394, %365 : vector<8x128xi1>, vector<8x128xf32>
    %c0_161 = arith.constant 0 : index
    %c0_162 = arith.constant 0 : index
    %400 = vector.load %arg32[%c0_161, %c0_162] : memref<8x128xf32, #tpu.memory_space<vmem>>, vector<8x128xf32>
    tpu.vector_store %arg32[%c0_161, %c0_162], %399 {strides = array<i32>} : memref<8x128xf32, #tpu.memory_space<vmem>>, vector<8x128xf32>,
    %c7_i32 = arith.constant 7 : i32
    %c8_i32_163 = arith.constant 8 : i32
    %401 = arith.muli %arg1, %c8_i32_163 : i32
    %402 = arith.addi %401, %c7_i32 : i32
    %403 = arith.index_cast %c7_i32 : i32 to index
    %c0_164 = arith.constant 0 : index
    %c0_165 = arith.constant 0 : index
    %404 = vector.load %arg33[%403, %c0_164, %c0_165] : memref<8x8x384xf32, #tpu.memory_space<vmem>>, vector<1x8x384xf32>
    %405 = vector.shape_cast %404 : vector<1x8x384xf32> to vector<8x384xf32>
    %c0_166 = arith.constant 0 : index
    %c0_167 = arith.constant 0 : index
    %406 = vector.load %arg32[%c0_166, %c0_167] : memref<8x128xf32, #tpu.memory_space<vmem>>, vector<8x128xf32>
    %cst_168 = arith.constant dense<0.000000e+00> : vector<8x384xf32>
    %407 = tpu.matmul %406, %112, %cst_168 {dimension_numbers = #tpu.dot_dimension_numbers<[1], [0], [0], [1], [0, 0, 1, 1], [], []>} : vector<8x128xf32>, vector<128x384xf32>, vector<8x384xf32> -> vector<8x384xf32>
    %408 = vector.broadcast %113 : vector<1x384xf32> to vector<8x384xf32>
    %409 = arith.addf %407, %408 : vector<8x384xf32>
    %410 = vector.extract_strided_slice %405 {offsets = [0, 0], sizes = [8, 128], strides = [1, 1]} : vector<8x384xf32> to vector<8x128xf32>
    %411 = vector.extract_strided_slice %409 {offsets = [0, 0], sizes = [8, 128], strides = [1, 1]} : vector<8x384xf32> to vector<8x128xf32>
    %412 = arith.addf %410, %411 : vector<8x128xf32>
    %413 = arith.negf %412 : vector<8x128xf32>
    %414 = math.exp %413 : vector<8x128xf32>
    %cst_169 = arith.constant 1.000000e+00 : f32
    %415 = vector.broadcast %cst_169 : f32 to vector<8x128xf32>
    %416 = arith.addf %415, %414 : vector<8x128xf32>
    %417 = arith.divf %415, %416 : vector<8x128xf32>
    %418 = vector.extract_strided_slice %405 {offsets = [0, 128], sizes = [8, 128], strides = [1, 1]} : vector<8x384xf32> to vector<8x128xf32>
    %419 = vector.extract_strided_slice %409 {offsets = [0, 128], sizes = [8, 128], strides = [1, 1]} : vector<8x384xf32> to vector<8x128xf32>
    %420 = arith.addf %418, %419 : vector<8x128xf32>
    %421 = arith.negf %420 : vector<8x128xf32>
    %422 = math.exp %421 : vector<8x128xf32>
    %cst_170 = arith.constant 1.000000e+00 : f32
    %423 = vector.broadcast %cst_170 : f32 to vector<8x128xf32>
    %424 = arith.addf %423, %422 : vector<8x128xf32>
    %425 = arith.divf %423, %424 : vector<8x128xf32>
    %426 = vector.extract_strided_slice %405 {offsets = [0, 256], sizes = [8, 128], strides = [1, 1]} : vector<8x384xf32> to vector<8x128xf32>
    %427 = vector.extract_strided_slice %409 {offsets = [0, 256], sizes = [8, 128], strides = [1, 1]} : vector<8x384xf32> to vector<8x128xf32>
    %428 = arith.mulf %417, %427 : vector<8x128xf32>
    %429 = arith.addf %426, %428 : vector<8x128xf32>
    %430 = math.tanh %429 : vector<8x128xf32>
    %cst_171 = arith.constant 1.000000e+00 : f32
    %431 = vector.broadcast %cst_171 : f32 to vector<8x128xf32>
    %432 = arith.subf %431, %425 : vector<8x128xf32>
    %433 = arith.mulf %432, %430 : vector<8x128xf32>
    %434 = arith.mulf %425, %406 : vector<8x128xf32>
    %435 = arith.addf %433, %434 : vector<8x128xf32>
    %436 = vector.broadcast %402 : i32 to vector<8x1xi32>
    %437 = arith.cmpi slt, %436, %111 : vector<8x1xi32>
    %438 = vector.shape_cast %437 : vector<8x1xi1> to vector<8x1xi1>
    %439 = vector.broadcast %438 : vector<8x1xi1> to vector<8x128xi1>
    %440 = arith.select %439, %435, %406 : vector<8x128xi1>, vector<8x128xf32>
    %c0_172 = arith.constant 0 : index
    %c0_173 = arith.constant 0 : index
    %441 = vector.load %arg32[%c0_172, %c0_173] : memref<8x128xf32, #tpu.memory_space<vmem>>, vector<8x128xf32>
    tpu.vector_store %arg32[%c0_172, %c0_173], %440 {strides = array<i32>} : memref<8x128xf32, #tpu.memory_space<vmem>>, vector<8x128xf32>,
    %c8_i32_174 = arith.constant 8 : i32
    %c0_i32_175 = arith.constant 0 : i32
    %442 = arith.cmpi eq, %arg1, %c0_i32_175 : i32
    %443 = arith.extui %442 : i1 to i32
    %c0_i32_176 = arith.constant 0 : i32
    %444 = arith.cmpi ne, %443, %c0_i32_176 : i32
    scf.if %444 {
      %c0_177 = arith.constant 0 : index
      %c0_178 = arith.constant 0 : index
      %445 = vector.load %arg32[%c0_177, %c0_178] : memref<8x128xf32, #tpu.memory_space<vmem>>, vector<8x128xf32>
      %446 = arith.mulf %445, %445 : vector<8x128xf32>
      %cst_179 = arith.constant dense<0.000000e+00> : vector<8xf32>
      %447 = vector.multi_reduction <add>, %446, %cst_179 [1] : vector<8x128xf32> to vector<8xf32>
      %448 = vector.shape_cast %447 : vector<8xf32> to vector<8x1xf32>
      %cst_180 = arith.constant 9.99999971E-10 : f32
      %449 = vector.broadcast %cst_180 : f32 to vector<8x1xf32>
      %450 = arith.addf %448, %449 : vector<8x1xf32>
      %451 = math.rsqrt %450 : vector<8x1xf32>
      %452 = vector.broadcast %451 : vector<8x1xf32> to vector<8x128xf32>
      %453 = arith.mulf %445, %452 : vector<8x128xf32>
      %c0_181 = arith.constant 0 : index
      %c0_182 = arith.constant 0 : index
      %454 = vector.load %arg31[%c0_181, %c0_182] : memref<8x128xf32, #tpu.memory_space<vmem>>, vector<8x128xf32>
      tpu.vector_store %arg31[%c0_181, %c0_182], %453 {strides = array<i32>} : memref<8x128xf32, #tpu.memory_space<vmem>>, vector<8x128xf32>,
    } else {
    }
    return
  }
  func.func @transform_0(%arg0: i32, %arg1: i32) -> (i32, i32) {
    %c1_i32 = arith.constant 1 : i32
    %0 = arith.muli %arg0, %c1_i32 : i32
    %1 = arith.addi %0, %arg1 : i32
    %c0_i32 = arith.constant 0 : i32
    %c0_i32_0 = arith.constant 0 : i32
    return %1, %c0_i32 : i32, i32
  }
  func.func @transform_1(%arg0: i32, %arg1: i32) -> (i32, i32) {
    %c0_i32 = arith.constant 0 : i32
    %c0_i32_0 = arith.constant 0 : i32
    return %arg0, %c0_i32 : i32, i32
  }
  func.func @transform_2(%arg0: i32, %arg1: i32) -> (i32, i32) {
    %c0_i32 = arith.constant 0 : i32
    %c0_i32_0 = arith.constant 0 : i32
    %c0_i32_1 = arith.constant 0 : i32
    return %c0_i32, %c0_i32_0 : i32, i32
  }
  func.func @transform_3(%arg0: i32, %arg1: i32) -> (i32, i32) {
    %c0_i32 = arith.constant 0 : i32
    %c0_i32_0 = arith.constant 0 : i32
    %c0_i32_1 = arith.constant 0 : i32
    return %c0_i32, %c0_i32_0 : i32, i32
  }
  func.func @transform_4(%arg0: i32, %arg1: i32) -> (i32, i32) {
    %c0_i32 = arith.constant 0 : i32
    %c0_i32_0 = arith.constant 0 : i32
    %c0_i32_1 = arith.constant 0 : i32
    return %c0_i32, %c0_i32_0 : i32, i32
  }
  func.func @transform_5(%arg0: i32, %arg1: i32) -> (i32, i32) {
    %c0_i32 = arith.constant 0 : i32
    %c0_i32_0 = arith.constant 0 : i32
    %c0_i32_1 = arith.constant 0 : i32
    return %c0_i32, %c0_i32_0 : i32, i32
  }
  func.func @transform_6(%arg0: i32, %arg1: i32) -> (i32, i32) {
    %c0_i32 = arith.constant 0 : i32
    %c0_i32_0 = arith.constant 0 : i32
    %c0_i32_1 = arith.constant 0 : i32
    return %c0_i32, %c0_i32_0 : i32, i32
  }
  func.func @transform_7(%arg0: i32, %arg1: i32) -> (i32, i32) {
    %c0_i32 = arith.constant 0 : i32
    %c0_i32_0 = arith.constant 0 : i32
    %c0_i32_1 = arith.constant 0 : i32
    return %c0_i32, %c0_i32_0 : i32, i32
  }
  func.func @transform_8(%arg0: i32, %arg1: i32) -> (i32, i32) {
    %c0_i32 = arith.constant 0 : i32
    %c0_i32_0 = arith.constant 0 : i32
    %c0_i32_1 = arith.constant 0 : i32
    return %c0_i32, %c0_i32_0 : i32, i32
  }
  func.func @transform_9(%arg0: i32, %arg1: i32) -> (i32, i32) {
    %c0_i32 = arith.constant 0 : i32
    %c0_i32_0 = arith.constant 0 : i32
    %c0_i32_1 = arith.constant 0 : i32
    return %c0_i32, %c0_i32_0 : i32, i32
  }
  func.func @transform_10(%arg0: i32, %arg1: i32) -> (i32, i32) {
    %c0_i32 = arith.constant 0 : i32
    %c0_i32_0 = arith.constant 0 : i32
    %c0_i32_1 = arith.constant 0 : i32
    return %c0_i32, %c0_i32_0 : i32, i32
  }
  func.func @transform_11(%arg0: i32, %arg1: i32) -> (i32, i32) {
    %c0_i32 = arith.constant 0 : i32
    %c0_i32_0 = arith.constant 0 : i32
    %c0_i32_1 = arith.constant 0 : i32
    return %c0_i32, %c0_i32_0 : i32, i32
  }
  func.func @transform_12(%arg0: i32, %arg1: i32) -> (i32, i32) {
    %c0_i32 = arith.constant 0 : i32
    %c0_i32_0 = arith.constant 0 : i32
    %c0_i32_1 = arith.constant 0 : i32
    return %c0_i32, %c0_i32_0 : i32, i32
  }
  func.func @transform_13(%arg0: i32, %arg1: i32) -> (i32, i32) {
    %c0_i32 = arith.constant 0 : i32
    %c0_i32_0 = arith.constant 0 : i32
    %c0_i32_1 = arith.constant 0 : i32
    return %c0_i32, %c0_i32_0 : i32, i32
  }
  func.func @transform_14(%arg0: i32, %arg1: i32) -> (i32, i32) {
    %c0_i32 = arith.constant 0 : i32
    %c0_i32_0 = arith.constant 0 : i32
    %c0_i32_1 = arith.constant 0 : i32
    return %c0_i32, %c0_i32_0 : i32, i32
  }
  func.func @transform_15(%arg0: i32, %arg1: i32) -> (i32, i32) {
    %c0_i32 = arith.constant 0 : i32
    %c0_i32_0 = arith.constant 0 : i32
    %c0_i32_1 = arith.constant 0 : i32
    return %c0_i32, %c0_i32_0 : i32, i32
  }
  func.func @transform_16(%arg0: i32, %arg1: i32) -> (i32, i32) {
    %c0_i32 = arith.constant 0 : i32
    %c0_i32_0 = arith.constant 0 : i32
    %c0_i32_1 = arith.constant 0 : i32
    return %c0_i32, %c0_i32_0 : i32, i32
  }
  func.func @transform_17(%arg0: i32, %arg1: i32) -> (i32, i32) {
    %c0_i32 = arith.constant 0 : i32
    %c0_i32_0 = arith.constant 0 : i32
    %c0_i32_1 = arith.constant 0 : i32
    return %c0_i32, %c0_i32_0 : i32, i32
  }
  func.func @transform_18(%arg0: i32, %arg1: i32) -> (i32, i32) {
    %c0_i32 = arith.constant 0 : i32
    %c0_i32_0 = arith.constant 0 : i32
    %c0_i32_1 = arith.constant 0 : i32
    return %c0_i32, %c0_i32_0 : i32, i32
  }
  func.func @transform_19(%arg0: i32, %arg1: i32) -> (i32, i32) {
    %c0_i32 = arith.constant 0 : i32
    %c0_i32_0 = arith.constant 0 : i32
    %c0_i32_1 = arith.constant 0 : i32
    return %c0_i32, %c0_i32_0 : i32, i32
  }
  func.func @transform_20(%arg0: i32, %arg1: i32) -> (i32, i32) {
    %c0_i32 = arith.constant 0 : i32
    %c0_i32_0 = arith.constant 0 : i32
    %c0_i32_1 = arith.constant 0 : i32
    return %c0_i32, %c0_i32_0 : i32, i32
  }
  func.func @transform_21(%arg0: i32, %arg1: i32) -> (i32, i32) {
    %c0_i32 = arith.constant 0 : i32
    %c0_i32_0 = arith.constant 0 : i32
    %c0_i32_1 = arith.constant 0 : i32
    return %c0_i32, %c0_i32_0 : i32, i32
  }
  func.func @transform_22(%arg0: i32, %arg1: i32) -> (i32, i32) {
    %c0_i32 = arith.constant 0 : i32
    %c0_i32_0 = arith.constant 0 : i32
    %c0_i32_1 = arith.constant 0 : i32
    return %c0_i32, %c0_i32_0 : i32, i32
  }
  func.func @transform_23(%arg0: i32, %arg1: i32) -> (i32, i32) {
    %c0_i32 = arith.constant 0 : i32
    %c0_i32_0 = arith.constant 0 : i32
    %c0_i32_1 = arith.constant 0 : i32
    return %c0_i32, %c0_i32_0 : i32, i32
  }
  func.func @transform_24(%arg0: i32, %arg1: i32) -> (i32, i32) {
    %c0_i32 = arith.constant 0 : i32
    %c0_i32_0 = arith.constant 0 : i32
    %c0_i32_1 = arith.constant 0 : i32
    return %c0_i32, %c0_i32_0 : i32, i32
  }
  func.func @transform_25(%arg0: i32, %arg1: i32) -> (i32, i32) {
    %c0_i32 = arith.constant 0 : i32
    %c0_i32_0 = arith.constant 0 : i32
    %c0_i32_1 = arith.constant 0 : i32
    return %c0_i32, %c0_i32_0 : i32, i32
  }
  func.func @transform_26(%arg0: i32, %arg1: i32) -> (i32, i32) {
    %c0_i32 = arith.constant 0 : i32
    %c0_i32_0 = arith.constant 0 : i32
    %c0_i32_1 = arith.constant 0 : i32
    return %c0_i32, %c0_i32_0 : i32, i32
  }
  func.func @transform_27(%arg0: i32, %arg1: i32) -> (i32, i32) {
    %c0_i32 = arith.constant 0 : i32
    %c0_i32_0 = arith.constant 0 : i32
    %c0_i32_1 = arith.constant 0 : i32
    return %c0_i32, %c0_i32_0 : i32, i32
  }
  func.func @transform_28(%arg0: i32, %arg1: i32) -> (i32, i32) {
    %c0_i32 = arith.constant 0 : i32
    %c0_i32_0 = arith.constant 0 : i32
    %c0_i32_1 = arith.constant 0 : i32
    return %c0_i32, %c0_i32_0 : i32, i32
  }
  func.func @transform_29(%arg0: i32, %arg1: i32) -> (i32, i32) {
    %c0_i32 = arith.constant 0 : i32
    %c0_i32_0 = arith.constant 0 : i32
    return %arg0, %c0_i32 : i32, i32
  }
}

</mosaic_0001>

<llo_original>
// kernel: tabformer_inference.1
$region0: #{tabformer_inference.1}
  #allocation0 [shape = 'u32[]', space=smem, size = 0x4, offset = 0x4, fixed_abs, tag = 'smem constant byte address 0x4 - core index']
  #allocation1 [shape = 'u32[144,128]{1,0:T(1,128)}', space=vmem, size = 0x12000, scoped, tag = 'internal scratch']
  #allocation2 [shape = 'f32[8,128]{1,0:T(8,128)}', space=vmem, size = 0x1000, scoped, tag = 'scratch operand']
  #allocation3 [shape = 'f32[8,8,384]{2,1,0:T(8,128)}', space=vmem, size = 0x18000, scoped, tag = 'scratch operand']
  %s0 = inlined_call_operand.smem [shape: u32[30], index: -1, kind: input, shape index: {}]
  %s1 = sld [smem:[%s0]]
  %s2 = scalar_lea.smem %s0, 1
  %s3 = sld [smem:[%s2]]
  %s4 = scalar_lea.smem %s0, 2
  %s5 = sld [smem:[%s4]]
  %s6 = scalar_lea.smem %s0, 3
  %s7 = sld [smem:[%s6]]
  %s8 = scalar_lea.smem %s0, 4
  %s9 = sld [smem:[%s8]]
  %s10 = scalar_lea.smem %s0, 5
  %s11 = sld [smem:[%s10]]
  %s12 = scalar_lea.smem %s0, 6
  %s13 = sld [smem:[%s12]]
  %s14 = scalar_lea.smem %s0, 7
  %s15 = sld [smem:[%s14]]
  %s16 = scalar_lea.smem %s0, 8
  %s17 = sld [smem:[%s16]]
  %s18 = scalar_lea.smem %s0, 9
  %s19 = sld [smem:[%s18]]
  %s20 = scalar_lea.smem %s0, 10
  %s21 = sld [smem:[%s20]]
  %s22 = scalar_lea.smem %s0, 11
  %s23 = sld [smem:[%s22]]
  %s24 = scalar_lea.smem %s0, 12
  %s25 = sld [smem:[%s24]]
  %s26 = scalar_lea.smem %s0, 13
  %s27 = sld [smem:[%s26]]
  %s28 = scalar_lea.smem %s0, 14
  %s29 = sld [smem:[%s28]]
  %s30 = scalar_lea.smem %s0, 15
  %s31 = sld [smem:[%s30]]
  %s32 = scalar_lea.smem %s0, 16
  %s33 = sld [smem:[%s32]]
  %s34 = scalar_lea.smem %s0, 17
  %s35 = sld [smem:[%s34]]
  %s36 = scalar_lea.smem %s0, 18
  %s37 = sld [smem:[%s36]]
  %s38 = scalar_lea.smem %s0, 19
  %s39 = sld [smem:[%s38]]
  %s40 = scalar_lea.smem %s0, 20
  %s41 = sld [smem:[%s40]]
  %s42 = scalar_lea.smem %s0, 21
  %s43 = sld [smem:[%s42]]
  %s44 = scalar_lea.smem %s0, 22
  %s45 = sld [smem:[%s44]]
  %s46 = scalar_lea.smem %s0, 23
  %s47 = sld [smem:[%s46]]
  %s48 = scalar_lea.smem %s0, 24
  %s49 = sld [smem:[%s48]]
  %s50 = scalar_lea.smem %s0, 25
  %s51 = sld [smem:[%s50]]
  %s52 = scalar_lea.smem %s0, 26
  %s53 = sld [smem:[%s52]]
  %s54 = scalar_lea.smem %s0, 27
  %s55 = sld [smem:[%s54]]
  %s56 = scalar_lea.smem %s0, 28
  %s57 = sld [smem:[%s56]]
  %s58 = scalar_lea.smem %s0, 29
  %s59 = sld [smem:[%s58]]
  %s60 = sld [smem:[#allocation0]]
  $region157: #{tabformer_inference.1} parent=0
    _
  %s62 = ssub.s32 1, %s60
  %s63 = scalar_select 0, %s62, %s60
  $region1: #{tabformer_inference.1} parent=0
    #allocation4 [shape = 'u8[8192]{0}', space=vmem, size = 0x2000, scoped, tag = 'output window, operand 0']
    #allocation5 [shape = 's32[2]{0}', space=sflag, size = 0x8, scoped, tag = 'scoped memory for tabformer_inference.1']
    %64 = vsyncpa [#allocation5], 0
    %s65 = scalar_lea.sflag [#allocation5], 1
    %66 = vsyncpa %s65, 0
    loop: start=0, step=1, limit=4
    $region2: #{tabformer_inference.1} parent=1 // loop_pre_header
      _
    $region3: #{tabformer_inference.1} parent=1 // loop_header
      %s68 = sphi 0, %s72
      %p69 = scmp.ge.s32.totalorder %s68, 4
      %s75 = sphi 0, %s87
      %s76 = sphi 0, %s83
      %s77 = sphi 0, %s75
      %s78 = sphi 0, %s76
      %s79 = sphi 0, %s77
      %s80 = sphi 0, %s78
      %s92 = sphi 0, %s94
      %s95 = sphi 0, %s92
      %s96 = sphi 0, %s95
      %s112 = sphi 0, %s96
      %s118 = sphi 0, %s120
      %s121 = sphi 0, %s118
      %s122 = sphi 0, %s121
      %s138 = sphi 0, %s122
      %s142 = sphi 0, %s142
      %s144 = sphi 0, %s142
      %s145 = sphi 0, %s144
      %s159 = sphi 0, %s145
      %s163 = sphi 0, %s163
      %s165 = sphi 0, %s163
      %s166 = sphi 0, %s165
      %s180 = sphi 0, %s166
      %s184 = sphi 0, %s184
      %s186 = sphi 0, %s184
      %s187 = sphi 0, %s186
      %s201 = sphi 0, %s187
      %s205 = sphi 0, %s205
      %s207 = sphi 0, %s205
      %s208 = sphi 0, %s207
      %s222 = sphi 0, %s208
      %s226 = sphi 0, %s226
      %s228 = sphi 0, %s226
      %s229 = sphi 0, %s228
      %s243 = sphi 0, %s229
      %s247 = sphi 0, %s247
      %s249 = sphi 0, %s247
      %s250 = sphi 0, %s249
      %s264 = sphi 0, %s250
      %s268 = sphi 0, %s268
      %s270 = sphi 0, %s268
      %s271 = sphi 0, %s270
      %s285 = sphi 0, %s271
      %s289 = sphi 0, %s289
      %s291 = sphi 0, %s289
      %s292 = sphi 0, %s291
      %s306 = sphi 0, %s292
      %s310 = sphi 0, %s310
      %s312 = sphi 0, %s310
      %s313 = sphi 0, %s312
      %s327 = sphi 0, %s313
      %s331 = sphi 0, %s331
      %s333 = sphi 0, %s331
      %s334 = sphi 0, %s333
      %s348 = sphi 0, %s334
      %s352 = sphi 0, %s352
      %s354 = sphi 0, %s352
      %s355 = sphi 0, %s354
      %s369 = sphi 0, %s355
      %s373 = sphi 0, %s373
      %s375 = sphi 0, %s373
      %s376 = sphi 0, %s375
      %s390 = sphi 0, %s376
      %s394 = sphi 0, %s394
      %s396 = sphi 0, %s394
      %s397 = sphi 0, %s396
      %s411 = sphi 0, %s397
      %s415 = sphi 0, %s415
      %s417 = sphi 0, %s415
      %s418 = sphi 0, %s417
      %s432 = sphi 0, %s418
      %s436 = sphi 0, %s436
      %s438 = sphi 0, %s436
      %s439 = sphi 0, %s438
      %s453 = sphi 0, %s439
      %s457 = sphi 0, %s457
      %s459 = sphi 0, %s457
      %s460 = sphi 0, %s459
      %s474 = sphi 0, %s460
      %s478 = sphi 0, %s478
      %s480 = sphi 0, %s478
      %s481 = sphi 0, %s480
      %s495 = sphi 0, %s481
      %s499 = sphi 0, %s499
      %s501 = sphi 0, %s499
      %s502 = sphi 0, %s501
      %s516 = sphi 0, %s502
      %s520 = sphi 0, %s520
      %s522 = sphi 0, %s520
      %s523 = sphi 0, %s522
      %s537 = sphi 0, %s523
      %s541 = sphi 0, %s541
      %s543 = sphi 0, %s541
      %s544 = sphi 0, %s543
      %s558 = sphi 0, %s544
      %s562 = sphi 0, %s562
      %s564 = sphi 0, %s562
      %s565 = sphi 0, %s564
      %s579 = sphi 0, %s565
      %s583 = sphi 0, %s583
      %s585 = sphi 0, %s583
      %s586 = sphi 0, %s585
      %s600 = sphi 0, %s586
      %s604 = sphi 0, %s604
      %s606 = sphi 0, %s604
      %s607 = sphi 0, %s606
      %s621 = sphi 0, %s607
      %s625 = sphi 0, %s625
      %s627 = sphi 0, %s625
      %s628 = sphi 0, %s627
      %s642 = sphi 0, %s628
      %s646 = sphi 0, %s646
      %s648 = sphi 0, %s646
      %s649 = sphi 0, %s648
      %s663 = sphi 0, %s649
      %s667 = sphi 0, %s667
      %s669 = sphi 0, %s667
      %s670 = sphi 0, %s669
      %s684 = sphi 0, %s670
      %s688 = sphi 0, %s688
      %s690 = sphi 0, %s688
      %s691 = sphi 0, %s690
      %s705 = sphi 0, %s691
      %s711 = sphi 0, %s713
      %s714 = sphi 0, %s711
      %s715 = sphi 0, %s714
      %s731 = sphi 0, %s715
    $region4: #{tabformer_inference.1} parent=1 // loop_header_branch
      %71 = sbr.rel (%p69) target = $region8
    $region5: #{tabformer_inference.1} parent=1 // loop_body
      %s73 = ssub.s32 %s68, 1
      %s74 = ssub.s32 %s68, 2
      %s81 = sadd.s32 1, %s76
      %p82 = scmp.ge.s32.totalorder %s81, 1
      %s83 = scalar_select %p82, 0, %s81
      %s84 = sadd.s32 1, %s75
      %s85 = scalar_select %p82, %s84, %s75
      %p86 = scmp.ge.s32.totalorder %s85, 2
      %s87 = scalar_select %p86, 0, %s85
      %s88 = sadd.s32 %s75, %s76
      %s89 = sadd.s32 %s87, %s83
      %s90 = ssub.s32 %s88, %s89
      %p91 = scmp.eq.s32.totalorder %s90, 0
      %s93 = sadd.s32 %s92, 1
      %s94 = scalar_select %p91, %s92, %s93
      %p97 = pneg %p91
      %p98 = scmp.eq.s32.totalorder %s68, 1
      %p99 = por %p97, %p98
      %p100 = scmp.ne.s32.totalorder %s92, %s95
      %p101 = scmp.eq.s32.totalorder %s68, 0
      %p102 = por %p100, %p101
      %p103 = scmp.ne.s32.totalorder %s92, %s95
      %p104 = scmp.eq.s32.totalorder %s73, 1
      %p105 = por %p103, %p104
      %p106 = scmp.ne.s32.totalorder %s95, %s96
      %p107 = scmp.eq.s32.totalorder %s73, 0
      %p108 = por %p106, %p107
      %p109 = scmp.ne.s32.totalorder %s95, %s96
      %p110 = scmp.eq.s32.totalorder %s74, 1
      %p111 = por %p109, %p110
      %p113 = scmp.ne.s32.totalorder %s96, %s112
      %p114 = scmp.eq.s32.totalorder %s74, 0
      %p115 = por %p113, %p114
      %s116 = ssub.s32 %s75, %s87
      %p117 = scmp.eq.s32.totalorder %s116, 0
      %s119 = sadd.s32 %s118, 1
      %s120 = scalar_select %p117, %s118, %s119
      %p123 = pneg %p117
      %p124 = scmp.eq.s32.totalorder %s68, 1
      %p125 = por %p123, %p124
      %p126 = scmp.ne.s32.totalorder %s118, %s121
      %p127 = scmp.eq.s32.totalorder %s68, 0
      %p128 = por %p126, %p127
      %p129 = scmp.ne.s32.totalorder %s118, %s121
      %p130 = scmp.eq.s32.totalorder %s73, 1
      %p131 = por %p129, %p130
      %p132 = scmp.ne.s32.totalorder %s121, %s122
      %p133 = scmp.eq.s32.totalorder %s73, 0
      %p134 = por %p132, %p133
      %p135 = scmp.ne.s32.totalorder %s121, %s122
      %p136 = scmp.eq.s32.totalorder %s74, 1
      %p137 = por %p135, %p136
      %p139 = scmp.ne.s32.totalorder %s122, %s138
      %p140 = scmp.eq.s32.totalorder %s74, 0
      %p141 = por %p139, %p140
      %s143 = sadd.s32 %s142, 1
      %p146 = scmp.eq.s32.totalorder %s68, 1
      %p147 = scmp.ne.s32.totalorder %s142, %s144
      %p148 = scmp.eq.s32.totalorder %s68, 0
      %p149 = por %p147, %p148
      %p150 = scmp.ne.s32.totalorder %s142, %s144
      %p151 = scmp.eq.s32.totalorder %s73, 1
      %p152 = por %p150, %p151
      %p153 = scmp.ne.s32.totalorder %s144, %s145
      %p154 = scmp.eq.s32.totalorder %s73, 0
      %p155 = por %p153, %p154
      %p156 = scmp.ne.s32.totalorder %s144, %s145
      %p157 = scmp.eq.s32.totalorder %s74, 1
      %p158 = por %p156, %p157
      %p160 = scmp.ne.s32.totalorder %s145, %s159
      %p161 = scmp.eq.s32.totalorder %s74, 0
      %p162 = por %p160, %p161
      %s164 = sadd.s32 %s163, 1
      %p167 = scmp.eq.s32.totalorder %s68, 1
      %p168 = scmp.ne.s32.totalorder %s163, %s165
      %p169 = scmp.eq.s32.totalorder %s68, 0
      %p170 = por %p168, %p169
      %p171 = scmp.ne.s32.totalorder %s163, %s165
      %p172 = scmp.eq.s32.totalorder %s73, 1
      %p173 = por %p171, %p172
      %p174 = scmp.ne.s32.totalorder %s165, %s166
      %p175 = scmp.eq.s32.totalorder %s73, 0
      %p176 = por %p174, %p175
      %p177 = scmp.ne.s32.totalorder %s165, %s166
      %p178 = scmp.eq.s32.totalorder %s74, 1
      %p179 = por %p177, %p178
      %p181 = scmp.ne.s32.totalorder %s166, %s180
      %p182 = scmp.eq.s32.totalorder %s74, 0
      %p183 = por %p181, %p182
      %s185 = sadd.s32 %s184, 1
      %p188 = scmp.eq.s32.totalorder %s68, 1
      %p189 = scmp.ne.s32.totalorder %s184, %s186
      %p190 = scmp.eq.s32.totalorder %s68, 0
      %p191 = por %p189, %p190
      %p192 = scmp.ne.s32.totalorder %s184, %s186
      %p193 = scmp.eq.s32.totalorder %s73, 1
      %p194 = por %p192, %p193
      %p195 = scmp.ne.s32.totalorder %s186, %s187
      %p196 = scmp.eq.s32.totalorder %s73, 0
      %p197 = por %p195, %p196
      %p198 = scmp.ne.s32.totalorder %s186, %s187
      %p199 = scmp.eq.s32.totalorder %s74, 1
      %p200 = por %p198, %p199
      %p202 = scmp.ne.s32.totalorder %s187, %s201
      %p203 = scmp.eq.s32.totalorder %s74, 0
      %p204 = por %p202, %p203
      %s206 = sadd.s32 %s205, 1
      %p209 = scmp.eq.s32.totalorder %s68, 1
      %p210 = scmp.ne.s32.totalorder %s205, %s207
      %p211 = scmp.eq.s32.totalorder %s68, 0
      %p212 = por %p210, %p211
      %p213 = scmp.ne.s32.totalorder %s205, %s207
      %p214 = scmp.eq.s32.totalorder %s73, 1
      %p215 = por %p213, %p214
      %p216 = scmp.ne.s32.totalorder %s207, %s208
      %p217 = scmp.eq.s32.totalorder %s73, 0
      %p218 = por %p216, %p217
      %p219 = scmp.ne.s32.totalorder %s207, %s208
      %p220 = scmp.eq.s32.totalorder %s74, 1
      %p221 = por %p219, %p220
      %p223 = scmp.ne.s32.totalorder %s208, %s222
      %p224 = scmp.eq.s32.totalorder %s74, 0
      %p225 = por %p223, %p224
      %s227 = sadd.s32 %s226, 1
      %p230 = scmp.eq.s32.totalorder %s68, 1
      %p231 = scmp.ne.s32.totalorder %s226, %s228
      %p232 = scmp.eq.s32.totalorder %s68, 0
      %p233 = por %p231, %p232
      %p234 = scmp.ne.s32.totalorder %s226, %s228
      %p235 = scmp.eq.s32.totalorder %s73, 1
      %p236 = por %p234, %p235
      %p237 = scmp.ne.s32.totalorder %s228, %s229
      %p238 = scmp.eq.s32.totalorder %s73, 0
      %p239 = por %p237, %p238
      %p240 = scmp.ne.s32.totalorder %s228, %s229
      %p241 = scmp.eq.s32.totalorder %s74, 1
      %p242 = por %p240, %p241
      %p244 = scmp.ne.s32.totalorder %s229, %s243
      %p245 = scmp.eq.s32.totalorder %s74, 0
      %p246 = por %p244, %p245
      %s248 = sadd.s32 %s247, 1
      %p251 = scmp.eq.s32.totalorder %s68, 1
      %p252 = scmp.ne.s32.totalorder %s247, %s249
      %p253 = scmp.eq.s32.totalorder %s68, 0
      %p254 = por %p252, %p253
      %p255 = scmp.ne.s32.totalorder %s247, %s249
      %p256 = scmp.eq.s32.totalorder %s73, 1
      %p257 = por %p255, %p256
      %p258 = scmp.ne.s32.totalorder %s249, %s250
      %p259 = scmp.eq.s32.totalorder %s73, 0
      %p260 = por %p258, %p259
      %p261 = scmp.ne.s32.totalorder %s249, %s250
      %p262 = scmp.eq.s32.totalorder %s74, 1
      %p263 = por %p261, %p262
      %p265 = scmp.ne.s32.totalorder %s250, %s264
      %p266 = scmp.eq.s32.totalorder %s74, 0
      %p267 = por %p265, %p266
      %s269 = sadd.s32 %s268, 1
      %p272 = scmp.eq.s32.totalorder %s68, 1
      %p273 = scmp.ne.s32.totalorder %s268, %s270
      %p274 = scmp.eq.s32.totalorder %s68, 0
      %p275 = por %p273, %p274
      %p276 = scmp.ne.s32.totalorder %s268, %s270
      %p277 = scmp.eq.s32.totalorder %s73, 1
      %p278 = por %p276, %p277
      %p279 = scmp.ne.s32.totalorder %s270, %s271
      %p280 = scmp.eq.s32.totalorder %s73, 0
      %p281 = por %p279, %p280
      %p282 = scmp.ne.s32.totalorder %s270, %s271
      %p283 = scmp.eq.s32.totalorder %s74, 1
      %p284 = por %p282, %p283
      %p286 = scmp.ne.s32.totalorder %s271, %s285
      %p287 = scmp.eq.s32.totalorder %s74, 0
      %p288 = por %p286, %p287
      %s290 = sadd.s32 %s289, 1
      %p293 = scmp.eq.s32.totalorder %s68, 1
      %p294 = scmp.ne.s32.totalorder %s289, %s291
      %p295 = scmp.eq.s32.totalorder %s68, 0
      %p296 = por %p294, %p295
      %p297 = scmp.ne.s32.totalorder %s289, %s291
      %p298 = scmp.eq.s32.totalorder %s73, 1
      %p299 = por %p297, %p298
      %p300 = scmp.ne.s32.totalorder %s291, %s292
      %p301 = scmp.eq.s32.totalorder %s73, 0
      %p302 = por %p300, %p301
      %p303 = scmp.ne.s32.totalorder %s291, %s292
      %p304 = scmp.eq.s32.totalorder %s74, 1
      %p305 = por %p303, %p304
      %p307 = scmp.ne.s32.totalorder %s292, %s306
      %p308 = scmp.eq.s32.totalorder %s74, 0
      %p309 = por %p307, %p308
      %s311 = sadd.s32 %s310, 1
      %p314 = scmp.eq.s32.totalorder %s68, 1
      %p315 = scmp.ne.s32.totalorder %s310, %s312
      %p316 = scmp.eq.s32.totalorder %s68, 0
      %p317 = por %p315, %p316
      %p318 = scmp.ne.s32.totalorder %s310, %s312
      %p319 = scmp.eq.s32.totalorder %s73, 1
      %p320 = por %p318, %p319
      %p321 = scmp.ne.s32.totalorder %s312, %s313
      %p322 = scmp.eq.s32.totalorder %s73, 0
      %p323 = por %p321, %p322
      %p324 = scmp.ne.s32.totalorder %s312, %s313
      %p325 = scmp.eq.s32.totalorder %s74, 1
      %p326 = por %p324, %p325
      %p328 = scmp.ne.s32.totalorder %s313, %s327
      %p329 = scmp.eq.s32.totalorder %s74, 0
      %p330 = por %p328, %p329
      %s332 = sadd.s32 %s331, 1
      %p335 = scmp.eq.s32.totalorder %s68, 1
      %p336 = scmp.ne.s32.totalorder %s331, %s333
      %p337 = scmp.eq.s32.totalorder %s68, 0
      %p338 = por %p336, %p337
      %p339 = scmp.ne.s32.totalorder %s331, %s333
      %p340 = scmp.eq.s32.totalorder %s73, 1
      %p341 = por %p339, %p340
      %p342 = scmp.ne.s32.totalorder %s333, %s334
      %p343 = scmp.eq.s32.totalorder %s73, 0
      %p344 = por %p342, %p343
      %p345 = scmp.ne.s32.totalorder %s333, %s334
      %p346 = scmp.eq.s32.totalorder %s74, 1
      %p347 = por %p345, %p346
      %p349 = scmp.ne.s32.totalorder %s334, %s348
      %p350 = scmp.eq.s32.totalorder %s74, 0
      %p351 = por %p349, %p350
      %s353 = sadd.s32 %s352, 1
      %p356 = scmp.eq.s32.totalorder %s68, 1
      %p357 = scmp.ne.s32.totalorder %s352, %s354
      %p358 = scmp.eq.s32.totalorder %s68, 0
      %p359 = por %p357, %p358
      %p360 = scmp.ne.s32.totalorder %s352, %s354
      %p361 = scmp.eq.s32.totalorder %s73, 1
      %p362 = por %p360, %p361
      %p363 = scmp.ne.s32.totalorder %s354, %s355
      %p364 = scmp.eq.s32.totalorder %s73, 0
      %p365 = por %p363, %p364
      %p366 = scmp.ne.s32.totalorder %s354, %s355
      %p367 = scmp.eq.s32.totalorder %s74, 1
      %p368 = por %p366, %p367
      %p370 = scmp.ne.s32.totalorder %s355, %s369
      %p371 = scmp.eq.s32.totalorder %s74, 0
      %p372 = por %p370, %p371
      %s374 = sadd.s32 %s373, 1
      %p377 = scmp.eq.s32.totalorder %s68, 1
      %p378 = scmp.ne.s32.totalorder %s373, %s375
      %p379 = scmp.eq.s32.totalorder %s68, 0
      %p380 = por %p378, %p379
      %p381 = scmp.ne.s32.totalorder %s373, %s375
      %p382 = scmp.eq.s32.totalorder %s73, 1
      %p383 = por %p381, %p382
      %p384 = scmp.ne.s32.totalorder %s375, %s376
      %p385 = scmp.eq.s32.totalorder %s73, 0
      %p386 = por %p384, %p385
      %p387 = scmp.ne.s32.totalorder %s375, %s376
      %p388 = scmp.eq.s32.totalorder %s74, 1
      %p389 = por %p387, %p388
      %p391 = scmp.ne.s32.totalorder %s376, %s390
      %p392 = scmp.eq.s32.totalorder %s74, 0
      %p393 = por %p391, %p392
      %s395 = sadd.s32 %s394, 1
      %p398 = scmp.eq.s32.totalorder %s68, 1
      %p399 = scmp.ne.s32.totalorder %s394, %s396
      %p400 = scmp.eq.s32.totalorder %s68, 0
      %p401 = por %p399, %p400
      %p402 = scmp.ne.s32.totalorder %s394, %s396
      %p403 = scmp.eq.s32.totalorder %s73, 1
      %p404 = por %p402, %p403
      %p405 = scmp.ne.s32.totalorder %s396, %s397
      %p406 = scmp.eq.s32.totalorder %s73, 0
      %p407 = por %p405, %p406
      %p408 = scmp.ne.s32.totalorder %s396, %s397
      %p409 = scmp.eq.s32.totalorder %s74, 1
      %p410 = por %p408, %p409
      %p412 = scmp.ne.s32.totalorder %s397, %s411
      %p413 = scmp.eq.s32.totalorder %s74, 0
      %p414 = por %p412, %p413
      %s416 = sadd.s32 %s415, 1
      %p419 = scmp.eq.s32.totalorder %s68, 1
      %p420 = scmp.ne.s32.totalorder %s415, %s417
      %p421 = scmp.eq.s32.totalorder %s68, 0
      %p422 = por %p420, %p421
      %p423 = scmp.ne.s32.totalorder %s415, %s417
      %p424 = scmp.eq.s32.totalorder %s73, 1
      %p425 = por %p423, %p424
      %p426 = scmp.ne.s32.totalorder %s417, %s418
      %p427 = scmp.eq.s32.totalorder %s73, 0
      %p428 = por %p426, %p427
      %p429 = scmp.ne.s32.totalorder %s417, %s418
      %p430 = scmp.eq.s32.totalorder %s74, 1
      %p431 = por %p429, %p430
      %p433 = scmp.ne.s32.totalorder %s418, %s432
      %p434 = scmp.eq.s32.totalorder %s74, 0
      %p435 = por %p433, %p434
      %s437 = sadd.s32 %s436, 1
      %p440 = scmp.eq.s32.totalorder %s68, 1
      %p441 = scmp.ne.s32.totalorder %s436, %s438
      %p442 = scmp.eq.s32.totalorder %s68, 0
      %p443 = por %p441, %p442
      %p444 = scmp.ne.s32.totalorder %s436, %s438
      %p445 = scmp.eq.s32.totalorder %s73, 1
      %p446 = por %p444, %p445
      %p447 = scmp.ne.s32.totalorder %s438, %s439
      %p448 = scmp.eq.s32.totalorder %s73, 0
      %p449 = por %p447, %p448
      %p450 = scmp.ne.s32.totalorder %s438, %s439
      %p451 = scmp.eq.s32.totalorder %s74, 1
      %p452 = por %p450, %p451
      %p454 = scmp.ne.s32.totalorder %s439, %s453
      %p455 = scmp.eq.s32.totalorder %s74, 0
      %p456 = por %p454, %p455
      %s458 = sadd.s32 %s457, 1
      %p461 = scmp.eq.s32.totalorder %s68, 1
      %p462 = scmp.ne.s32.totalorder %s457, %s459
      %p463 = scmp.eq.s32.totalorder %s68, 0
      %p464 = por %p462, %p463
      %p465 = scmp.ne.s32.totalorder %s457, %s459
      %p466 = scmp.eq.s32.totalorder %s73, 1
      %p467 = por %p465, %p466
      %p468 = scmp.ne.s32.totalorder %s459, %s460
      %p469 = scmp.eq.s32.totalorder %s73, 0
      %p470 = por %p468, %p469
      %p471 = scmp.ne.s32.totalorder %s459, %s460
      %p472 = scmp.eq.s32.totalorder %s74, 1
      %p473 = por %p471, %p472
      %p475 = scmp.ne.s32.totalorder %s460, %s474
      %p476 = scmp.eq.s32.totalorder %s74, 0
      %p477 = por %p475, %p476
      %s479 = sadd.s32 %s478, 1
      %p482 = scmp.eq.s32.totalorder %s68, 1
      %p483 = scmp.ne.s32.totalorder %s478, %s480
      %p484 = scmp.eq.s32.totalorder %s68, 0
      %p485 = por %p483, %p484
      %p486 = scmp.ne.s32.totalorder %s478, %s480
      %p487 = scmp.eq.s32.totalorder %s73, 1
      %p488 = por %p486, %p487
      %p489 = scmp.ne.s32.totalorder %s480, %s481
      %p490 = scmp.eq.s32.totalorder %s73, 0
      %p491 = por %p489, %p490
      %p492 = scmp.ne.s32.totalorder %s480, %s481
      %p493 = scmp.eq.s32.totalorder %s74, 1
      %p494 = por %p492, %p493
      %p496 = scmp.ne.s32.totalorder %s481, %s495
      %p497 = scmp.eq.s32.totalorder %s74, 0
      %p498 = por %p496, %p497
      %s500 = sadd.s32 %s499, 1
      %p503 = scmp.eq.s32.totalorder %s68, 1
      %p504 = scmp.ne.s32.totalorder %s499, %s501
      %p505 = scmp.eq.s32.totalorder %s68, 0
      %p506 = por %p504, %p505
      %p507 = scmp.ne.s32.totalorder %s499, %s501
      %p508 = scmp.eq.s32.totalorder %s73, 1
      %p509 = por %p507, %p508
      %p510 = scmp.ne.s32.totalorder %s501, %s502
      %p511 = scmp.eq.s32.totalorder %s73, 0
      %p512 = por %p510, %p511
      %p513 = scmp.ne.s32.totalorder %s501, %s502
      %p514 = scmp.eq.s32.totalorder %s74, 1
      %p515 = por %p513, %p514
      %p517 = scmp.ne.s32.totalorder %s502, %s516
      %p518 = scmp.eq.s32.totalorder %s74, 0
      %p519 = por %p517, %p518
      %s521 = sadd.s32 %s520, 1
      %p524 = scmp.eq.s32.totalorder %s68, 1
      %p525 = scmp.ne.s32.totalorder %s520, %s522
      %p526 = scmp.eq.s32.totalorder %s68, 0
      %p527 = por %p525, %p526
      %p528 = scmp.ne.s32.totalorder %s520, %s522
      %p529 = scmp.eq.s32.totalorder %s73, 1
      %p530 = por %p528, %p529
      %p531 = scmp.ne.s32.totalorder %s522, %s523
      %p532 = scmp.eq.s32.totalorder %s73, 0
      %p533 = por %p531, %p532
      %p534 = scmp.ne.s32.totalorder %s522, %s523
      %p535 = scmp.eq.s32.totalorder %s74, 1
      %p536 = por %p534, %p535
      %p538 = scmp.ne.s32.totalorder %s523, %s537
      %p539 = scmp.eq.s32.totalorder %s74, 0
      %p540 = por %p538, %p539
      %s542 = sadd.s32 %s541, 1
      %p545 = scmp.eq.s32.totalorder %s68, 1
      %p546 = scmp.ne.s32.totalorder %s541, %s543
      %p547 = scmp.eq.s32.totalorder %s68, 0
      %p548 = por %p546, %p547
      %p549 = scmp.ne.s32.totalorder %s541, %s543
      %p550 = scmp.eq.s32.totalorder %s73, 1
      %p551 = por %p549, %p550
      %p552 = scmp.ne.s32.totalorder %s543, %s544
      %p553 = scmp.eq.s32.totalorder %s73, 0
      %p554 = por %p552, %p553
      %p555 = scmp.ne.s32.totalorder %s543, %s544
      %p556 = scmp.eq.s32.totalorder %s74, 1
      %p557 = por %p555, %p556
      %p559 = scmp.ne.s32.totalorder %s544, %s558
      %p560 = scmp.eq.s32.totalorder %s74, 0
      %p561 = por %p559, %p560
      %s563 = sadd.s32 %s562, 1
      %p566 = scmp.eq.s32.totalorder %s68, 1
      %p567 = scmp.ne.s32.totalorder %s562, %s564
      %p568 = scmp.eq.s32.totalorder %s68, 0
      %p569 = por %p567, %p568
      %p570 = scmp.ne.s32.totalorder %s562, %s564
      %p571 = scmp.eq.s32.totalorder %s73, 1
      %p572 = por %p570, %p571
      %p573 = scmp.ne.s32.totalorder %s564, %s565
      %p574 = scmp.eq.s32.totalorder %s73, 0
      %p575 = por %p573, %p574
      %p576 = scmp.ne.s32.totalorder %s564, %s565
      %p577 = scmp.eq.s32.totalorder %s74, 1
      %p578 = por %p576, %p577
      %p580 = scmp.ne.s32.totalorder %s565, %s579
      %p581 = scmp.eq.s32.totalorder %s74, 0
      %p582 = por %p580, %p581
      %s584 = sadd.s32 %s583, 1
      %p587 = scmp.eq.s32.totalorder %s68, 1
      %p588 = scmp.ne.s32.totalorder %s583, %s585
      %p589 = scmp.eq.s32.totalorder %s68, 0
      %p590 = por %p588, %p589
      %p591 = scmp.ne.s32.totalorder %s583, %s585
      %p592 = scmp.eq.s32.totalorder %s73, 1
      %p593 = por %p591, %p592
      %p594 = scmp.ne.s32.totalorder %s585, %s586
      %p595 = scmp.eq.s32.totalorder %s73, 0
      %p596 = por %p594, %p595
      %p597 = scmp.ne.s32.totalorder %s585, %s586
      %p598 = scmp.eq.s32.totalorder %s74, 1
      %p599 = por %p597, %p598
      %p601 = scmp.ne.s32.totalorder %s586, %s600
      %p602 = scmp.eq.s32.totalorder %s74, 0
      %p603 = por %p601, %p602
      %s605 = sadd.s32 %s604, 1
      %p608 = scmp.eq.s32.totalorder %s68, 1
      %p609 = scmp.ne.s32.totalorder %s604, %s606
      %p610 = scmp.eq.s32.totalorder %s68, 0
      %p611 = por %p609, %p610
      %p612 = scmp.ne.s32.totalorder %s604, %s606
      %p613 = scmp.eq.s32.totalorder %s73, 1
      %p614 = por %p612, %p613
      %p615 = scmp.ne.s32.totalorder %s606, %s607
      %p616 = scmp.eq.s32.totalorder %s73, 0
      %p617 = por %p615, %p616
      %p618 = scmp.ne.s32.totalorder %s606, %s607
      %p619 = scmp.eq.s32.totalorder %s74, 1
      %p620 = por %p618, %p619
      %p622 = scmp.ne.s32.totalorder %s607, %s621
      %p623 = scmp.eq.s32.totalorder %s74, 0
      %p624 = por %p622, %p623
      %s626 = sadd.s32 %s625, 1
      %p629 = scmp.eq.s32.totalorder %s68, 1
      %p630 = scmp.ne.s32.totalorder %s625, %s627
      %p631 = scmp.eq.s32.totalorder %s68, 0
      %p632 = por %p630, %p631
      %p633 = scmp.ne.s32.totalorder %s625, %s627
      %p634 = scmp.eq.s32.totalorder %s73, 1
      %p635 = por %p633, %p634
      %p636 = scmp.ne.s32.totalorder %s627, %s628
      %p637 = scmp.eq.s32.totalorder %s73, 0
      %p638 = por %p636, %p637
      %p639 = scmp.ne.s32.totalorder %s627, %s628
      %p640 = scmp.eq.s32.totalorder %s74, 1
      %p641 = por %p639, %p640
      %p643 = scmp.ne.s32.totalorder %s628, %s642
      %p644 = scmp.eq.s32.totalorder %s74, 0
      %p645 = por %p643, %p644
      %s647 = sadd.s32 %s646, 1
      %p650 = scmp.eq.s32.totalorder %s68, 1
      %p651 = scmp.ne.s32.totalorder %s646, %s648
      %p652 = scmp.eq.s32.totalorder %s68, 0
      %p653 = por %p651, %p652
      %p654 = scmp.ne.s32.totalorder %s646, %s648
      %p655 = scmp.eq.s32.totalorder %s73, 1
      %p656 = por %p654, %p655
      %p657 = scmp.ne.s32.totalorder %s648, %s649
      %p658 = scmp.eq.s32.totalorder %s73, 0
      %p659 = por %p657, %p658
      %p660 = scmp.ne.s32.totalorder %s648, %s649
      %p661 = scmp.eq.s32.totalorder %s74, 1
      %p662 = por %p660, %p661
      %p664 = scmp.ne.s32.totalorder %s649, %s663
      %p665 = scmp.eq.s32.totalorder %s74, 0
      %p666 = por %p664, %p665
      %s668 = sadd.s32 %s667, 1
      %p671 = scmp.eq.s32.totalorder %s68, 1
      %p672 = scmp.ne.s32.totalorder %s667, %s669
      %p673 = scmp.eq.s32.totalorder %s68, 0
      %p674 = por %p672, %p673
      %p675 = scmp.ne.s32.totalorder %s667, %s669
      %p676 = scmp.eq.s32.totalorder %s73, 1
      %p677 = por %p675, %p676
      %p678 = scmp.ne.s32.totalorder %s669, %s670
      %p679 = scmp.eq.s32.totalorder %s73, 0
      %p680 = por %p678, %p679
      %p681 = scmp.ne.s32.totalorder %s669, %s670
      %p682 = scmp.eq.s32.totalorder %s74, 1
      %p683 = por %p681, %p682
      %p685 = scmp.ne.s32.totalorder %s670, %s684
      %p686 = scmp.eq.s32.totalorder %s74, 0
      %p687 = por %p685, %p686
      %s689 = sadd.s32 %s688, 1
      %p692 = scmp.eq.s32.totalorder %s68, 1
      %p693 = scmp.ne.s32.totalorder %s688, %s690
      %p694 = scmp.eq.s32.totalorder %s68, 0
      %p695 = por %p693, %p694
      %p696 = scmp.ne.s32.totalorder %s688, %s690
      %p697 = scmp.eq.s32.totalorder %s73, 1
      %p698 = por %p696, %p697
      %p699 = scmp.ne.s32.totalorder %s690, %s691
      %p700 = scmp.eq.s32.totalorder %s73, 0
      %p701 = por %p699, %p700
      %p702 = scmp.ne.s32.totalorder %s690, %s691
      %p703 = scmp.eq.s32.totalorder %s74, 1
      %p704 = por %p702, %p703
      %p706 = scmp.ne.s32.totalorder %s691, %s705
      %p707 = scmp.eq.s32.totalorder %s74, 0
      %p708 = por %p706, %p707
      %s709 = ssub.s32 %s75, %s87
      %p710 = scmp.eq.s32.totalorder %s709, 0
      %s712 = sadd.s32 %s711, 1
      %s713 = scalar_select %p710, %s711, %s712
      %p716 = pneg %p710
      %p717 = scmp.eq.s32.totalorder %s68, 1
      %p718 = por %p716, %p717
      %p719 = scmp.ne.s32.totalorder %s711, %s714
      %p720 = scmp.eq.s32.totalorder %s68, 0
      %p721 = por %p719, %p720
      %p722 = scmp.ne.s32.totalorder %s711, %s714
      %p723 = scmp.eq.s32.totalorder %s73, 1
      %p724 = por %p722, %p723
      %p725 = scmp.ne.s32.totalorder %s714, %s715
      %p726 = scmp.eq.s32.totalorder %s73, 0
      %p727 = por %p725, %p726
      %p728 = scmp.ne.s32.totalorder %s714, %s715
      %p729 = scmp.eq.s32.totalorder %s74, 1
      %p730 = por %p728, %p729
      %p732 = scmp.ne.s32.totalorder %s715, %s731
      %p733 = scmp.eq.s32.totalorder %s74, 0
      %p734 = por %p732, %p733
      %p735 = scmp.le.s32.totalorder 1, %s68
      %p736 = scmp.lt.s32.totalorder %s68, 3
      %p737 = pnand %p735, %p736
      %p738 = pneg %p737
      // Predicated region
      $region9: #{tabformer_inference.1} parent=5 // pred_check
        _
      $region10: #{tabformer_inference.1} parent=5 // pred_check_branch
        %740 = sbr.rel (%p737) target = $region12
      $region11: #{tabformer_inference.1} parent=5 // pred_region
        %s741 = ssub.s32 %s68, 1
        // Predicated region
        $region13: #{tabformer_inference.1} parent=11 // pred_check
          %p742 = pneg %p155
        $region14: #{tabformer_inference.1} parent=11 // pred_check_branch
          %744 = sbr.rel (%p742) target = $region16
        $region15: #{tabformer_inference.1} parent=11 // pred_region
          _
        $region16: #{tabformer_inference.1} parent=11 // pred_fallthru
          _
        // Predicated region
        $region17: #{tabformer_inference.1} parent=11 // pred_check
          %p745 = pneg %p176
        $region18: #{tabformer_inference.1} parent=11 // pred_check_branch
          %747 = sbr.rel (%p745) target = $region20
        $region19: #{tabformer_inference.1} parent=11 // pred_region
          _
        $region20: #{tabformer_inference.1} parent=11 // pred_fallthru
          _
        // Predicated region
        $region21: #{tabformer_inference.1} parent=11 // pred_check
          %p748 = pneg %p197
        $region22: #{tabformer_inference.1} parent=11 // pred_check_branch
          %750 = sbr.rel (%p748) target = $region24
        $region23: #{tabformer_inference.1} parent=11 // pred_region
          _
        $region24: #{tabformer_inference.1} parent=11 // pred_fallthru
          _
        // Predicated region
        $region25: #{tabformer_inference.1} parent=11 // pred_check
          %p751 = pneg %p218
        $region26: #{tabformer_inference.1} parent=11 // pred_check_branch
          %753 = sbr.rel (%p751) target = $region28
        $region27: #{tabformer_inference.1} parent=11 // pred_region
          _
        $region28: #{tabformer_inference.1} parent=11 // pred_fallthru
          _
        // Predicated region
        $region29: #{tabformer_inference.1} parent=11 // pred_check
          %p754 = pneg %p239
        $region30: #{tabformer_inference.1} parent=11 // pred_check_branch
          %756 = sbr.rel (%p754) target = $region32
        $region31: #{tabformer_inference.1} parent=11 // pred_region
          _
        $region32: #{tabformer_inference.1} parent=11 // pred_fallthru
          _
        // Predicated region
        $region33: #{tabformer_inference.1} parent=11 // pred_check
          %p757 = pneg %p260
        $region34: #{tabformer_inference.1} parent=11 // pred_check_branch
          %759 = sbr.rel (%p757) target = $region36
        $region35: #{tabformer_inference.1} parent=11 // pred_region
          _
        $region36: #{tabformer_inference.1} parent=11 // pred_fallthru
          _
        // Predicated region
        $region37: #{tabformer_inference.1} parent=11 // pred_check
          %p760 = pneg %p281
        $region38: #{tabformer_inference.1} parent=11 // pred_check_branch
          %762 = sbr.rel (%p760) target = $region40
        $region39: #{tabformer_inference.1} parent=11 // pred_region
          _
        $region40: #{tabformer_inference.1} parent=11 // pred_fallthru
          _
        // Predicated region
        $region41: #{tabformer_inference.1} parent=11 // pred_check
          %p763 = pneg %p302
        $region42: #{tabformer_inference.1} parent=11 // pred_check_branch
          %765 = sbr.rel (%p763) target = $region44
        $region43: #{tabformer_inference.1} parent=11 // pred_region
          _
        $region44: #{tabformer_inference.1} parent=11 // pred_fallthru
          _
        // Predicated region
        $region45: #{tabformer_inference.1} parent=11 // pred_check
          %p766 = pneg %p323
        $region46: #{tabformer_inference.1} parent=11 // pred_check_branch
          %768 = sbr.rel (%p766) target = $region48
        $region47: #{tabformer_inference.1} parent=11 // pred_region
          _
        $region48: #{tabformer_inference.1} parent=11 // pred_fallthru
          _
        // Predicated region
        $region49: #{tabformer_inference.1} parent=11 // pred_check
          %p769 = pneg %p344
        $region50: #{tabformer_inference.1} parent=11 // pred_check_branch
          %771 = sbr.rel (%p769) target = $region52
        $region51: #{tabformer_inference.1} parent=11 // pred_region
          _
        $region52: #{tabformer_inference.1} parent=11 // pred_fallthru
          _
        // Predicated region
        $region53: #{tabformer_inference.1} parent=11 // pred_check
          %p772 = pneg %p365
        $region54: #{tabformer_inference.1} parent=11 // pred_check_branch
          %774 = sbr.rel (%p772) target = $region56
        $region55: #{tabformer_inference.1} parent=11 // pred_region
          _
        $region56: #{tabformer_inference.1} parent=11 // pred_fallthru
          _
        // Predicated region
        $region57: #{tabformer_inference.1} parent=11 // pred_check
          %p775 = pneg %p386
        $region58: #{tabformer_inference.1} parent=11 // pred_check_branch
          %777 = sbr.rel (%p775) target = $region60
        $region59: #{tabformer_inference.1} parent=11 // pred_region
          _
        $region60: #{tabformer_inference.1} parent=11 // pred_fallthru
          _
        // Predicated region
        $region61: #{tabformer_inference.1} parent=11 // pred_check
          %p778 = pneg %p407
        $region62: #{tabformer_inference.1} parent=11 // pred_check_branch
          %780 = sbr.rel (%p778) target = $region64
        $region63: #{tabformer_inference.1} parent=11 // pred_region
          _
        $region64: #{tabformer_inference.1} parent=11 // pred_fallthru
          _
        // Predicated region
        $region65: #{tabformer_inference.1} parent=11 // pred_check
          %p781 = pneg %p428
        $region66: #{tabformer_inference.1} parent=11 // pred_check_branch
          %783 = sbr.rel (%p781) target = $region68
        $region67: #{tabformer_inference.1} parent=11 // pred_region
          _
        $region68: #{tabformer_inference.1} parent=11 // pred_fallthru
          _
        // Predicated region
        $region69: #{tabformer_inference.1} parent=11 // pred_check
          %p784 = pneg %p449
        $region70: #{tabformer_inference.1} parent=11 // pred_check_branch
          %786 = sbr.rel (%p784) target = $region72
        $region71: #{tabformer_inference.1} parent=11 // pred_region
          _
        $region72: #{tabformer_inference.1} parent=11 // pred_fallthru
          _
        // Predicated region
        $region73: #{tabformer_inference.1} parent=11 // pred_check
          %p787 = pneg %p470
        $region74: #{tabformer_inference.1} parent=11 // pred_check_branch
          %789 = sbr.rel (%p787) target = $region76
        $region75: #{tabformer_inference.1} parent=11 // pred_region
          _
        $region76: #{tabformer_inference.1} parent=11 // pred_fallthru
          _
        // Predicated region
        $region77: #{tabformer_inference.1} parent=11 // pred_check
          %p790 = pneg %p491
        $region78: #{tabformer_inference.1} parent=11 // pred_check_branch
          %792 = sbr.rel (%p790) target = $region80
        $region79: #{tabformer_inference.1} parent=11 // pred_region
          _
        $region80: #{tabformer_inference.1} parent=11 // pred_fallthru
          _
        // Predicated region
        $region81: #{tabformer_inference.1} parent=11 // pred_check
          %p793 = pneg %p512
        $region82: #{tabformer_inference.1} parent=11 // pred_check_branch
          %795 = sbr.rel (%p793) target = $region84
        $region83: #{tabformer_inference.1} parent=11 // pred_region
          _
        $region84: #{tabformer_inference.1} parent=11 // pred_fallthru
          _
        // Predicated region
        $region85: #{tabformer_inference.1} parent=11 // pred_check
          %p796 = pneg %p533
        $region86: #{tabformer_inference.1} parent=11 // pred_check_branch
          %798 = sbr.rel (%p796) target = $region88
        $region87: #{tabformer_inference.1} parent=11 // pred_region
          _
        $region88: #{tabformer_inference.1} parent=11 // pred_fallthru
          _
        // Predicated region
        $region89: #{tabformer_inference.1} parent=11 // pred_check
          %p799 = pneg %p554
        $region90: #{tabformer_inference.1} parent=11 // pred_check_branch
          %801 = sbr.rel (%p799) target = $region92
        $region91: #{tabformer_inference.1} parent=11 // pred_region
          _
        $region92: #{tabformer_inference.1} parent=11 // pred_fallthru
          _
        // Predicated region
        $region93: #{tabformer_inference.1} parent=11 // pred_check
          %p802 = pneg %p575
        $region94: #{tabformer_inference.1} parent=11 // pred_check_branch
          %804 = sbr.rel (%p802) target = $region96
        $region95: #{tabformer_inference.1} parent=11 // pred_region
          _
        $region96: #{tabformer_inference.1} parent=11 // pred_fallthru
          _
        // Predicated region
        $region97: #{tabformer_inference.1} parent=11 // pred_check
          %p805 = pneg %p596
        $region98: #{tabformer_inference.1} parent=11 // pred_check_branch
          %807 = sbr.rel (%p805) target = $region100
        $region99: #{tabformer_inference.1} parent=11 // pred_region
          _
        $region100: #{tabformer_inference.1} parent=11 // pred_fallthru
          _
        // Predicated region
        $region101: #{tabformer_inference.1} parent=11 // pred_check
          %p808 = pneg %p617
        $region102: #{tabformer_inference.1} parent=11 // pred_check_branch
          %810 = sbr.rel (%p808) target = $region104
        $region103: #{tabformer_inference.1} parent=11 // pred_region
          _
        $region104: #{tabformer_inference.1} parent=11 // pred_fallthru
          _
        // Predicated region
        $region105: #{tabformer_inference.1} parent=11 // pred_check
          %p811 = pneg %p638
        $region106: #{tabformer_inference.1} parent=11 // pred_check_branch
          %813 = sbr.rel (%p811) target = $region108
        $region107: #{tabformer_inference.1} parent=11 // pred_region
          _
        $region108: #{tabformer_inference.1} parent=11 // pred_fallthru
          _
        // Predicated region
        $region109: #{tabformer_inference.1} parent=11 // pred_check
          %p814 = pneg %p659
        $region110: #{tabformer_inference.1} parent=11 // pred_check_branch
          %816 = sbr.rel (%p814) target = $region112
        $region111: #{tabformer_inference.1} parent=11 // pred_region
          _
        $region112: #{tabformer_inference.1} parent=11 // pred_fallthru
          _
        // Predicated region
        $region113: #{tabformer_inference.1} parent=11 // pred_check
          %p817 = pneg %p680
        $region114: #{tabformer_inference.1} parent=11 // pred_check_branch
          %819 = sbr.rel (%p817) target = $region116
        $region115: #{tabformer_inference.1} parent=11 // pred_region
          _
        $region116: #{tabformer_inference.1} parent=11 // pred_fallthru
          _
        // Predicated region
        $region117: #{tabformer_inference.1} parent=11 // pred_check
          %p820 = pneg %p701
        $region118: #{tabformer_inference.1} parent=11 // pred_check_branch
          %822 = sbr.rel (%p820) target = $region120
        $region119: #{tabformer_inference.1} parent=11 // pred_region
          _
        $region120: #{tabformer_inference.1} parent=11 // pred_fallthru
          _
      $region12: #{tabformer_inference.1} parent=5 // pred_fallthru
        _
      %p823 = scmp.lt.s32.totalorder %s68, 2
      // Predicated region
      $region121: #{tabformer_inference.1} parent=5 // pred_check
        %p824 = pneg %p823
      $region122: #{tabformer_inference.1} parent=5 // pred_check_branch
        %826 = sbr.rel (%p824) target = $region124
      $region123: #{tabformer_inference.1} parent=5 // pred_region
        // Predicated region
        $region125: #{tabformer_inference.1} parent=123 // pred_check
          %p827 = pneg %p102
        $region126: #{tabformer_inference.1} parent=123 // pred_check_branch
          %829 = sbr.rel (%p827) target = $region128
        $region127: #{tabformer_inference.1} parent=123 // pred_region
          %s830 = sadd.s32 %s75, %s76
          %s831 = smul.u32 8, %s830
          %p832 = scmp.lt.s32.totalorder %s831, 15
          %s833 = scalar_select %p832, %s831, 15
          %s834 = smul.addr %s833, 8
          %s835 = scalar_lea.vmem %s1, %s834
          %s836 = sadd.s32 %s75, %s76
          %s837 = smul.u32 8, %s836
        $region128: #{tabformer_inference.1} parent=123 // pred_fallthru
          _
        // Predicated region
        $region129: #{tabformer_inference.1} parent=123 // pred_check
          %p838 = pneg %p128
        $region130: #{tabformer_inference.1} parent=123 // pred_check_branch
          %840 = sbr.rel (%p838) target = $region132
        $region131: #{tabformer_inference.1} parent=123 // pred_region
          %p841 = scmp.lt.s32.totalorder %s75, 1
          %s842 = scalar_select %p841, %s75, 1
          %s843 = smul.addr %s842, 8
          %s844 = scalar_lea.vmem %s3, %s843
        $region132: #{tabformer_inference.1} parent=123 // pred_fallthru
          _
      $region124: #{tabformer_inference.1} parent=5 // pred_fallthru
        _
      %p845 = scmp.le.s32.totalorder 1, %s68
      %p846 = scmp.lt.s32.totalorder %s68, 3
      %p847 = pnand %p845, %p846
      %p848 = pneg %p847
      // Predicated region
      $region133: #{tabformer_inference.1} parent=5 // pred_check
        _
      $region134: #{tabformer_inference.1} parent=5 // pred_check_branch
        %850 = sbr.rel (%p847) target = $region136
      $region135: #{tabformer_inference.1} parent=5 // pred_region
        %s851 = ssub.s32 %s68, 1
        %s852 = sadd.s32 %s77, %s78
        %s853 = smul.u32 8, %s852
        %p854 = scmp.lt.s32.totalorder %s853, 15
        %s855 = scalar_select %p854, %s853, 15
        %s856 = smul.addr %s855, 8
        %s857 = scalar_lea.vmem %s1, %s856
        %p858 = pneg %p108
        %p859 = pneg %p105
        %p860 = scmp.lt.s32.totalorder %s77, 1
        %s861 = scalar_select %p860, %s77, 1
        %s862 = smul.addr %s861, 8
        %s863 = scalar_lea.vmem %s3, %s862
        %p864 = pneg %p134
        %p865 = pneg %p131
        %p866 = pneg %p155
        %p867 = pneg %p152
        %p868 = pneg %p176
        %p869 = pneg %p173
        %p870 = pneg %p197
        %p871 = pneg %p194
        %p872 = pneg %p218
        %p873 = pneg %p215
        %p874 = pneg %p239
        %p875 = pneg %p236
        %p876 = pneg %p260
        %p877 = pneg %p257
        %p878 = pneg %p281
        %p879 = pneg %p278
        %p880 = pneg %p302
        %p881 = pneg %p299
        %p882 = pneg %p323
        %p883 = pneg %p320
        %p884 = pneg %p344
        %p885 = pneg %p341
        %p886 = pneg %p365
        %p887 = pneg %p362
        %p888 = pneg %p386
        %p889 = pneg %p383
        %p890 = pneg %p407
        %p891 = pneg %p404
        %p892 = pneg %p428
        %p893 = pneg %p425
        %p894 = pneg %p449
        %p895 = pneg %p446
        %p896 = pneg %p470
        %p897 = pneg %p467
        %p898 = pneg %p491
        %p899 = pneg %p488
        %p900 = pneg %p512
        %p901 = pneg %p509
        %p902 = pneg %p533
        %p903 = pneg %p530
        %p904 = pneg %p554
        %p905 = pneg %p551
        %p906 = pneg %p575
        %p907 = pneg %p572
        %p908 = pneg %p596
        %p909 = pneg %p593
        %p910 = pneg %p617
        %p911 = pneg %p614
        %p912 = pneg %p638
        %p913 = pneg %p635
        %p914 = pneg %p659
        %p915 = pneg %p656
        %p916 = pneg %p680
        %p917 = pneg %p677
        %p918 = pneg %p701
        %p919 = pneg %p698
        %p920 = pneg %p727
        %p921 = pneg %p724
        %s922 = sand.u32 %s714, 1
        %s923 = scalar_lea.sflag [#allocation5], %s922
        %s924 = sand.u32 %s714, 1
        %s925 = smul.addr %s924, 8
        %s926 = scalar_lea.vmem [#allocation4], %s925
        %s927 = sadd.s32 %s77, %s78
        %s928 = smul.u32 8, %s927
        %p929 = scmp.lt.s32.totalorder %s928, 15
        %s930 = scalar_select %p929, %s928, 15
        %s931 = smul.addr %s930, 8
        %s932 = scalar_lea.vmem %s1, %s931
        %s933 = sadd.s32 %s77, %s78
        %s934 = smul.u32 8, %s933
        %p935 = scmp.lt.s32.totalorder %s77, 1
        %s936 = scalar_select %p935, %s77, 1
        %s937 = smul.addr %s936, 8
        %s938 = scalar_lea.vmem %s3, %s937
        %p940 = scmp.eq.s32.totalorder %s78, 0
        // Predicated region
        $region137: #{tabformer_inference.1} parent=135 // pred_check
          %p941 = pneg %p940
        $region138: #{tabformer_inference.1} parent=135 // pred_check_branch
          %943 = sbr.rel (%p941) target = $region140
        $region139: #{tabformer_inference.1} parent=135 // pred_region
          %944 = vst [vmem:[#allocation2] sm:$0xff] 0.0
        $region140: #{tabformer_inference.1} parent=135 // pred_fallthru
          _
        %v945 = vld [vmem:[%s932] sm:$0xff]
        %v946 = vld [vmem:[%s932 + $0x8] sm:$0xff]
        %v947 = vld [vmem:[%s932 + $0x10] sm:$0xff]
        %v948 = vld [vmem:[%s932 + $0x18] sm:$0xff]
        %v949 = vld [vmem:[%s932 + $0x20] sm:$0xff]
        %v950 = vld [vmem:[%s932 + $0x28] sm:$0xff]
        %v951 = vld [vmem:[%s932 + $0x30] sm:$0xff]
        %v952 = vld [vmem:[%s932 + $0x38] sm:$0xff]
        %v953 = vcvt.s32.f32 %v945
        %v954 = vcvt.s32.f32 %v946
        %v955 = vcvt.s32.f32 %v947
        %v956 = vcvt.s32.f32 %v948
        %v957 = vcvt.s32.f32 %v949
        %v958 = vcvt.s32.f32 %v950
        %v959 = vcvt.s32.f32 %v951
        %v960 = vcvt.s32.f32 %v952
        %v961 = vld [vmem:[%s5] sm:$0xf]
        %vm962 = vcmask 31744
        %v964 = vsel %vm962, %v953, 0
        %v967 = vsel %vm962, %v954, 0
        %v970 = vsel %vm962, %v955, 0
        %v973 = vsel %vm962, %v956, 0
        %v976 = vsel %vm962, %v957, 0
        %v979 = vsel %vm962, %v958, 0
        %v982 = vsel %vm962, %v959, 0
        %v985 = vsel %vm962, %v960, 0
        %vm987 = vcmask 1043456
        %v989 = vsel %vm987, %v961, 0
        %991 = vmatprep.subr.mxu0 0.0
        %992 = vmatpush1.msra.mxu0 %v989
        %993 = vmatprep.subr.mxu0 0.0
        %994 = vmatpush1.msra.mxu0 0.0
        %995 = vmatprep.subr.mxu0 0.0
        %996 = vmatpush1.msra.mxu0 0.0
        %997 = vmatprep.subr.mxu0 0.0
        %998 = vmatpush1.msra.mxu0 0.0
        %999 = vmatprep.subr.mxu0 0.0
        %1000 = vmatpush1.msra.mxu0 0.0
        %1001 = vmatprep.subr.mxu0 0.0
        %1002 = vmatpush1.msra.mxu0 0.0
        %1003 = vmatprep.subr.mxu0 0.0
        %1004 = vmatpush1.msra.mxu0 0.0
        %1005 = vmatprep.subr.mxu0 0.0
        %1006 = vmatpush1.msra.mxu0 0.0
        %1007 = vmatprep.subr.mxu0 0.0
        %1008 = vmatpush1.msra.mxu0 0.0
        %1009 = vmatprep.subr.mxu0 0.0
        %1010 = vmatpush1.msra.mxu0 0.0
        %1011 = vmatprep.subr.mxu0 0.0
        %1012 = vmatpush1.msra.mxu0 0.0
        %1013 = vmatprep.subr.mxu0 0.0
        %1014 = vmatpush1.msra.mxu0 0.0
        %1015 = vmatprep.subr.mxu0 0.0
        %1016 = vmatpush1.msra.mxu0 0.0
        %1017 = vmatprep.subr.mxu0 0.0
        %1018 = vmatpush1.msra.mxu0 0.0
        %1019 = vmatprep.subr.mxu0 0.0
        %1020 = vmatpush1.msra.mxu0 0.0
        %1021 = vmatprep.subr.mxu0 0.0
        %1022 = vmatpush1.msra.mxu0 0.0
        %1023 = vmatprep.subr.mxu0 0.0
        %1024 = vmatpush1.msra.mxu0 0.0
        %1025 = vmatprep.subr.mxu0 0.0
        %1026 = vmatpush1.msra.mxu0 0.0
        %1027 = vmatprep.subr.mxu0 0.0
        %1028 = vmatpush1.msra.mxu0 0.0
        %1029 = vmatprep.subr.mxu0 0.0
        %1030 = vmatpush1.msra.mxu0 0.0
        %1031 = vmatprep.subr.mxu0 0.0
        %1032 = vmatpush1.msra.mxu0 0.0
        %1033 = vmatprep.subr.mxu0 0.0
        %1034 = vmatpush1.msra.mxu0 0.0
        %1035 = vmatprep.subr.mxu0 0.0
        %1036 = vmatpush1.msra.mxu0 0.0
        %1037 = vmatprep.subr.mxu0 0.0
        %1038 = vmatpush1.msra.mxu0 0.0
        %1039 = vmatprep.subr.mxu0 0.0
        %1040 = vmatpush1.msra.mxu0 0.0
        %1041 = vmatprep.subr.mxu0 0.0
        %1042 = vmatpush1.msra.mxu0 0.0
        %1043 = vmatprep.subr.mxu0 0.0
        %1044 = vmatpush1.msra.mxu0 0.0
        %1045 = vmatprep.subr.mxu0 0.0
        %1046 = vmatpush1.msra.mxu0 0.0
        %1047 = vmatprep.subr.mxu0 0.0
        %1048 = vmatpush1.msra.mxu0 0.0
        %1049 = vmatprep.subr.mxu0 0.0
        %1050 = vmatpush1.msra.mxu0 0.0
        %1051 = vmatprep.subr.mxu0 0.0
        %1052 = vmatpush1.msra.mxu0 0.0
        %1053 = vmatprep.subr.mxu0 0.0
        %1054 = vmatpush1.msra.mxu0 0.0
        %1055 = vmatprep.mubr.f32.mxu0 0.0
        %1056 = vmatmul.mubr.f32.gmra.mrb[0].mxu0 %v964
        %v1057 = vpop.f32.mrb[0].mxu0
        %v1058 = vadd.f32 0.0, %v1057
        %v1059 = vpop.f32.mrb[0].mxu0
        %1060 = vmatprep.mubr.f32.mxu0 0.0
        %1061 = vmatmul.mubr.f32.gmra.mrb[0].mxu0 %v967
        %v1062 = vpop.f32.mrb[0].mxu0
        %v1063 = vadd.f32 0.0, %v1062
        %v1064 = vpop.f32.mrb[0].mxu0
        %1065 = vmatprep.mubr.f32.mxu0 0.0
        %1066 = vmatmul.mubr.f32.gmra.mrb[0].mxu0 %v970
        %v1067 = vpop.f32.mrb[0].mxu0
        %v1068 = vadd.f32 0.0, %v1067
        %v1069 = vpop.f32.mrb[0].mxu0
        %1070 = vmatprep.mubr.f32.mxu0 0.0
        %1071 = vmatmul.mubr.f32.gmra.mrb[0].mxu0 %v973
        %v1072 = vpop.f32.mrb[0].mxu0
        %v1073 = vadd.f32 0.0, %v1072
        %v1074 = vpop.f32.mrb[0].mxu0
        %1075 = vmatprep.mubr.f32.mxu0 0.0
        %1076 = vmatmul.mubr.f32.gmra.mrb[0].mxu0 %v976
        %v1077 = vpop.f32.mrb[0].mxu0
        %v1078 = vadd.f32 0.0, %v1077
        %v1079 = vpop.f32.mrb[0].mxu0
        %1080 = vmatprep.mubr.f32.mxu0 0.0
        %1081 = vmatmul.mubr.f32.gmra.mrb[0].mxu0 %v979
        %v1082 = vpop.f32.mrb[0].mxu0
        %v1083 = vadd.f32 0.0, %v1082
        %v1084 = vpop.f32.mrb[0].mxu0
        %1085 = vmatprep.mubr.f32.mxu0 0.0
        %1086 = vmatmul.mubr.f32.gmra.mrb[0].mxu0 %v982
        %v1087 = vpop.f32.mrb[0].mxu0
        %v1088 = vadd.f32 0.0, %v1087
        %v1089 = vpop.f32.mrb[0].mxu0
        %1090 = vmatprep.mubr.f32.mxu0 0.0
        %1091 = vmatmul.mubr.f32.gmra.mrb[0].mxu0 %v985
        %v1092 = vpop.f32.mrb[0].mxu0
        %v1093 = vadd.f32 0.0, %v1092
        %v1094 = vpop.f32.mrb[0].mxu0
        %1095 = vdwg.mxu0
        %v1096 = vld [vmem:[%s7] sm:$0x1]
        %v1098 = vlaneseq
        %v1099 = vshrl.u32 %v1098, 7
        %v1100 = vsub.s32 0, %v1099
        %v1101 = vrot.slane %v1096, %v1100
        %vm1103 = vcmp.eq.f32.partialorder %v1058, %v1101
        %vm1104 = vcmp.eq.f32.partialorder %v1063, %v1101
        %vm1105 = vcmp.eq.f32.partialorder %v1068, %v1101
        %vm1106 = vcmp.eq.f32.partialorder %v1073, %v1101
        %vm1107 = vcmp.eq.f32.partialorder %v1078, %v1101
        %vm1108 = vcmp.eq.f32.partialorder %v1083, %v1101
        %vm1109 = vcmp.eq.f32.partialorder %v1088, %v1101
        %vm1110 = vcmp.eq.f32.partialorder %v1093, %v1101
        %v1111 = vsel %vm1103, 1, 0
        %v1112 = vsel %vm1104, 1, 0
        %v1113 = vsel %vm1105, 1, 0
        %v1114 = vsel %vm1106, 1, 0
        %v1115 = vsel %vm1107, 1, 0
        %v1116 = vsel %vm1108, 1, 0
        %v1117 = vsel %vm1109, 1, 0
        %v1118 = vsel %vm1110, 1, 0
        %v1119 = vcvt.s32.f32 %v1111
        %v1120 = vcvt.s32.f32 %v1112
        %v1121 = vcvt.s32.f32 %v1113
        %v1122 = vcvt.s32.f32 %v1114
        %v1123 = vcvt.s32.f32 %v1115
        %v1124 = vcvt.s32.f32 %v1116
        %v1125 = vcvt.s32.f32 %v1117
        %v1126 = vcvt.s32.f32 %v1118
        %v1127 = vld [vmem:[%s9] sm:$0xff]
        %v1128 = vld [vmem:[%s9 + $0x8] sm:$0xff]
        %v1129 = vld [vmem:[%s9 + $0x10] sm:$0xff]
        %v1130 = vld [vmem:[%s9 + $0x18] sm:$0xff]
        %v1131 = vld [vmem:[%s9 + $0x20] sm:$0xff]
        %v1132 = vld [vmem:[%s9 + $0x28] sm:$0xff]
        %v1133 = vld [vmem:[%s9 + $0x30] sm:$0xff]
        %v1134 = vld [vmem:[%s9 + $0x38] sm:$0xff]
        %vm1135 = vcmask 523264
        %v1137 = vsel %vm1135, %v1119, 0
        %v1140 = vsel %vm1135, %v1120, 0
        %v1143 = vsel %vm1135, %v1121, 0
        %v1146 = vsel %vm1135, %v1122, 0
        %v1149 = vsel %vm1135, %v1123, 0
        %v1152 = vsel %vm1135, %v1124, 0
        %v1155 = vsel %vm1135, %v1125, 0
        %v1158 = vsel %vm1135, %v1126, 0
        %1160 = vmatprep.subr.mxu0 0.0
        %1161 = vmatpush1.msra.mxu0 %v1127
        %1162 = vmatprep.subr.mxu0 0.0
        %1163 = vmatpush1.msra.mxu0 %v1128
        %1164 = vmatprep.subr.mxu0 0.0
        %1165 = vmatpush1.msra.mxu0 %v1129
        %1166 = vmatprep.subr.mxu0 0.0
        %1167 = vmatpush1.msra.mxu0 %v1130
        %1168 = vmatprep.subr.mxu0 0.0
        %1169 = vmatpush1.msra.mxu0 %v1131
        %1170 = vmatprep.subr.mxu0 0.0
        %1171 = vmatpush1.msra.mxu0 %v1132
        %1172 = vmatprep.subr.mxu0 0.0
        %1173 = vmatpush1.msra.mxu0 %v1133
        %1174 = vmatprep.subr.mxu0 0.0
        %1175 = vmatpush1.msra.mxu0 %v1134
        %1176 = vmatprep.subr.mxu0 0.0
        %1177 = vmatpush1.msra.mxu0 0.0
        %1178 = vmatprep.subr.mxu0 0.0
        %1179 = vmatpush1.msra.mxu0 0.0
        %1180 = vmatprep.subr.mxu0 0.0
        %1181 = vmatpush1.msra.mxu0 0.0
        %1182 = vmatprep.subr.mxu0 0.0
        %1183 = vmatpush1.msra.mxu0 0.0
        %1184 = vmatprep.subr.mxu0 0.0
        %1185 = vmatpush1.msra.mxu0 0.0
        %1186 = vmatprep.subr.mxu0 0.0
        %1187 = vmatpush1.msra.mxu0 0.0
        %1188 = vmatprep.subr.mxu0 0.0
        %1189 = vmatpush1.msra.mxu0 0.0
        %1190 = vmatprep.subr.mxu0 0.0
        %1191 = vmatpush1.msra.mxu0 0.0
        %1192 = vmatprep.subr.mxu0 0.0
        %1193 = vmatpush1.msra.mxu0 0.0
        %1194 = vmatprep.subr.mxu0 0.0
        %1195 = vmatpush1.msra.mxu0 0.0
        %1196 = vmatprep.subr.mxu0 0.0
        %1197 = vmatpush1.msra.mxu0 0.0
        %1198 = vmatprep.subr.mxu0 0.0
        %1199 = vmatpush1.msra.mxu0 0.0
        %1200 = vmatprep.subr.mxu0 0.0
        %1201 = vmatpush1.msra.mxu0 0.0
        %1202 = vmatprep.subr.mxu0 0.0
        %1203 = vmatpush1.msra.mxu0 0.0
        %1204 = vmatprep.subr.mxu0 0.0
        %1205 = vmatpush1.msra.mxu0 0.0
        %1206 = vmatprep.subr.mxu0 0.0
        %1207 = vmatpush1.msra.mxu0 0.0
        %1208 = vmatprep.subr.mxu0 0.0
        %1209 = vmatpush1.msra.mxu0 0.0
        %1210 = vmatprep.subr.mxu0 0.0
        %1211 = vmatpush1.msra.mxu0 0.0
        %1212 = vmatprep.subr.mxu0 0.0
        %1213 = vmatpush1.msra.mxu0 0.0
        %1214 = vmatprep.subr.mxu0 0.0
        %1215 = vmatpush1.msra.mxu0 0.0
        %1216 = vmatprep.subr.mxu0 0.0
        %1217 = vmatpush1.msra.mxu0 0.0
        %1218 = vmatprep.subr.mxu0 0.0
        %1219 = vmatpush1.msra.mxu0 0.0
        %1220 = vmatprep.subr.mxu0 0.0
        %1221 = vmatpush1.msra.mxu0 0.0
        %1222 = vmatprep.subr.mxu0 0.0
        %1223 = vmatpush1.msra.mxu0 0.0
        %1224 = vmatprep.mubr.f32.mxu0 0.0
        %1225 = vmatmul.mubr.f32.gmra.mrb[0].mxu0 %v1137
        %v1226 = vpop.f32.mrb[0].mxu0
        %v1227 = vadd.f32 0.0, %v1226
        %v1228 = vpop.f32.mrb[0].mxu0
        %1229 = vmatprep.mubr.f32.mxu0 0.0
        %1230 = vmatmul.mubr.f32.gmra.mrb[0].mxu0 %v1140
        %v1231 = vpop.f32.mrb[0].mxu0
        %v1232 = vadd.f32 0.0, %v1231
        %v1233 = vpop.f32.mrb[0].mxu0
        %1234 = vmatprep.mubr.f32.mxu0 0.0
        %1235 = vmatmul.mubr.f32.gmra.mrb[0].mxu0 %v1143
        %v1236 = vpop.f32.mrb[0].mxu0
        %v1237 = vadd.f32 0.0, %v1236
        %v1238 = vpop.f32.mrb[0].mxu0
        %1239 = vmatprep.mubr.f32.mxu0 0.0
        %1240 = vmatmul.mubr.f32.gmra.mrb[0].mxu0 %v1146
        %v1241 = vpop.f32.mrb[0].mxu0
        %v1242 = vadd.f32 0.0, %v1241
        %v1243 = vpop.f32.mrb[0].mxu0
        %1244 = vmatprep.mubr.f32.mxu0 0.0
        %1245 = vmatmul.mubr.f32.gmra.mrb[0].mxu0 %v1149
        %v1246 = vpop.f32.mrb[0].mxu0
        %v1247 = vadd.f32 0.0, %v1246
        %v1248 = vpop.f32.mrb[0].mxu0
        %1249 = vmatprep.mubr.f32.mxu0 0.0
        %1250 = vmatmul.mubr.f32.gmra.mrb[0].mxu0 %v1152
        %v1251 = vpop.f32.mrb[0].mxu0
        %v1252 = vadd.f32 0.0, %v1251
        %v1253 = vpop.f32.mrb[0].mxu0
        %1254 = vmatprep.mubr.f32.mxu0 0.0
        %1255 = vmatmul.mubr.f32.gmra.mrb[0].mxu0 %v1155
        %v1256 = vpop.f32.mrb[0].mxu0
        %v1257 = vadd.f32 0.0, %v1256
        %v1258 = vpop.f32.mrb[0].mxu0
        %1259 = vmatprep.mubr.f32.mxu0 0.0
        %1260 = vmatmul.mubr.f32.gmra.mrb[0].mxu0 %v1158
        %v1261 = vpop.f32.mrb[0].mxu0
        %v1262 = vadd.f32 0.0, %v1261
        %v1263 = vpop.f32.mrb[0].mxu0
        %1264 = vdwg.mxu0
        %v1265 = vpack.c.bf16 %v1232, %v1227
        %v1266 = vpack.c.bf16 %v1242, %v1237
        %v1267 = vpack.c.bf16 %v1252, %v1247
        %v1268 = vpack.c.bf16 %v1262, %v1257
        %v1269 = vld [vmem:[%s11] sm:$0xf]
        %v1270 = vld [vmem:[%s11 + $0x4] sm:$0xf]
        %v1271 = vld [vmem:[%s11 + $0x8] sm:$0xf]
        %v1272 = vld [vmem:[%s11 + $0xc] sm:$0xf]
        %v1273 = vld [vmem:[%s13] sm:$0x1]
        %v1275 = vlaneseq
        %v1276 = vshrl.u32 %v1275, 7
        %v1277 = vsub.s32 0, %v1276
        %v1278 = vrot.slane %v1273, %v1277
        %v1284 = vunpack.c.l.b16 %v1269
        %v1285 = vunpack.c.l.b16 %v1270
        %v1286 = vunpack.c.l.b16 %v1271
        %v1287 = vunpack.c.l.b16 %v1272
        %v1288 = vpack.c.b16 %v1285, %v1284
        %v1289 = vpack.c.b16 %v1287, %v1286
        %vm1292 = vcmask 261120
        %v1294 = vsel %vm1292, %v1265, 0
        %v1297 = vsel %vm1292, %v1266, 0
        %v1300 = vsel %vm1292, %v1267, 0
        %v1303 = vsel %vm1292, %v1268, 0
        %1305 = vmatprep.subr.bf16.mxu0 0
        %1306 = vmatpush1.bf16.msra.mxu0 %v1288
        %1307 = vmatprep.subr.bf16.mxu0 0
        %1308 = vmatpush1.bf16.msra.mxu0 %v1289
        %1309 = vmatprep.subr.bf16.mxu0 0
        %1310 = vmatpush1.bf16.msra.mxu0 0
        %1311 = vmatprep.subr.bf16.mxu0 0
        %1312 = vmatpush1.bf16.msra.mxu0 0
        %1313 = vmatprep.subr.bf16.mxu0 0
        %1314 = vmatpush1.bf16.msra.mxu0 0
        %1315 = vmatprep.subr.bf16.mxu0 0
        %1316 = vmatpush1.bf16.msra.mxu0 0
        %1317 = vmatprep.subr.bf16.mxu0 0
        %1318 = vmatpush1.bf16.msra.mxu0 0
        %1319 = vmatprep.subr.bf16.mxu0 0
        %1320 = vmatpush1.bf16.msra.mxu0 0
        %1321 = vmatprep.subr.bf16.mxu0 0
        %1322 = vmatpush1.bf16.msra.mxu0 0
        %1323 = vmatprep.subr.bf16.mxu0 0
        %1324 = vmatpush1.bf16.msra.mxu0 0
        %1325 = vmatprep.subr.bf16.mxu0 0
        %1326 = vmatpush1.bf16.msra.mxu0 0
        %1327 = vmatprep.subr.bf16.mxu0 0
        %1328 = vmatpush1.bf16.msra.mxu0 0
        %1329 = vmatprep.subr.bf16.mxu0 0
        %1330 = vmatpush1.bf16.msra.mxu0 0
        %1331 = vmatprep.subr.bf16.mxu0 0
        %1332 = vmatpush1.bf16.msra.mxu0 0
        %1333 = vmatprep.subr.bf16.mxu0 0
        %1334 = vmatpush1.bf16.msra.mxu0 0
        %1335 = vmatprep.subr.bf16.mxu0 0
        %1336 = vmatpush1.bf16.msra.mxu0 0
        %1337 = vmatprep.mubr.bf16.mxu0 0
        %1338 = vmatmul.mubr.bf16.gmra.mrb[0].mxu0 %v1294
        %v1339 = vpop.f32.mrb[0].mxu0
        %v1340 = vadd.f32 %v1278, %v1339
        %v1341 = vpop.f32.mrb[0].mxu0
        %v1342 = vpop.f32.mrb[0].mxu0
        %v1343 = vadd.f32 %v1278, %v1342
        %v1344 = vpop.f32.mrb[0].mxu0
        %1345 = vmatprep.mubr.bf16.mxu0 0
        %1346 = vmatmul.mubr.bf16.gmra.mrb[0].mxu0 %v1297
        %v1347 = vpop.f32.mrb[0].mxu0
        %v1348 = vadd.f32 %v1278, %v1347
        %v1349 = vpop.f32.mrb[0].mxu0
        %v1350 = vpop.f32.mrb[0].mxu0
        %v1351 = vadd.f32 %v1278, %v1350
        %v1352 = vpop.f32.mrb[0].mxu0
        %1353 = vmatprep.mubr.bf16.mxu0 0
        %1354 = vmatmul.mubr.bf16.gmra.mrb[0].mxu0 %v1300
        %v1355 = vpop.f32.mrb[0].mxu0
        %v1356 = vadd.f32 %v1278, %v1355
        %v1357 = vpop.f32.mrb[0].mxu0
        %v1358 = vpop.f32.mrb[0].mxu0
        %v1359 = vadd.f32 %v1278, %v1358
        %v1360 = vpop.f32.mrb[0].mxu0
        %1361 = vmatprep.mubr.bf16.mxu0 0
        %1362 = vmatmul.mubr.bf16.gmra.mrb[0].mxu0 %v1303
        %v1363 = vpop.f32.mrb[0].mxu0
        %v1364 = vadd.f32 %v1278, %v1363
        %v1365 = vpop.f32.mrb[0].mxu0
        %v1366 = vpop.f32.mrb[0].mxu0
        %v1367 = vadd.f32 %v1278, %v1366
        %v1368 = vpop.f32.mrb[0].mxu0
        %1369 = vdwg.mxu0
        %v1370 = vld [vmem:[%s15] sm:$0xf]
        %v1371 = vld [vmem:[%s15 + $0x4] sm:$0xf]
        %v1372 = vld [vmem:[%s15 + $0x8] sm:$0xf]
        %v1373 = vld [vmem:[%s15 + $0xc] sm:$0xf]
        %v1374 = vld [vmem:[%s17] sm:$0x1]
        %v1376 = vlaneseq
        %v1377 = vshrl.u32 %v1376, 7
        %v1378 = vsub.s32 0, %v1377
        %v1379 = vrot.slane %v1374, %v1378
        %v1385 = vunpack.c.l.b16 %v1370
        %v1386 = vunpack.c.l.b16 %v1371
        %v1387 = vunpack.c.l.b16 %v1372
        %v1388 = vunpack.c.l.b16 %v1373
        %v1389 = vpack.c.b16 %v1386, %v1385
        %v1390 = vpack.c.b16 %v1388, %v1387
        %1393 = vmatprep.subr.bf16.mxu0 0
        %1394 = vmatpush1.bf16.msra.mxu0 %v1389
        %1395 = vmatprep.subr.bf16.mxu0 0
        %1396 = vmatpush1.bf16.msra.mxu0 %v1390
        %1397 = vmatprep.subr.bf16.mxu0 0
        %1398 = vmatpush1.bf16.msra.mxu0 0
        %1399 = vmatprep.subr.bf16.mxu0 0
        %1400 = vmatpush1.bf16.msra.mxu0 0
        %1401 = vmatprep.subr.bf16.mxu0 0
        %1402 = vmatpush1.bf16.msra.mxu0 0
        %1403 = vmatprep.subr.bf16.mxu0 0
        %1404 = vmatpush1.bf16.msra.mxu0 0
        %1405 = vmatprep.subr.bf16.mxu0 0
        %1406 = vmatpush1.bf16.msra.mxu0 0
        %1407 = vmatprep.subr.bf16.mxu0 0
        %1408 = vmatpush1.bf16.msra.mxu0 0
        %1409 = vmatprep.subr.bf16.mxu0 0
        %1410 = vmatpush1.bf16.msra.mxu0 0
        %1411 = vmatprep.subr.bf16.mxu0 0
        %1412 = vmatpush1.bf16.msra.mxu0 0
        %1413 = vmatprep.subr.bf16.mxu0 0
        %1414 = vmatpush1.bf16.msra.mxu0 0
        %1415 = vmatprep.subr.bf16.mxu0 0
        %1416 = vmatpush1.bf16.msra.mxu0 0
        %1417 = vmatprep.subr.bf16.mxu0 0
        %1418 = vmatpush1.bf16.msra.mxu0 0
        %1419 = vmatprep.subr.bf16.mxu0 0
        %1420 = vmatpush1.bf16.msra.mxu0 0
        %1421 = vmatprep.subr.bf16.mxu0 0
        %1422 = vmatpush1.bf16.msra.mxu0 0
        %1423 = vmatprep.subr.bf16.mxu0 0
        %1424 = vmatpush1.bf16.msra.mxu0 0
        %1425 = vmatprep.mubr.bf16.mxu0 0
        %1426 = vmatmul.mubr.bf16.gmra.mrb[0].mxu0 %v1294
        %v1427 = vpop.f32.mrb[0].mxu0
        %v1428 = vadd.f32 %v1379, %v1427
        %v1429 = vpop.f32.mrb[0].mxu0
        %v1430 = vpop.f32.mrb[0].mxu0
        %v1431 = vadd.f32 %v1379, %v1430
        %v1432 = vpop.f32.mrb[0].mxu0
        %1433 = vmatprep.mubr.bf16.mxu0 0
        %1434 = vmatmul.mubr.bf16.gmra.mrb[0].mxu0 %v1297
        %v1435 = vpop.f32.mrb[0].mxu0
        %v1436 = vadd.f32 %v1379, %v1435
        %v1437 = vpop.f32.mrb[0].mxu0
        %v1438 = vpop.f32.mrb[0].mxu0
        %v1439 = vadd.f32 %v1379, %v1438
        %v1440 = vpop.f32.mrb[0].mxu0
        %1441 = vmatprep.mubr.bf16.mxu0 0
        %1442 = vmatmul.mubr.bf16.gmra.mrb[0].mxu0 %v1300
        %v1443 = vpop.f32.mrb[0].mxu0
        %v1444 = vadd.f32 %v1379, %v1443
        %v1445 = vpop.f32.mrb[0].mxu0
        %v1446 = vpop.f32.mrb[0].mxu0
        %v1447 = vadd.f32 %v1379, %v1446
        %v1448 = vpop.f32.mrb[0].mxu0
        %1449 = vmatprep.mubr.bf16.mxu0 0
        %1450 = vmatmul.mubr.bf16.gmra.mrb[0].mxu0 %v1303
        %v1451 = vpop.f32.mrb[0].mxu0
        %v1452 = vadd.f32 %v1379, %v1451
        %v1453 = vpop.f32.mrb[0].mxu0
        %v1454 = vpop.f32.mrb[0].mxu0
        %v1455 = vadd.f32 %v1379, %v1454
        %v1456 = vpop.f32.mrb[0].mxu0
        %1457 = vdwg.mxu0
        %v1458 = vld [vmem:[%s19] sm:$0xf]
        %v1459 = vld [vmem:[%s19 + $0x4] sm:$0xf]
        %v1460 = vld [vmem:[%s19 + $0x8] sm:$0xf]
        %v1461 = vld [vmem:[%s19 + $0xc] sm:$0xf]
        %v1462 = vld [vmem:[%s21] sm:$0x1]
        %v1464 = vlaneseq
        %v1465 = vshrl.u32 %v1464, 7
        %v1466 = vsub.s32 0, %v1465
        %v1467 = vrot.slane %v1462, %v1466
        %v1473 = vunpack.c.l.b16 %v1458
        %v1474 = vunpack.c.l.b16 %v1459
        %v1475 = vunpack.c.l.b16 %v1460
        %v1476 = vunpack.c.l.b16 %v1461
        %v1477 = vpack.c.b16 %v1474, %v1473
        %v1478 = vpack.c.b16 %v1476, %v1475
        %1481 = vmatprep.subr.bf16.mxu0 0
        %1482 = vmatpush1.bf16.msra.mxu0 %v1477
        %1483 = vmatprep.subr.bf16.mxu0 0
        %1484 = vmatpush1.bf16.msra.mxu0 %v1478
        %1485 = vmatprep.subr.bf16.mxu0 0
        %1486 = vmatpush1.bf16.msra.mxu0 0
        %1487 = vmatprep.subr.bf16.mxu0 0
        %1488 = vmatpush1.bf16.msra.mxu0 0
        %1489 = vmatprep.subr.bf16.mxu0 0
        %1490 = vmatpush1.bf16.msra.mxu0 0
        %1491 = vmatprep.subr.bf16.mxu0 0
        %1492 = vmatpush1.bf16.msra.mxu0 0
        %1493 = vmatprep.subr.bf16.mxu0 0
        %1494 = vmatpush1.bf16.msra.mxu0 0
        %1495 = vmatprep.subr.bf16.mxu0 0
        %1496 = vmatpush1.bf16.msra.mxu0 0
        %1497 = vmatprep.subr.bf16.mxu0 0
        %1498 = vmatpush1.bf16.msra.mxu0 0
        %1499 = vmatprep.subr.bf16.mxu0 0
        %1500 = vmatpush1.bf16.msra.mxu0 0
        %1501 = vmatprep.subr.bf16.mxu0 0
        %1502 = vmatpush1.bf16.msra.mxu0 0
        %1503 = vmatprep.subr.bf16.mxu0 0
        %1504 = vmatpush1.bf16.msra.mxu0 0
        %1505 = vmatprep.subr.bf16.mxu0 0
        %1506 = vmatpush1.bf16.msra.mxu0 0
        %1507 = vmatprep.subr.bf16.mxu0 0
        %1508 = vmatpush1.bf16.msra.mxu0 0
        %1509 = vmatprep.subr.bf16.mxu0 0
        %1510 = vmatpush1.bf16.msra.mxu0 0
        %1511 = vmatprep.subr.bf16.mxu0 0
        %1512 = vmatpush1.bf16.msra.mxu0 0
        %1513 = vmatprep.mubr.bf16.mxu0 0
        %1514 = vmatmul.mubr.bf16.gmra.mrb[0].mxu0 %v1294
        %v1515 = vpop.f32.mrb[0].mxu0
        %v1516 = vadd.f32 %v1467, %v1515
        %v1517 = vpop.f32.mrb[0].mxu0
        %v1518 = vpop.f32.mrb[0].mxu0
        %v1519 = vadd.f32 %v1467, %v1518
        %v1520 = vpop.f32.mrb[0].mxu0
        %1521 = vmatprep.mubr.bf16.mxu0 0
        %1522 = vmatmul.mubr.bf16.gmra.mrb[0].mxu0 %v1297
        %v1523 = vpop.f32.mrb[0].mxu0
        %v1524 = vadd.f32 %v1467, %v1523
        %v1525 = vpop.f32.mrb[0].mxu0
        %v1526 = vpop.f32.mrb[0].mxu0
        %v1527 = vadd.f32 %v1467, %v1526
        %v1528 = vpop.f32.mrb[0].mxu0
        %1529 = vmatprep.mubr.bf16.mxu0 0
        %1530 = vmatmul.mubr.bf16.gmra.mrb[0].mxu0 %v1300
        %v1531 = vpop.f32.mrb[0].mxu0
        %v1532 = vadd.f32 %v1467, %v1531
        %v1533 = vpop.f32.mrb[0].mxu0
        %v1534 = vpop.f32.mrb[0].mxu0
        %v1535 = vadd.f32 %v1467, %v1534
        %v1536 = vpop.f32.mrb[0].mxu0
        %1537 = vmatprep.mubr.bf16.mxu0 0
        %1538 = vmatmul.mubr.bf16.gmra.mrb[0].mxu0 %v1303
        %v1539 = vpop.f32.mrb[0].mxu0
        %v1540 = vadd.f32 %v1467, %v1539
        %v1541 = vpop.f32.mrb[0].mxu0
        %v1542 = vpop.f32.mrb[0].mxu0
        %v1543 = vadd.f32 %v1467, %v1542
        %v1544 = vpop.f32.mrb[0].mxu0
        %1545 = vdwg.mxu0
        %v1546 = vmul.f32 %v1340, %v1428
        %v1547 = vmul.f32 %v1343, %v1431
        %v1548 = vmul.f32 %v1348, %v1436
        %v1549 = vmul.f32 %v1351, %v1439
        %v1550 = vmul.f32 %v1356, %v1444
        %v1551 = vmul.f32 %v1359, %v1447
        %v1552 = vmul.f32 %v1364, %v1452
        %v1553 = vmul.f32 %v1367, %v1455
        %v1554 = vld [vmem:[%s23] sm:$0xff]
        %v1555 = vld [vmem:[%s23 + $0x8] sm:$0xff]
        %v1556 = vld [vmem:[%s23 + $0x10] sm:$0xff]
        %v1557 = vld [vmem:[%s23 + $0x18] sm:$0xff]
        %v1558 = vld [vmem:[%s23 + $0x20] sm:$0xff]
        %v1559 = vld [vmem:[%s23 + $0x28] sm:$0xff]
        %v1560 = vld [vmem:[%s23 + $0x30] sm:$0xff]
        %v1561 = vld [vmem:[%s23 + $0x38] sm:$0xff]
        %v1562 = vld [vmem:[%s23 + $0x40] sm:$0xff]
        %v1563 = vld [vmem:[%s23 + $0x48] sm:$0xff]
        %v1564 = vld [vmem:[%s23 + $0x50] sm:$0xff]
        %v1565 = vld [vmem:[%s23 + $0x58] sm:$0xff]
        %v1566 = vld [vmem:[%s23 + $0x60] sm:$0xff]
        %v1567 = vld [vmem:[%s23 + $0x68] sm:$0xff]
        %v1568 = vld [vmem:[%s23 + $0x70] sm:$0xff]
        %v1569 = vld [vmem:[%s23 + $0x78] sm:$0xff]
        %1570 = vmatprep.subr.mxu0 0.0
        %1571 = vmatpush1.msra.mxu0 %v1554
        %1572 = vmatprep.subr.mxu0 0.0
        %1573 = vmatpush1.msra.mxu0 %v1555
        %1574 = vmatprep.subr.mxu0 0.0
        %1575 = vmatpush1.msra.mxu0 %v1556
        %1576 = vmatprep.subr.mxu0 0.0
        %1577 = vmatpush1.msra.mxu0 %v1557
        %1578 = vmatprep.subr.mxu0 0.0
        %1579 = vmatpush1.msra.mxu0 %v1558
        %1580 = vmatprep.subr.mxu0 0.0
        %1581 = vmatpush1.msra.mxu0 %v1559
        %1582 = vmatprep.subr.mxu0 0.0
        %1583 = vmatpush1.msra.mxu0 %v1560
        %1584 = vmatprep.subr.mxu0 0.0
        %1585 = vmatpush1.msra.mxu0 %v1561
        %1586 = vmatprep.subr.mxu0 0.0
        %1587 = vmatpush1.msra.mxu0 %v1562
        %1588 = vmatprep.subr.mxu0 0.0
        %1589 = vmatpush1.msra.mxu0 %v1563
        %1590 = vmatprep.subr.mxu0 0.0
        %1591 = vmatpush1.msra.mxu0 %v1564
        %1592 = vmatprep.subr.mxu0 0.0
        %1593 = vmatpush1.msra.mxu0 %v1565
        %1594 = vmatprep.subr.mxu0 0.0
        %1595 = vmatpush1.msra.mxu0 %v1566
        %1596 = vmatprep.subr.mxu0 0.0
        %1597 = vmatpush1.msra.mxu0 %v1567
        %1598 = vmatprep.subr.mxu0 0.0
        %1599 = vmatpush1.msra.mxu0 %v1568
        %1600 = vmatprep.subr.mxu0 0.0
        %1601 = vmatpush1.msra.mxu0 %v1569
        %1602 = vmatprep.subr.mxu0 0.0
        %1603 = vmatpush1.msra.mxu0 0.0
        %1604 = vmatprep.subr.mxu0 0.0
        %1605 = vmatpush1.msra.mxu0 0.0
        %1606 = vmatprep.subr.mxu0 0.0
        %1607 = vmatpush1.msra.mxu0 0.0
        %1608 = vmatprep.subr.mxu0 0.0
        %1609 = vmatpush1.msra.mxu0 0.0
        %1610 = vmatprep.subr.mxu0 0.0
        %1611 = vmatpush1.msra.mxu0 0.0
        %1612 = vmatprep.subr.mxu0 0.0
        %1613 = vmatpush1.msra.mxu0 0.0
        %1614 = vmatprep.subr.mxu0 0.0
        %1615 = vmatpush1.msra.mxu0 0.0
        %1616 = vmatprep.subr.mxu0 0.0
        %1617 = vmatpush1.msra.mxu0 0.0
        %1618 = vmatprep.subr.mxu0 0.0
        %1619 = vmatpush1.msra.mxu0 0.0
        %1620 = vmatprep.subr.mxu0 0.0
        %1621 = vmatpush1.msra.mxu0 0.0
        %1622 = vmatprep.subr.mxu0 0.0
        %1623 = vmatpush1.msra.mxu0 0.0
        %1624 = vmatprep.subr.mxu0 0.0
        %1625 = vmatpush1.msra.mxu0 0.0
        %1626 = vmatprep.subr.mxu0 0.0
        %1627 = vmatpush1.msra.mxu0 0.0
        %1628 = vmatprep.subr.mxu0 0.0
        %1629 = vmatpush1.msra.mxu0 0.0
        %1630 = vmatprep.subr.mxu0 0.0
        %1631 = vmatpush1.msra.mxu0 0.0
        %1632 = vmatprep.subr.mxu0 0.0
        %1633 = vmatpush1.msra.mxu0 0.0
        %1634 = vmatprep.mubr.f32.mxu0 0.0
        %1635 = vmatmul.mubr.f32.gmra.mrb[0].mxu0 %v1546
        %v1636 = vpop.f32.mrb[0].mxu0
        %v1637 = vadd.f32 0.0, %v1636
        %v1638 = vpop.f32.mrb[0].mxu0
        %1639 = vmatprep.mubr.f32.mxu0 0.0
        %1640 = vmatmul.mubr.f32.gmra.mrb[0].mxu0 %v1547
        %v1641 = vpop.f32.mrb[0].mxu0
        %v1642 = vadd.f32 0.0, %v1641
        %v1643 = vpop.f32.mrb[0].mxu0
        %1644 = vmatprep.mubr.f32.mxu0 0.0
        %1645 = vmatmul.mubr.f32.gmra.mrb[0].mxu0 %v1548
        %v1646 = vpop.f32.mrb[0].mxu0
        %v1647 = vadd.f32 0.0, %v1646
        %v1648 = vpop.f32.mrb[0].mxu0
        %1649 = vmatprep.mubr.f32.mxu0 0.0
        %1650 = vmatmul.mubr.f32.gmra.mrb[0].mxu0 %v1549
        %v1651 = vpop.f32.mrb[0].mxu0
        %v1652 = vadd.f32 0.0, %v1651
        %v1653 = vpop.f32.mrb[0].mxu0
        %1654 = vmatprep.mubr.f32.mxu0 0.0
        %1655 = vmatmul.mubr.f32.gmra.mrb[0].mxu0 %v1550
        %v1656 = vpop.f32.mrb[0].mxu0
        %v1657 = vadd.f32 0.0, %v1656
        %v1658 = vpop.f32.mrb[0].mxu0
        %1659 = vmatprep.mubr.f32.mxu0 0.0
        %1660 = vmatmul.mubr.f32.gmra.mrb[0].mxu0 %v1551
        %v1661 = vpop.f32.mrb[0].mxu0
        %v1662 = vadd.f32 0.0, %v1661
        %v1663 = vpop.f32.mrb[0].mxu0
        %1664 = vmatprep.mubr.f32.mxu0 0.0
        %1665 = vmatmul.mubr.f32.gmra.mrb[0].mxu0 %v1552
        %v1666 = vpop.f32.mrb[0].mxu0
        %v1667 = vadd.f32 0.0, %v1666
        %v1668 = vpop.f32.mrb[0].mxu0
        %1669 = vmatprep.mubr.f32.mxu0 0.0
        %1670 = vmatmul.mubr.f32.gmra.mrb[0].mxu0 %v1553
        %v1671 = vpop.f32.mrb[0].mxu0
        %v1672 = vadd.f32 0.0, %v1671
        %v1673 = vpop.f32.mrb[0].mxu0
        %1674 = vdwg.mxu0
        %vm1675 = vcmask 130048
        %v1676 = vsel %vm1675, %v1637, -inf
        %1677 = vmax.xlane.f32.xlu0 %v1676
        %v1678 = vpop.xlane.xlu0 %1677
        %v1679 = vsel %vm1675, %v1642, -inf
        %1680 = vmax.xlane.f32.xlu0 %v1679
        %v1681 = vpop.xlane.xlu0 %1680
        %v1682 = vsel %vm1675, %v1647, -inf
        %1683 = vmax.xlane.f32.xlu0 %v1682
        %v1684 = vpop.xlane.xlu0 %1683
        %v1685 = vsel %vm1675, %v1652, -inf
        %1686 = vmax.xlane.f32.xlu0 %v1685
        %v1687 = vpop.xlane.xlu0 %1686
        %v1688 = vsel %vm1675, %v1657, -inf
        %1689 = vmax.xlane.f32.xlu0 %v1688
        %v1690 = vpop.xlane.xlu0 %1689
        %v1691 = vsel %vm1675, %v1662, -inf
        %1692 = vmax.xlane.f32.xlu0 %v1691
        %v1693 = vpop.xlane.xlu0 %1692
        %v1694 = vsel %vm1675, %v1667, -inf
        %1695 = vmax.xlane.f32.xlu0 %v1694
        %v1696 = vpop.xlane.xlu0 %1695
        %v1697 = vsel %vm1675, %v1672, -inf
        %1698 = vmax.xlane.f32.xlu0 %v1697
        %v1699 = vpop.xlane.xlu0 %1698
        %v1700 = vsub.f32 %v1637, %v1678
        %v1701 = vsub.f32 %v1642, %v1681
        %v1702 = vsub.f32 %v1647, %v1684
        %v1703 = vsub.f32 %v1652, %v1687
        %v1704 = vsub.f32 %v1657, %v1690
        %v1705 = vsub.f32 %v1662, %v1693
        %v1706 = vsub.f32 %v1667, %v1696
        %v1707 = vsub.f32 %v1672, %v1699
        %v1708 = vmul.f32 %v1700, 1.442695
        %v1709 = vpow.pop %v1708
        %v1710 = vmul.f32 %v1701, 1.442695
        %v1711 = vpow.pop %v1710
        %v1712 = vmul.f32 %v1702, 1.442695
        %v1713 = vpow.pop %v1712
        %v1714 = vmul.f32 %v1703, 1.442695
        %v1715 = vpow.pop %v1714
        %v1716 = vmul.f32 %v1704, 1.442695
        %v1717 = vpow.pop %v1716
        %v1718 = vmul.f32 %v1705, 1.442695
        %v1719 = vpow.pop %v1718
        %v1720 = vmul.f32 %v1706, 1.442695
        %v1721 = vpow.pop %v1720
        %v1722 = vmul.f32 %v1707, 1.442695
        %v1723 = vpow.pop %v1722
        %v1724 = vld [vmem:[%s25] sm:$0xff]
        %v1725 = vld [vmem:[%s25 + $0x8] sm:$0xff]
        %v1727 = vsel %vm1675, %v1709, 0
        %v1730 = vsel %vm1675, %v1711, 0
        %v1733 = vsel %vm1675, %v1713, 0
        %v1736 = vsel %vm1675, %v1715, 0
        %v1739 = vsel %vm1675, %v1717, 0
        %v1742 = vsel %vm1675, %v1719, 0
        %v1745 = vsel %vm1675, %v1721, 0
        %v1748 = vsel %vm1675, %v1723, 0
        %1750 = vmatprep.subr.mxu0 0.0
        %1751 = vmatpush1.msra.mxu0 %v1724
        %1752 = vmatprep.subr.mxu0 0.0
        %1753 = vmatpush1.msra.mxu0 %v1725
        %1754 = vmatprep.subr.mxu0 0.0
        %1755 = vmatpush1.msra.mxu0 0.0
        %1756 = vmatprep.subr.mxu0 0.0
        %1757 = vmatpush1.msra.mxu0 0.0
        %1758 = vmatprep.subr.mxu0 0.0
        %1759 = vmatpush1.msra.mxu0 0.0
        %1760 = vmatprep.subr.mxu0 0.0
        %1761 = vmatpush1.msra.mxu0 0.0
        %1762 = vmatprep.subr.mxu0 0.0
        %1763 = vmatpush1.msra.mxu0 0.0
        %1764 = vmatprep.subr.mxu0 0.0
        %1765 = vmatpush1.msra.mxu0 0.0
        %1766 = vmatprep.subr.mxu0 0.0
        %1767 = vmatpush1.msra.mxu0 0.0
        %1768 = vmatprep.subr.mxu0 0.0
        %1769 = vmatpush1.msra.mxu0 0.0
        %1770 = vmatprep.subr.mxu0 0.0
        %1771 = vmatpush1.msra.mxu0 0.0
        %1772 = vmatprep.subr.mxu0 0.0
        %1773 = vmatpush1.msra.mxu0 0.0
        %1774 = vmatprep.subr.mxu0 0.0
        %1775 = vmatpush1.msra.mxu0 0.0
        %1776 = vmatprep.subr.mxu0 0.0
        %1777 = vmatpush1.msra.mxu0 0.0
        %1778 = vmatprep.subr.mxu0 0.0
        %1779 = vmatpush1.msra.mxu0 0.0
        %1780 = vmatprep.subr.mxu0 0.0
        %1781 = vmatpush1.msra.mxu0 0.0
        %1782 = vmatprep.subr.mxu0 0.0
        %1783 = vmatpush1.msra.mxu0 0.0
        %1784 = vmatprep.subr.mxu0 0.0
        %1785 = vmatpush1.msra.mxu0 0.0
        %1786 = vmatprep.subr.mxu0 0.0
        %1787 = vmatpush1.msra.mxu0 0.0
        %1788 = vmatprep.subr.mxu0 0.0
        %1789 = vmatpush1.msra.mxu0 0.0
        %1790 = vmatprep.subr.mxu0 0.0
        %1791 = vmatpush1.msra.mxu0 0.0
        %1792 = vmatprep.subr.mxu0 0.0
        %1793 = vmatpush1.msra.mxu0 0.0
        %1794 = vmatprep.subr.mxu0 0.0
        %1795 = vmatpush1.msra.mxu0 0.0
        %1796 = vmatprep.subr.mxu0 0.0
        %1797 = vmatpush1.msra.mxu0 0.0
        %1798 = vmatprep.subr.mxu0 0.0
        %1799 = vmatpush1.msra.mxu0 0.0
        %1800 = vmatprep.subr.mxu0 0.0
        %1801 = vmatpush1.msra.mxu0 0.0
        %1802 = vmatprep.subr.mxu0 0.0
        %1803 = vmatpush1.msra.mxu0 0.0
        %1804 = vmatprep.subr.mxu0 0.0
        %1805 = vmatpush1.msra.mxu0 0.0
        %1806 = vmatprep.subr.mxu0 0.0
        %1807 = vmatpush1.msra.mxu0 0.0
        %1808 = vmatprep.subr.mxu0 0.0
        %1809 = vmatpush1.msra.mxu0 0.0
        %1810 = vmatprep.subr.mxu0 0.0
        %1811 = vmatpush1.msra.mxu0 0.0
        %1812 = vmatprep.subr.mxu0 0.0
        %1813 = vmatpush1.msra.mxu0 0.0
        %1814 = vmatprep.mubr.f32.mxu0 0.0
        %1815 = vmatmul.mubr.f32.gmra.mrb[0].mxu0 %v1727
        %v1816 = vpop.f32.mrb[0].mxu0
        %v1817 = vadd.f32 0.0, %v1816
        %v1818 = vpop.f32.mrb[0].mxu0
        %1819 = vmatprep.mubr.f32.mxu0 0.0
        %1820 = vmatmul.mubr.f32.gmra.mrb[0].mxu0 %v1730
        %v1821 = vpop.f32.mrb[0].mxu0
        %v1822 = vadd.f32 0.0, %v1821
        %v1823 = vpop.f32.mrb[0].mxu0
        %1824 = vmatprep.mubr.f32.mxu0 0.0
        %1825 = vmatmul.mubr.f32.gmra.mrb[0].mxu0 %v1733
        %v1826 = vpop.f32.mrb[0].mxu0
        %v1827 = vadd.f32 0.0, %v1826
        %v1828 = vpop.f32.mrb[0].mxu0
        %1829 = vmatprep.mubr.f32.mxu0 0.0
        %1830 = vmatmul.mubr.f32.gmra.mrb[0].mxu0 %v1736
        %v1831 = vpop.f32.mrb[0].mxu0
        %v1832 = vadd.f32 0.0, %v1831
        %v1833 = vpop.f32.mrb[0].mxu0
        %1834 = vmatprep.mubr.f32.mxu0 0.0
        %1835 = vmatmul.mubr.f32.gmra.mrb[0].mxu0 %v1739
        %v1836 = vpop.f32.mrb[0].mxu0
        %v1837 = vadd.f32 0.0, %v1836
        %v1838 = vpop.f32.mrb[0].mxu0
        %1839 = vmatprep.mubr.f32.mxu0 0.0
        %1840 = vmatmul.mubr.f32.gmra.mrb[0].mxu0 %v1742
        %v1841 = vpop.f32.mrb[0].mxu0
        %v1842 = vadd.f32 0.0, %v1841
        %v1843 = vpop.f32.mrb[0].mxu0
        %1844 = vmatprep.mubr.f32.mxu0 0.0
        %1845 = vmatmul.mubr.f32.gmra.mrb[0].mxu0 %v1745
        %v1846 = vpop.f32.mrb[0].mxu0
        %v1847 = vadd.f32 0.0, %v1846
        %v1848 = vpop.f32.mrb[0].mxu0
        %1849 = vmatprep.mubr.f32.mxu0 0.0
        %1850 = vmatmul.mubr.f32.gmra.mrb[0].mxu0 %v1748
        %v1851 = vpop.f32.mrb[0].mxu0
        %v1852 = vadd.f32 0.0, %v1851
        %v1853 = vpop.f32.mrb[0].mxu0
        %1854 = vdwg.mxu0
        %v1855 = vrcp.pop %v1817
        %v1856 = vrcp.pop %v1822
        %v1857 = vrcp.pop %v1827
        %v1858 = vrcp.pop %v1832
        %v1859 = vrcp.pop %v1837
        %v1860 = vrcp.pop %v1842
        %v1861 = vrcp.pop %v1847
        %v1862 = vrcp.pop %v1852
        %v1863 = vmul.f32 %v1709, %v1855
        %v1864 = vmul.f32 %v1711, %v1856
        %v1865 = vmul.f32 %v1713, %v1857
        %v1866 = vmul.f32 %v1715, %v1858
        %v1867 = vmul.f32 %v1717, %v1859
        %v1868 = vmul.f32 %v1719, %v1860
        %v1869 = vmul.f32 %v1721, %v1861
        %v1870 = vmul.f32 %v1723, %v1862
        %v1871 = vld [vmem:[%s27] sm:$0xff]
        %v1872 = vld [vmem:[%s27 + $0x8] sm:$0xff]
        %v1874 = vsel %vm1675, %v1863, 0
        %v1877 = vsel %vm1675, %v1864, 0
        %v1880 = vsel %vm1675, %v1865, 0
        %v1883 = vsel %vm1675, %v1866, 0
        %v1886 = vsel %vm1675, %v1867, 0
        %v1889 = vsel %vm1675, %v1868, 0
        %v1892 = vsel %vm1675, %v1869, 0
        %v1895 = vsel %vm1675, %v1870, 0
        %1897 = vmatprep.subr.mxu0 0.0
        %1898 = vmatpush1.msra.mxu0 %v1871
        %1899 = vmatprep.subr.mxu0 0.0
        %1900 = vmatpush1.msra.mxu0 %v1872
        %1901 = vmatprep.subr.mxu0 0.0
        %1902 = vmatpush1.msra.mxu0 0.0
        %1903 = vmatprep.subr.mxu0 0.0
        %1904 = vmatpush1.msra.mxu0 0.0
        %1905 = vmatprep.subr.mxu0 0.0
        %1906 = vmatpush1.msra.mxu0 0.0
        %1907 = vmatprep.subr.mxu0 0.0
        %1908 = vmatpush1.msra.mxu0 0.0
        %1909 = vmatprep.subr.mxu0 0.0
        %1910 = vmatpush1.msra.mxu0 0.0
        %1911 = vmatprep.subr.mxu0 0.0
        %1912 = vmatpush1.msra.mxu0 0.0
        %1913 = vmatprep.subr.mxu0 0.0
        %1914 = vmatpush1.msra.mxu0 0.0
        %1915 = vmatprep.subr.mxu0 0.0
        %1916 = vmatpush1.msra.mxu0 0.0
        %1917 = vmatprep.subr.mxu0 0.0
        %1918 = vmatpush1.msra.mxu0 0.0
        %1919 = vmatprep.subr.mxu0 0.0
        %1920 = vmatpush1.msra.mxu0 0.0
        %1921 = vmatprep.subr.mxu0 0.0
        %1922 = vmatpush1.msra.mxu0 0.0
        %1923 = vmatprep.subr.mxu0 0.0
        %1924 = vmatpush1.msra.mxu0 0.0
        %1925 = vmatprep.subr.mxu0 0.0
        %1926 = vmatpush1.msra.mxu0 0.0
        %1927 = vmatprep.subr.mxu0 0.0
        %1928 = vmatpush1.msra.mxu0 0.0
        %1929 = vmatprep.subr.mxu0 0.0
        %1930 = vmatpush1.msra.mxu0 0.0
        %1931 = vmatprep.subr.mxu0 0.0
        %1932 = vmatpush1.msra.mxu0 0.0
        %1933 = vmatprep.subr.mxu0 0.0
        %1934 = vmatpush1.msra.mxu0 0.0
        %1935 = vmatprep.subr.mxu0 0.0
        %1936 = vmatpush1.msra.mxu0 0.0
        %1937 = vmatprep.subr.mxu0 0.0
        %1938 = vmatpush1.msra.mxu0 0.0
        %1939 = vmatprep.subr.mxu0 0.0
        %1940 = vmatpush1.msra.mxu0 0.0
        %1941 = vmatprep.subr.mxu0 0.0
        %1942 = vmatpush1.msra.mxu0 0.0
        %1943 = vmatprep.subr.mxu0 0.0
        %1944 = vmatpush1.msra.mxu0 0.0
        %1945 = vmatprep.subr.mxu0 0.0
        %1946 = vmatpush1.msra.mxu0 0.0
        %1947 = vmatprep.subr.mxu0 0.0
        %1948 = vmatpush1.msra.mxu0 0.0
        %1949 = vmatprep.subr.mxu0 0.0
        %1950 = vmatpush1.msra.mxu0 0.0
        %1951 = vmatprep.subr.mxu0 0.0
        %1952 = vmatpush1.msra.mxu0 0.0
        %1953 = vmatprep.subr.mxu0 0.0
        %1954 = vmatpush1.msra.mxu0 0.0
        %1955 = vmatprep.subr.mxu0 0.0
        %1956 = vmatpush1.msra.mxu0 0.0
        %1957 = vmatprep.subr.mxu0 0.0
        %1958 = vmatpush1.msra.mxu0 0.0
        %1959 = vmatprep.subr.mxu0 0.0
        %1960 = vmatpush1.msra.mxu0 0.0
        %1961 = vmatprep.mubr.f32.mxu0 0.0
        %1962 = vmatmul.mubr.f32.gmra.mrb[0].mxu0 %v1874
        %v1963 = vpop.f32.mrb[0].mxu0
        %v1964 = vadd.f32 0.0, %v1963
        %v1965 = vpop.f32.mrb[0].mxu0
        %1966 = vmatprep.mubr.f32.mxu0 0.0
        %1967 = vmatmul.mubr.f32.gmra.mrb[0].mxu0 %v1877
        %v1968 = vpop.f32.mrb[0].mxu0
        %v1969 = vadd.f32 0.0, %v1968
        %v1970 = vpop.f32.mrb[0].mxu0
        %1971 = vmatprep.mubr.f32.mxu0 0.0
        %1972 = vmatmul.mubr.f32.gmra.mrb[0].mxu0 %v1880
        %v1973 = vpop.f32.mrb[0].mxu0
        %v1974 = vadd.f32 0.0, %v1973
        %v1975 = vpop.f32.mrb[0].mxu0
        %1976 = vmatprep.mubr.f32.mxu0 0.0
        %1977 = vmatmul.mubr.f32.gmra.mrb[0].mxu0 %v1883
        %v1978 = vpop.f32.mrb[0].mxu0
        %v1979 = vadd.f32 0.0, %v1978
        %v1980 = vpop.f32.mrb[0].mxu0
        %1981 = vmatprep.mubr.f32.mxu0 0.0
        %1982 = vmatmul.mubr.f32.gmra.mrb[0].mxu0 %v1886
        %v1983 = vpop.f32.mrb[0].mxu0
        %v1984 = vadd.f32 0.0, %v1983
        %v1985 = vpop.f32.mrb[0].mxu0
        %1986 = vmatprep.mubr.f32.mxu0 0.0
        %1987 = vmatmul.mubr.f32.gmra.mrb[0].mxu0 %v1889
        %v1988 = vpop.f32.mrb[0].mxu0
        %v1989 = vadd.f32 0.0, %v1988
        %v1990 = vpop.f32.mrb[0].mxu0
        %1991 = vmatprep.mubr.f32.mxu0 0.0
        %1992 = vmatmul.mubr.f32.gmra.mrb[0].mxu0 %v1892
        %v1993 = vpop.f32.mrb[0].mxu0
        %v1994 = vadd.f32 0.0, %v1993
        %v1995 = vpop.f32.mrb[0].mxu0
        %1996 = vmatprep.mubr.f32.mxu0 0.0
        %1997 = vmatmul.mubr.f32.gmra.mrb[0].mxu0 %v1895
        %v1998 = vpop.f32.mrb[0].mxu0
        %v1999 = vadd.f32 0.0, %v1998
        %v2000 = vpop.f32.mrb[0].mxu0
        %2001 = vdwg.mxu0
        %v2002 = vmul.f32 %v1964, %v1516
        %v2003 = vmul.f32 %v1969, %v1519
        %v2004 = vmul.f32 %v1974, %v1524
        %v2005 = vmul.f32 %v1979, %v1527
        %v2006 = vmul.f32 %v1984, %v1532
        %v2007 = vmul.f32 %v1989, %v1535
        %v2008 = vmul.f32 %v1994, %v1540
        %v2009 = vmul.f32 %v1999, %v1543
        %v2010 = vpack.c.bf16 %v2003, %v2002
        %v2011 = vpack.c.bf16 %v2005, %v2004
        %v2012 = vpack.c.bf16 %v2007, %v2006
        %v2013 = vpack.c.bf16 %v2009, %v2008
        %v2014 = vld [vmem:[%s29] sm:$0xf]
        %v2015 = vld [vmem:[%s29 + $0x4] sm:$0xf]
        %v2016 = vld [vmem:[%s29 + $0x8] sm:$0xf]
        %v2017 = vld [vmem:[%s29 + $0xc] sm:$0xf]
        %v2018 = vld [vmem:[%s29 + $0x10] sm:$0xf]
        %v2019 = vld [vmem:[%s29 + $0x14] sm:$0xf]
        %v2020 = vld [vmem:[%s29 + $0x18] sm:$0xf]
        %v2021 = vld [vmem:[%s29 + $0x1c] sm:$0xf]
        %v2022 = vld [vmem:[%s29 + $0x20] sm:$0xf]
        %v2023 = vld [vmem:[%s29 + $0x24] sm:$0xf]
        %v2024 = vld [vmem:[%s29 + $0x28] sm:$0xf]
        %v2025 = vld [vmem:[%s29 + $0x2c] sm:$0xf]
        %v2026 = vld [vmem:[%s29 + $0x30] sm:$0xf]
        %v2027 = vld [vmem:[%s29 + $0x34] sm:$0xf]
        %v2028 = vld [vmem:[%s29 + $0x38] sm:$0xf]
        %v2029 = vld [vmem:[%s29 + $0x3c] sm:$0xf]
        %v2030 = vld [vmem:[%s31] sm:$0x1]
        %v2032 = vlaneseq
        %v2033 = vshrl.u32 %v2032, 7
        %v2034 = vsub.s32 0, %v2033
        %v2035 = vrot.slane %v2030, %v2034
        %v2053 = vunpack.c.l.b16 %v2014
        %v2054 = vunpack.c.l.b16 %v2015
        %v2055 = vunpack.c.l.b16 %v2016
        %v2056 = vunpack.c.l.b16 %v2017
        %v2057 = vunpack.c.l.b16 %v2018
        %v2058 = vunpack.c.l.b16 %v2019
        %v2059 = vunpack.c.l.b16 %v2020
        %v2060 = vunpack.c.l.b16 %v2021
        %v2061 = vunpack.c.l.b16 %v2022
        %v2062 = vunpack.c.l.b16 %v2023
        %v2063 = vunpack.c.l.b16 %v2024
        %v2064 = vunpack.c.l.b16 %v2025
        %v2065 = vunpack.c.l.b16 %v2026
        %v2066 = vunpack.c.l.b16 %v2027
        %v2067 = vunpack.c.l.b16 %v2028
        %v2068 = vunpack.c.l.b16 %v2029
        %v2069 = vpack.c.b16 %v2054, %v2053
        %v2070 = vpack.c.b16 %v2056, %v2055
        %v2071 = vpack.c.b16 %v2058, %v2057
        %v2072 = vpack.c.b16 %v2060, %v2059
        %v2073 = vpack.c.b16 %v2062, %v2061
        %v2074 = vpack.c.b16 %v2064, %v2063
        %v2075 = vpack.c.b16 %v2066, %v2065
        %v2076 = vpack.c.b16 %v2068, %v2067
        %2085 = vmatprep.subr.bf16.mxu0 0
        %2086 = vmatpush1.bf16.msra.mxu0 %v2069
        %2087 = vmatprep.subr.bf16.mxu0 0
        %2088 = vmatpush1.bf16.msra.mxu0 %v2070
        %2089 = vmatprep.subr.bf16.mxu0 0
        %2090 = vmatpush1.bf16.msra.mxu0 %v2071
        %2091 = vmatprep.subr.bf16.mxu0 0
        %2092 = vmatpush1.bf16.msra.mxu0 %v2072
        %2093 = vmatprep.subr.bf16.mxu0 0
        %2094 = vmatpush1.bf16.msra.mxu0 %v2073
        %2095 = vmatprep.subr.bf16.mxu0 0
        %2096 = vmatpush1.bf16.msra.mxu0 %v2074
        %2097 = vmatprep.subr.bf16.mxu0 0
        %2098 = vmatpush1.bf16.msra.mxu0 %v2075
        %2099 = vmatprep.subr.bf16.mxu0 0
        %2100 = vmatpush1.bf16.msra.mxu0 %v2076
        %2101 = vmatprep.subr.bf16.mxu0 0
        %2102 = vmatpush1.bf16.msra.mxu0 0
        %2103 = vmatprep.subr.bf16.mxu0 0
        %2104 = vmatpush1.bf16.msra.mxu0 0
        %2105 = vmatprep.subr.bf16.mxu0 0
        %2106 = vmatpush1.bf16.msra.mxu0 0
        %2107 = vmatprep.subr.bf16.mxu0 0
        %2108 = vmatpush1.bf16.msra.mxu0 0
        %2109 = vmatprep.subr.bf16.mxu0 0
        %2110 = vmatpush1.bf16.msra.mxu0 0
        %2111 = vmatprep.subr.bf16.mxu0 0
        %2112 = vmatpush1.bf16.msra.mxu0 0
        %2113 = vmatprep.subr.bf16.mxu0 0
        %2114 = vmatpush1.bf16.msra.mxu0 0
        %2115 = vmatprep.subr.bf16.mxu0 0
        %2116 = vmatpush1.bf16.msra.mxu0 0
        %2117 = vmatprep.mubr.bf16.mxu0 0
        %2118 = vmatmul.mubr.bf16.gmra.mrb[0].mxu0 %v2010
        %v2119 = vpop.f32.mrb[0].mxu0
        %v2120 = vadd.f32 %v2035, %v2119
        %v2121 = vpop.f32.mrb[0].mxu0
        %v2122 = vpop.f32.mrb[0].mxu0
        %v2123 = vadd.f32 %v2035, %v2122
        %v2124 = vpop.f32.mrb[0].mxu0
        %2125 = vmatprep.mubr.bf16.mxu0 0
        %2126 = vmatmul.mubr.bf16.gmra.mrb[0].mxu0 %v2011
        %v2127 = vpop.f32.mrb[0].mxu0
        %v2128 = vadd.f32 %v2035, %v2127
        %v2129 = vpop.f32.mrb[0].mxu0
        %v2130 = vpop.f32.mrb[0].mxu0
        %v2131 = vadd.f32 %v2035, %v2130
        %v2132 = vpop.f32.mrb[0].mxu0
        %2133 = vmatprep.mubr.bf16.mxu0 0
        %2134 = vmatmul.mubr.bf16.gmra.mrb[0].mxu0 %v2012
        %v2135 = vpop.f32.mrb[0].mxu0
        %v2136 = vadd.f32 %v2035, %v2135
        %v2137 = vpop.f32.mrb[0].mxu0
        %v2138 = vpop.f32.mrb[0].mxu0
        %v2139 = vadd.f32 %v2035, %v2138
        %v2140 = vpop.f32.mrb[0].mxu0
        %2141 = vmatprep.mubr.bf16.mxu0 0
        %2142 = vmatmul.mubr.bf16.gmra.mrb[0].mxu0 %v2013
        %v2143 = vpop.f32.mrb[0].mxu0
        %v2144 = vadd.f32 %v2035, %v2143
        %v2145 = vpop.f32.mrb[0].mxu0
        %v2146 = vpop.f32.mrb[0].mxu0
        %v2147 = vadd.f32 %v2035, %v2146
        %v2148 = vpop.f32.mrb[0].mxu0
        %2149 = vdwg.mxu0
        %v2150 = vadd.f32 %v1227, %v2120
        %v2151 = vadd.f32 %v1232, %v2123
        %v2152 = vadd.f32 %v1237, %v2128
        %v2153 = vadd.f32 %v1242, %v2131
        %v2154 = vadd.f32 %v1247, %v2136
        %v2155 = vadd.f32 %v1252, %v2139
        %v2156 = vadd.f32 %v1257, %v2144
        %v2157 = vadd.f32 %v1262, %v2147
        %v2158 = vld [vmem:[%s33] sm:$0xff]
        %v2159 = vld [vmem:[%s33 + $0x8] sm:$0xff]
        %v2160 = vld [vmem:[%s33 + $0x10] sm:$0xff]
        %v2161 = vld [vmem:[%s33 + $0x18] sm:$0xff]
        %v2163 = vsel %vm1292, %v2150, 0
        %v2166 = vsel %vm1292, %v2151, 0
        %v2169 = vsel %vm1292, %v2152, 0
        %v2172 = vsel %vm1292, %v2153, 0
        %v2175 = vsel %vm1292, %v2154, 0
        %v2178 = vsel %vm1292, %v2155, 0
        %v2181 = vsel %vm1292, %v2156, 0
        %v2184 = vsel %vm1292, %v2157, 0
        %2186 = vmatprep.subr.mxu0 0.0
        %2187 = vmatpush1.msra.mxu0 %v2158
        %2188 = vmatprep.subr.mxu0 0.0
        %2189 = vmatpush1.msra.mxu0 %v2159
        %2190 = vmatprep.subr.mxu0 0.0
        %2191 = vmatpush1.msra.mxu0 %v2160
        %2192 = vmatprep.subr.mxu0 0.0
        %2193 = vmatpush1.msra.mxu0 %v2161
        %2194 = vmatprep.subr.mxu0 0.0
        %2195 = vmatpush1.msra.mxu0 0.0
        %2196 = vmatprep.subr.mxu0 0.0
        %2197 = vmatpush1.msra.mxu0 0.0
        %2198 = vmatprep.subr.mxu0 0.0
        %2199 = vmatpush1.msra.mxu0 0.0
        %2200 = vmatprep.subr.mxu0 0.0
        %2201 = vmatpush1.msra.mxu0 0.0
        %2202 = vmatprep.subr.mxu0 0.0
        %2203 = vmatpush1.msra.mxu0 0.0
        %2204 = vmatprep.subr.mxu0 0.0
        %2205 = vmatpush1.msra.mxu0 0.0
        %2206 = vmatprep.subr.mxu0 0.0
        %2207 = vmatpush1.msra.mxu0 0.0
        %2208 = vmatprep.subr.mxu0 0.0
        %2209 = vmatpush1.msra.mxu0 0.0
        %2210 = vmatprep.subr.mxu0 0.0
        %2211 = vmatpush1.msra.mxu0 0.0
        %2212 = vmatprep.subr.mxu0 0.0
        %2213 = vmatpush1.msra.mxu0 0.0
        %2214 = vmatprep.subr.mxu0 0.0
        %2215 = vmatpush1.msra.mxu0 0.0
        %2216 = vmatprep.subr.mxu0 0.0
        %2217 = vmatpush1.msra.mxu0 0.0
        %2218 = vmatprep.subr.mxu0 0.0
        %2219 = vmatpush1.msra.mxu0 0.0
        %2220 = vmatprep.subr.mxu0 0.0
        %2221 = vmatpush1.msra.mxu0 0.0
        %2222 = vmatprep.subr.mxu0 0.0
        %2223 = vmatpush1.msra.mxu0 0.0
        %2224 = vmatprep.subr.mxu0 0.0
        %2225 = vmatpush1.msra.mxu0 0.0
        %2226 = vmatprep.subr.mxu0 0.0
        %2227 = vmatpush1.msra.mxu0 0.0
        %2228 = vmatprep.subr.mxu0 0.0
        %2229 = vmatpush1.msra.mxu0 0.0
        %2230 = vmatprep.subr.mxu0 0.0
        %2231 = vmatpush1.msra.mxu0 0.0
        %2232 = vmatprep.subr.mxu0 0.0
        %2233 = vmatpush1.msra.mxu0 0.0
        %2234 = vmatprep.subr.mxu0 0.0
        %2235 = vmatpush1.msra.mxu0 0.0
        %2236 = vmatprep.subr.mxu0 0.0
        %2237 = vmatpush1.msra.mxu0 0.0
        %2238 = vmatprep.subr.mxu0 0.0
        %2239 = vmatpush1.msra.mxu0 0.0
        %2240 = vmatprep.subr.mxu0 0.0
        %2241 = vmatpush1.msra.mxu0 0.0
        %2242 = vmatprep.subr.mxu0 0.0
        %2243 = vmatpush1.msra.mxu0 0.0
        %2244 = vmatprep.subr.mxu0 0.0
        %2245 = vmatpush1.msra.mxu0 0.0
        %2246 = vmatprep.subr.mxu0 0.0
        %2247 = vmatpush1.msra.mxu0 0.0
        %2248 = vmatprep.subr.mxu0 0.0
        %2249 = vmatpush1.msra.mxu0 0.0
        %2250 = vmatprep.mubr.f32.mxu0 0.0
        %2251 = vmatmul.mubr.f32.gmra.mrb[0].mxu0 %v2163
        %v2252 = vpop.f32.mrb[0].mxu0
        %v2253 = vadd.f32 0.0, %v2252
        %v2254 = vpop.f32.mrb[0].mxu0
        %2255 = vmatprep.mubr.f32.mxu0 0.0
        %2256 = vmatmul.mubr.f32.gmra.mrb[0].mxu0 %v2166
        %v2257 = vpop.f32.mrb[0].mxu0
        %v2258 = vadd.f32 0.0, %v2257
        %v2259 = vpop.f32.mrb[0].mxu0
        %2260 = vmatprep.mubr.f32.mxu0 0.0
        %2261 = vmatmul.mubr.f32.gmra.mrb[0].mxu0 %v2169
        %v2262 = vpop.f32.mrb[0].mxu0
        %v2263 = vadd.f32 0.0, %v2262
        %v2264 = vpop.f32.mrb[0].mxu0
        %2265 = vmatprep.mubr.f32.mxu0 0.0
        %2266 = vmatmul.mubr.f32.gmra.mrb[0].mxu0 %v2172
        %v2267 = vpop.f32.mrb[0].mxu0
        %v2268 = vadd.f32 0.0, %v2267
        %v2269 = vpop.f32.mrb[0].mxu0
        %2270 = vmatprep.mubr.f32.mxu0 0.0
        %2271 = vmatmul.mubr.f32.gmra.mrb[0].mxu0 %v2175
        %v2272 = vpop.f32.mrb[0].mxu0
        %v2273 = vadd.f32 0.0, %v2272
        %v2274 = vpop.f32.mrb[0].mxu0
        %2275 = vmatprep.mubr.f32.mxu0 0.0
        %2276 = vmatmul.mubr.f32.gmra.mrb[0].mxu0 %v2178
        %v2277 = vpop.f32.mrb[0].mxu0
        %v2278 = vadd.f32 0.0, %v2277
        %v2279 = vpop.f32.mrb[0].mxu0
        %2280 = vmatprep.mubr.f32.mxu0 0.0
        %2281 = vmatmul.mubr.f32.gmra.mrb[0].mxu0 %v2181
        %v2282 = vpop.f32.mrb[0].mxu0
        %v2283 = vadd.f32 0.0, %v2282
        %v2284 = vpop.f32.mrb[0].mxu0
        %2285 = vmatprep.mubr.f32.mxu0 0.0
        %2286 = vmatmul.mubr.f32.gmra.mrb[0].mxu0 %v2184
        %v2287 = vpop.f32.mrb[0].mxu0
        %v2288 = vadd.f32 0.0, %v2287
        %v2289 = vpop.f32.mrb[0].mxu0
        %2290 = vdwg.mxu0
        %v2291 = vsub.f32 %v2150, %v2253
        %v2292 = vsub.f32 %v2151, %v2258
        %v2293 = vsub.f32 %v2152, %v2263
        %v2294 = vsub.f32 %v2153, %v2268
        %v2295 = vsub.f32 %v2154, %v2273
        %v2296 = vsub.f32 %v2155, %v2278
        %v2297 = vsub.f32 %v2156, %v2283
        %v2298 = vsub.f32 %v2157, %v2288
        %v2299 = vmul.f32 %v2291, %v2291
        %v2300 = vmul.f32 %v2292, %v2292
        %v2301 = vmul.f32 %v2293, %v2293
        %v2302 = vmul.f32 %v2294, %v2294
        %v2303 = vmul.f32 %v2295, %v2295
        %v2304 = vmul.f32 %v2296, %v2296
        %v2305 = vmul.f32 %v2297, %v2297
        %v2306 = vmul.f32 %v2298, %v2298
        %v2308 = vsel %vm1292, %v2299, 0
        %v2311 = vsel %vm1292, %v2300, 0
        %v2314 = vsel %vm1292, %v2301, 0
        %v2317 = vsel %vm1292, %v2302, 0
        %v2320 = vsel %vm1292, %v2303, 0
        %v2323 = vsel %vm1292, %v2304, 0
        %v2326 = vsel %vm1292, %v2305, 0
        %v2329 = vsel %vm1292, %v2306, 0
        %2331 = vmatprep.subr.mxu0 0.0
        %2332 = vmatpush1.msra.mxu0 %v2158
        %2333 = vmatprep.subr.mxu0 0.0
        %2334 = vmatpush1.msra.mxu0 %v2159
        %2335 = vmatprep.subr.mxu0 0.0
        %2336 = vmatpush1.msra.mxu0 %v2160
        %2337 = vmatprep.subr.mxu0 0.0
        %2338 = vmatpush1.msra.mxu0 %v2161
        %2339 = vmatprep.subr.mxu0 0.0
        %2340 = vmatpush1.msra.mxu0 0.0
        %2341 = vmatprep.subr.mxu0 0.0
        %2342 = vmatpush1.msra.mxu0 0.0
        %2343 = vmatprep.subr.mxu0 0.0
        %2344 = vmatpush1.msra.mxu0 0.0
        %2345 = vmatprep.subr.mxu0 0.0
        %2346 = vmatpush1.msra.mxu0 0.0
        %2347 = vmatprep.subr.mxu0 0.0
        %2348 = vmatpush1.msra.mxu0 0.0
        %2349 = vmatprep.subr.mxu0 0.0
        %2350 = vmatpush1.msra.mxu0 0.0
        %2351 = vmatprep.subr.mxu0 0.0
        %2352 = vmatpush1.msra.mxu0 0.0
        %2353 = vmatprep.subr.mxu0 0.0
        %2354 = vmatpush1.msra.mxu0 0.0
        %2355 = vmatprep.subr.mxu0 0.0
        %2356 = vmatpush1.msra.mxu0 0.0
        %2357 = vmatprep.subr.mxu0 0.0
        %2358 = vmatpush1.msra.mxu0 0.0
        %2359 = vmatprep.subr.mxu0 0.0
        %2360 = vmatpush1.msra.mxu0 0.0
        %2361 = vmatprep.subr.mxu0 0.0
        %2362 = vmatpush1.msra.mxu0 0.0
        %2363 = vmatprep.subr.mxu0 0.0
        %2364 = vmatpush1.msra.mxu0 0.0
        %2365 = vmatprep.subr.mxu0 0.0
        %2366 = vmatpush1.msra.mxu0 0.0
        %2367 = vmatprep.subr.mxu0 0.0
        %2368 = vmatpush1.msra.mxu0 0.0
        %2369 = vmatprep.subr.mxu0 0.0
        %2370 = vmatpush1.msra.mxu0 0.0
        %2371 = vmatprep.subr.mxu0 0.0
        %2372 = vmatpush1.msra.mxu0 0.0
        %2373 = vmatprep.subr.mxu0 0.0
        %2374 = vmatpush1.msra.mxu0 0.0
        %2375 = vmatprep.subr.mxu0 0.0
        %2376 = vmatpush1.msra.mxu0 0.0
        %2377 = vmatprep.subr.mxu0 0.0
        %2378 = vmatpush1.msra.mxu0 0.0
        %2379 = vmatprep.subr.mxu0 0.0
        %2380 = vmatpush1.msra.mxu0 0.0
        %2381 = vmatprep.subr.mxu0 0.0
        %2382 = vmatpush1.msra.mxu0 0.0
        %2383 = vmatprep.subr.mxu0 0.0
        %2384 = vmatpush1.msra.mxu0 0.0
        %2385 = vmatprep.subr.mxu0 0.0
        %2386 = vmatpush1.msra.mxu0 0.0
        %2387 = vmatprep.subr.mxu0 0.0
        %2388 = vmatpush1.msra.mxu0 0.0
        %2389 = vmatprep.subr.mxu0 0.0
        %2390 = vmatpush1.msra.mxu0 0.0
        %2391 = vmatprep.subr.mxu0 0.0
        %2392 = vmatpush1.msra.mxu0 0.0
        %2393 = vmatprep.subr.mxu0 0.0
        %2394 = vmatpush1.msra.mxu0 0.0
        %2395 = vmatprep.mubr.f32.mxu0 0.0
        %2396 = vmatmul.mubr.f32.gmra.mrb[0].mxu0 %v2308
        %v2397 = vpop.f32.mrb[0].mxu0
        %v2398 = vadd.f32 1e-05, %v2397
        %v2399 = vpop.f32.mrb[0].mxu0
        %2400 = vmatprep.mubr.f32.mxu0 0.0
        %2401 = vmatmul.mubr.f32.gmra.mrb[0].mxu0 %v2311
        %v2402 = vpop.f32.mrb[0].mxu0
        %v2403 = vadd.f32 1e-05, %v2402
        %v2404 = vpop.f32.mrb[0].mxu0
        %2405 = vmatprep.mubr.f32.mxu0 0.0
        %2406 = vmatmul.mubr.f32.gmra.mrb[0].mxu0 %v2314
        %v2407 = vpop.f32.mrb[0].mxu0
        %v2408 = vadd.f32 1e-05, %v2407
        %v2409 = vpop.f32.mrb[0].mxu0
        %2410 = vmatprep.mubr.f32.mxu0 0.0
        %2411 = vmatmul.mubr.f32.gmra.mrb[0].mxu0 %v2317
        %v2412 = vpop.f32.mrb[0].mxu0
        %v2413 = vadd.f32 1e-05, %v2412
        %v2414 = vpop.f32.mrb[0].mxu0
        %2415 = vmatprep.mubr.f32.mxu0 0.0
        %2416 = vmatmul.mubr.f32.gmra.mrb[0].mxu0 %v2320
        %v2417 = vpop.f32.mrb[0].mxu0
        %v2418 = vadd.f32 1e-05, %v2417
        %v2419 = vpop.f32.mrb[0].mxu0
        %2420 = vmatprep.mubr.f32.mxu0 0.0
        %2421 = vmatmul.mubr.f32.gmra.mrb[0].mxu0 %v2323
        %v2422 = vpop.f32.mrb[0].mxu0
        %v2423 = vadd.f32 1e-05, %v2422
        %v2424 = vpop.f32.mrb[0].mxu0
        %2425 = vmatprep.mubr.f32.mxu0 0.0
        %2426 = vmatmul.mubr.f32.gmra.mrb[0].mxu0 %v2326
        %v2427 = vpop.f32.mrb[0].mxu0
        %v2428 = vadd.f32 1e-05, %v2427
        %v2429 = vpop.f32.mrb[0].mxu0
        %2430 = vmatprep.mubr.f32.mxu0 0.0
        %2431 = vmatmul.mubr.f32.gmra.mrb[0].mxu0 %v2329
        %v2432 = vpop.f32.mrb[0].mxu0
        %v2433 = vadd.f32 1e-05, %v2432
        %v2434 = vpop.f32.mrb[0].mxu0
        %2435 = vdwg.mxu0
        %v2436 = vrsqrt.pop %v2398
        %v2437 = vrsqrt.pop %v2403
        %v2438 = vrsqrt.pop %v2408
        %v2439 = vrsqrt.pop %v2413
        %v2440 = vrsqrt.pop %v2418
        %v2441 = vrsqrt.pop %v2423
        %v2442 = vrsqrt.pop %v2428
        %v2443 = vrsqrt.pop %v2433
        %v2444 = vmul.f32 %v2291, %v2436
        %v2445 = vmul.f32 %v2292, %v2437
        %v2446 = vmul.f32 %v2293, %v2438
        %v2447 = vmul.f32 %v2294, %v2439
        %v2448 = vmul.f32 %v2295, %v2440
        %v2449 = vmul.f32 %v2296, %v2441
        %v2450 = vmul.f32 %v2297, %v2442
        %v2451 = vmul.f32 %v2298, %v2443
        %v2452 = vld [vmem:[%s35] sm:$0x1]
        %v2454 = vlaneseq
        %v2455 = vshrl.u32 %v2454, 7
        %v2456 = vsub.s32 0, %v2455
        %v2457 = vrot.slane %v2452, %v2456
        %v2459 = vmul.f32 %v2444, %v2457
        %v2460 = vmul.f32 %v2445, %v2457
        %v2461 = vmul.f32 %v2446, %v2457
        %v2462 = vmul.f32 %v2447, %v2457
        %v2463 = vmul.f32 %v2448, %v2457
        %v2464 = vmul.f32 %v2449, %v2457
        %v2465 = vmul.f32 %v2450, %v2457
        %v2466 = vmul.f32 %v2451, %v2457
        %v2467 = vld [vmem:[%s37] sm:$0x1]
        %v2469 = vlaneseq
        %v2470 = vshrl.u32 %v2469, 7
        %v2471 = vsub.s32 0, %v2470
        %v2472 = vrot.slane %v2467, %v2471
        %v2474 = vadd.f32 %v2459, %v2472
        %v2475 = vadd.f32 %v2460, %v2472
        %v2476 = vadd.f32 %v2461, %v2472
        %v2477 = vadd.f32 %v2462, %v2472
        %v2478 = vadd.f32 %v2463, %v2472
        %v2479 = vadd.f32 %v2464, %v2472
        %v2480 = vadd.f32 %v2465, %v2472
        %v2481 = vadd.f32 %v2466, %v2472
        %v2482 = vpack.c.bf16 %v2475, %v2474
        %v2483 = vpack.c.bf16 %v2477, %v2476
        %v2484 = vpack.c.bf16 %v2479, %v2478
        %v2485 = vpack.c.bf16 %v2481, %v2480
        %v2486 = vld [vmem:[%s39] sm:$0xf]
        %v2487 = vld [vmem:[%s39 + $0x4] sm:$0xf]
        %v2488 = vld [vmem:[%s39 + $0x8] sm:$0xf]
        %v2489 = vld [vmem:[%s39 + $0xc] sm:$0xf]
        %v2490 = vld [vmem:[%s41] sm:$0x1]
        %v2492 = vlaneseq
        %v2493 = vshrl.u32 %v2492, 7
        %v2494 = vsub.s32 0, %v2493
        %v2495 = vrot.slane %v2490, %v2494
        %v2501 = vunpack.c.l.b16 %v2486
        %v2502 = vunpack.c.l.b16 %v2487
        %v2503 = vunpack.c.l.b16 %v2488
        %v2504 = vunpack.c.l.b16 %v2489
        %v2505 = vpack.c.b16 %v2502, %v2501
        %v2506 = vpack.c.b16 %v2504, %v2503
        %v2510 = vsel %vm1292, %v2482, 0
        %v2513 = vsel %vm1292, %v2483, 0
        %v2516 = vsel %vm1292, %v2484, 0
        %v2519 = vsel %vm1292, %v2485, 0
        %2521 = vmatprep.subr.bf16.mxu0 0
        %2522 = vmatpush1.bf16.msra.mxu0 %v2505
        %2523 = vmatprep.subr.bf16.mxu0 0
        %2524 = vmatpush1.bf16.msra.mxu0 %v2506
        %2525 = vmatprep.subr.bf16.mxu0 0
        %2526 = vmatpush1.bf16.msra.mxu0 0
        %2527 = vmatprep.subr.bf16.mxu0 0
        %2528 = vmatpush1.bf16.msra.mxu0 0
        %2529 = vmatprep.subr.bf16.mxu0 0
        %2530 = vmatpush1.bf16.msra.mxu0 0
        %2531 = vmatprep.subr.bf16.mxu0 0
        %2532 = vmatpush1.bf16.msra.mxu0 0
        %2533 = vmatprep.subr.bf16.mxu0 0
        %2534 = vmatpush1.bf16.msra.mxu0 0
        %2535 = vmatprep.subr.bf16.mxu0 0
        %2536 = vmatpush1.bf16.msra.mxu0 0
        %2537 = vmatprep.subr.bf16.mxu0 0
        %2538 = vmatpush1.bf16.msra.mxu0 0
        %2539 = vmatprep.subr.bf16.mxu0 0
        %2540 = vmatpush1.bf16.msra.mxu0 0
        %2541 = vmatprep.subr.bf16.mxu0 0
        %2542 = vmatpush1.bf16.msra.mxu0 0
        %2543 = vmatprep.subr.bf16.mxu0 0
        %2544 = vmatpush1.bf16.msra.mxu0 0
        %2545 = vmatprep.subr.bf16.mxu0 0
        %2546 = vmatpush1.bf16.msra.mxu0 0
        %2547 = vmatprep.subr.bf16.mxu0 0
        %2548 = vmatpush1.bf16.msra.mxu0 0
        %2549 = vmatprep.subr.bf16.mxu0 0
        %2550 = vmatpush1.bf16.msra.mxu0 0
        %2551 = vmatprep.subr.bf16.mxu0 0
        %2552 = vmatpush1.bf16.msra.mxu0 0
        %2553 = vmatprep.mubr.bf16.mxu0 0
        %2554 = vmatmul.mubr.bf16.gmra.mrb[0].mxu0 %v2510
        %v2555 = vpop.f32.mrb[0].mxu0
        %v2556 = vadd.f32 %v2495, %v2555
        %v2557 = vpop.f32.mrb[0].mxu0
        %v2558 = vpop.f32.mrb[0].mxu0
        %v2559 = vadd.f32 %v2495, %v2558
        %v2560 = vpop.f32.mrb[0].mxu0
        %2561 = vmatprep.mubr.bf16.mxu0 0
        %2562 = vmatmul.mubr.bf16.gmra.mrb[0].mxu0 %v2513
        %v2563 = vpop.f32.mrb[0].mxu0
        %v2564 = vadd.f32 %v2495, %v2563
        %v2565 = vpop.f32.mrb[0].mxu0
        %v2566 = vpop.f32.mrb[0].mxu0
        %v2567 = vadd.f32 %v2495, %v2566
        %v2568 = vpop.f32.mrb[0].mxu0
        %2569 = vmatprep.mubr.bf16.mxu0 0
        %2570 = vmatmul.mubr.bf16.gmra.mrb[0].mxu0 %v2516
        %v2571 = vpop.f32.mrb[0].mxu0
        %v2572 = vadd.f32 %v2495, %v2571
        %v2573 = vpop.f32.mrb[0].mxu0
        %v2574 = vpop.f32.mrb[0].mxu0
        %v2575 = vadd.f32 %v2495, %v2574
        %v2576 = vpop.f32.mrb[0].mxu0
        %2577 = vmatprep.mubr.bf16.mxu0 0
        %2578 = vmatmul.mubr.bf16.gmra.mrb[0].mxu0 %v2519
        %v2579 = vpop.f32.mrb[0].mxu0
        %v2580 = vadd.f32 %v2495, %v2579
        %v2581 = vpop.f32.mrb[0].mxu0
        %v2582 = vpop.f32.mrb[0].mxu0
        %v2583 = vadd.f32 %v2495, %v2582
        %v2584 = vpop.f32.mrb[0].mxu0
        %2585 = vdwg.mxu0
        %v2586 = vmax.f32 %v2556, 0.0
        %v2587 = vmax.f32 %v2559, 0.0
        %v2588 = vmax.f32 %v2564, 0.0
        %v2589 = vmax.f32 %v2567, 0.0
        %v2590 = vmax.f32 %v2572, 0.0
        %v2591 = vmax.f32 %v2575, 0.0
        %v2592 = vmax.f32 %v2580, 0.0
        %v2593 = vmax.f32 %v2583, 0.0
        %v2594 = vpack.c.bf16 %v2587, %v2586
        %v2595 = vpack.c.bf16 %v2589, %v2588
        %v2596 = vpack.c.bf16 %v2591, %v2590
        %v2597 = vpack.c.bf16 %v2593, %v2592
        %v2598 = vld [vmem:[%s43] sm:$0xf]
        %v2599 = vld [vmem:[%s43 + $0x4] sm:$0xf]
        %v2600 = vld [vmem:[%s43 + $0x8] sm:$0xf]
        %v2601 = vld [vmem:[%s43 + $0xc] sm:$0xf]
        %v2602 = vld [vmem:[%s43 + $0x10] sm:$0xf]
        %v2603 = vld [vmem:[%s43 + $0x14] sm:$0xf]
        %v2604 = vld [vmem:[%s43 + $0x18] sm:$0xf]
        %v2605 = vld [vmem:[%s43 + $0x1c] sm:$0xf]
        %v2606 = vld [vmem:[%s43 + $0x20] sm:$0xf]
        %v2607 = vld [vmem:[%s43 + $0x24] sm:$0xf]
        %v2608 = vld [vmem:[%s43 + $0x28] sm:$0xf]
        %v2609 = vld [vmem:[%s43 + $0x2c] sm:$0xf]
        %v2610 = vld [vmem:[%s43 + $0x30] sm:$0xf]
        %v2611 = vld [vmem:[%s43 + $0x34] sm:$0xf]
        %v2612 = vld [vmem:[%s43 + $0x38] sm:$0xf]
        %v2613 = vld [vmem:[%s43 + $0x3c] sm:$0xf]
        %v2614 = vld [vmem:[%s45] sm:$0x1]
        %v2616 = vlaneseq
        %v2617 = vshrl.u32 %v2616, 7
        %v2618 = vsub.s32 0, %v2617
        %v2619 = vrot.slane %v2614, %v2618
        %v2637 = vunpack.c.l.b16 %v2598
        %v2638 = vunpack.c.l.b16 %v2599
        %v2639 = vunpack.c.l.b16 %v2600
        %v2640 = vunpack.c.l.b16 %v2601
        %v2641 = vunpack.c.l.b16 %v2602
        %v2642 = vunpack.c.l.b16 %v2603
        %v2643 = vunpack.c.l.b16 %v2604
        %v2644 = vunpack.c.l.b16 %v2605
        %v2645 = vunpack.c.l.b16 %v2606
        %v2646 = vunpack.c.l.b16 %v2607
        %v2647 = vunpack.c.l.b16 %v2608
        %v2648 = vunpack.c.l.b16 %v2609
        %v2649 = vunpack.c.l.b16 %v2610
        %v2650 = vunpack.c.l.b16 %v2611
        %v2651 = vunpack.c.l.b16 %v2612
        %v2652 = vunpack.c.l.b16 %v2613
        %v2653 = vpack.c.b16 %v2638, %v2637
        %v2654 = vpack.c.b16 %v2640, %v2639
        %v2655 = vpack.c.b16 %v2642, %v2641
        %v2656 = vpack.c.b16 %v2644, %v2643
        %v2657 = vpack.c.b16 %v2646, %v2645
        %v2658 = vpack.c.b16 %v2648, %v2647
        %v2659 = vpack.c.b16 %v2650, %v2649
        %v2660 = vpack.c.b16 %v2652, %v2651
        %2669 = vmatprep.subr.bf16.mxu0 0
        %2670 = vmatpush1.bf16.msra.mxu0 %v2653
        %2671 = vmatprep.subr.bf16.mxu0 0
        %2672 = vmatpush1.bf16.msra.mxu0 %v2654
        %2673 = vmatprep.subr.bf16.mxu0 0
        %2674 = vmatpush1.bf16.msra.mxu0 %v2655
        %2675 = vmatprep.subr.bf16.mxu0 0
        %2676 = vmatpush1.bf16.msra.mxu0 %v2656
        %2677 = vmatprep.subr.bf16.mxu0 0
        %2678 = vmatpush1.bf16.msra.mxu0 %v2657
        %2679 = vmatprep.subr.bf16.mxu0 0
        %2680 = vmatpush1.bf16.msra.mxu0 %v2658
        %2681 = vmatprep.subr.bf16.mxu0 0
        %2682 = vmatpush1.bf16.msra.mxu0 %v2659
        %2683 = vmatprep.subr.bf16.mxu0 0
        %2684 = vmatpush1.bf16.msra.mxu0 %v2660
        %2685 = vmatprep.subr.bf16.mxu0 0
        %2686 = vmatpush1.bf16.msra.mxu0 0
        %2687 = vmatprep.subr.bf16.mxu0 0
        %2688 = vmatpush1.bf16.msra.mxu0 0
        %2689 = vmatprep.subr.bf16.mxu0 0
        %2690 = vmatpush1.bf16.msra.mxu0 0
        %2691 = vmatprep.subr.bf16.mxu0 0
        %2692 = vmatpush1.bf16.msra.mxu0 0
        %2693 = vmatprep.subr.bf16.mxu0 0
        %2694 = vmatpush1.bf16.msra.mxu0 0
        %2695 = vmatprep.subr.bf16.mxu0 0
        %2696 = vmatpush1.bf16.msra.mxu0 0
        %2697 = vmatprep.subr.bf16.mxu0 0
        %2698 = vmatpush1.bf16.msra.mxu0 0
        %2699 = vmatprep.subr.bf16.mxu0 0
        %2700 = vmatpush1.bf16.msra.mxu0 0
        %2701 = vmatprep.mubr.bf16.mxu0 0
        %2702 = vmatmul.mubr.bf16.gmra.mrb[0].mxu0 %v2594
        %v2703 = vpop.f32.mrb[0].mxu0
        %v2704 = vadd.f32 %v2619, %v2703
        %v2705 = vpop.f32.mrb[0].mxu0
        %v2706 = vpop.f32.mrb[0].mxu0
        %v2707 = vadd.f32 %v2619, %v2706
        %v2708 = vpop.f32.mrb[0].mxu0
        %2709 = vmatprep.mubr.bf16.mxu0 0
        %2710 = vmatmul.mubr.bf16.gmra.mrb[0].mxu0 %v2595
        %v2711 = vpop.f32.mrb[0].mxu0
        %v2712 = vadd.f32 %v2619, %v2711
        %v2713 = vpop.f32.mrb[0].mxu0
        %v2714 = vpop.f32.mrb[0].mxu0
        %v2715 = vadd.f32 %v2619, %v2714
        %v2716 = vpop.f32.mrb[0].mxu0
        %2717 = vmatprep.mubr.bf16.mxu0 0
        %2718 = vmatmul.mubr.bf16.gmra.mrb[0].mxu0 %v2596
        %v2719 = vpop.f32.mrb[0].mxu0
        %v2720 = vadd.f32 %v2619, %v2719
        %v2721 = vpop.f32.mrb[0].mxu0
        %v2722 = vpop.f32.mrb[0].mxu0
        %v2723 = vadd.f32 %v2619, %v2722
        %v2724 = vpop.f32.mrb[0].mxu0
        %2725 = vmatprep.mubr.bf16.mxu0 0
        %2726 = vmatmul.mubr.bf16.gmra.mrb[0].mxu0 %v2597
        %v2727 = vpop.f32.mrb[0].mxu0
        %v2728 = vadd.f32 %v2619, %v2727
        %v2729 = vpop.f32.mrb[0].mxu0
        %v2730 = vpop.f32.mrb[0].mxu0
        %v2731 = vadd.f32 %v2619, %v2730
        %v2732 = vpop.f32.mrb[0].mxu0
        %2733 = vdwg.mxu0
        %v2734 = vadd.f32 %v2474, %v2704
        %v2735 = vadd.f32 %v2475, %v2707
        %v2736 = vadd.f32 %v2476, %v2712
        %v2737 = vadd.f32 %v2477, %v2715
        %v2738 = vadd.f32 %v2478, %v2720
        %v2739 = vadd.f32 %v2479, %v2723
        %v2740 = vadd.f32 %v2480, %v2728
        %v2741 = vadd.f32 %v2481, %v2731
        %v2743 = vsel %vm1292, %v2734, 0
        %v2746 = vsel %vm1292, %v2735, 0
        %v2749 = vsel %vm1292, %v2736, 0
        %v2752 = vsel %vm1292, %v2737, 0
        %v2755 = vsel %vm1292, %v2738, 0
        %v2758 = vsel %vm1292, %v2739, 0
        %v2761 = vsel %vm1292, %v2740, 0
        %v2764 = vsel %vm1292, %v2741, 0
        %2766 = vmatprep.subr.mxu0 0.0
        %2767 = vmatpush1.msra.mxu0 %v2158
        %2768 = vmatprep.subr.mxu0 0.0
        %2769 = vmatpush1.msra.mxu0 %v2159
        %2770 = vmatprep.subr.mxu0 0.0
        %2771 = vmatpush1.msra.mxu0 %v2160
        %2772 = vmatprep.subr.mxu0 0.0
        %2773 = vmatpush1.msra.mxu0 %v2161
        %2774 = vmatprep.subr.mxu0 0.0
        %2775 = vmatpush1.msra.mxu0 0.0
        %2776 = vmatprep.subr.mxu0 0.0
        %2777 = vmatpush1.msra.mxu0 0.0
        %2778 = vmatprep.subr.mxu0 0.0
        %2779 = vmatpush1.msra.mxu0 0.0
        %2780 = vmatprep.subr.mxu0 0.0
        %2781 = vmatpush1.msra.mxu0 0.0
        %2782 = vmatprep.subr.mxu0 0.0
        %2783 = vmatpush1.msra.mxu0 0.0
        %2784 = vmatprep.subr.mxu0 0.0
        %2785 = vmatpush1.msra.mxu0 0.0
        %2786 = vmatprep.subr.mxu0 0.0
        %2787 = vmatpush1.msra.mxu0 0.0
        %2788 = vmatprep.subr.mxu0 0.0
        %2789 = vmatpush1.msra.mxu0 0.0
        %2790 = vmatprep.subr.mxu0 0.0
        %2791 = vmatpush1.msra.mxu0 0.0
        %2792 = vmatprep.subr.mxu0 0.0
        %2793 = vmatpush1.msra.mxu0 0.0
        %2794 = vmatprep.subr.mxu0 0.0
        %2795 = vmatpush1.msra.mxu0 0.0
        %2796 = vmatprep.subr.mxu0 0.0
        %2797 = vmatpush1.msra.mxu0 0.0
        %2798 = vmatprep.subr.mxu0 0.0
        %2799 = vmatpush1.msra.mxu0 0.0
        %2800 = vmatprep.subr.mxu0 0.0
        %2801 = vmatpush1.msra.mxu0 0.0
        %2802 = vmatprep.subr.mxu0 0.0
        %2803 = vmatpush1.msra.mxu0 0.0
        %2804 = vmatprep.subr.mxu0 0.0
        %2805 = vmatpush1.msra.mxu0 0.0
        %2806 = vmatprep.subr.mxu0 0.0
        %2807 = vmatpush1.msra.mxu0 0.0
        %2808 = vmatprep.subr.mxu0 0.0
        %2809 = vmatpush1.msra.mxu0 0.0
        %2810 = vmatprep.subr.mxu0 0.0
        %2811 = vmatpush1.msra.mxu0 0.0
        %2812 = vmatprep.subr.mxu0 0.0
        %2813 = vmatpush1.msra.mxu0 0.0
        %2814 = vmatprep.subr.mxu0 0.0
        %2815 = vmatpush1.msra.mxu0 0.0
        %2816 = vmatprep.subr.mxu0 0.0
        %2817 = vmatpush1.msra.mxu0 0.0
        %2818 = vmatprep.subr.mxu0 0.0
        %2819 = vmatpush1.msra.mxu0 0.0
        %2820 = vmatprep.subr.mxu0 0.0
        %2821 = vmatpush1.msra.mxu0 0.0
        %2822 = vmatprep.subr.mxu0 0.0
        %2823 = vmatpush1.msra.mxu0 0.0
        %2824 = vmatprep.subr.mxu0 0.0
        %2825 = vmatpush1.msra.mxu0 0.0
        %2826 = vmatprep.subr.mxu0 0.0
        %2827 = vmatpush1.msra.mxu0 0.0
        %2828 = vmatprep.subr.mxu0 0.0
        %2829 = vmatpush1.msra.mxu0 0.0
        %2830 = vmatprep.mubr.f32.mxu0 0.0
        %2831 = vmatmul.mubr.f32.gmra.mrb[0].mxu0 %v2743
        %v2832 = vpop.f32.mrb[0].mxu0
        %v2833 = vadd.f32 0.0, %v2832
        %v2834 = vpop.f32.mrb[0].mxu0
        %2835 = vmatprep.mubr.f32.mxu0 0.0
        %2836 = vmatmul.mubr.f32.gmra.mrb[0].mxu0 %v2746
        %v2837 = vpop.f32.mrb[0].mxu0
        %v2838 = vadd.f32 0.0, %v2837
        %v2839 = vpop.f32.mrb[0].mxu0
        %2840 = vmatprep.mubr.f32.mxu0 0.0
        %2841 = vmatmul.mubr.f32.gmra.mrb[0].mxu0 %v2749
        %v2842 = vpop.f32.mrb[0].mxu0
        %v2843 = vadd.f32 0.0, %v2842
        %v2844 = vpop.f32.mrb[0].mxu0
        %2845 = vmatprep.mubr.f32.mxu0 0.0
        %2846 = vmatmul.mubr.f32.gmra.mrb[0].mxu0 %v2752
        %v2847 = vpop.f32.mrb[0].mxu0
        %v2848 = vadd.f32 0.0, %v2847
        %v2849 = vpop.f32.mrb[0].mxu0
        %2850 = vmatprep.mubr.f32.mxu0 0.0
        %2851 = vmatmul.mubr.f32.gmra.mrb[0].mxu0 %v2755
        %v2852 = vpop.f32.mrb[0].mxu0
        %v2853 = vadd.f32 0.0, %v2852
        %v2854 = vpop.f32.mrb[0].mxu0
        %2855 = vmatprep.mubr.f32.mxu0 0.0
        %2856 = vmatmul.mubr.f32.gmra.mrb[0].mxu0 %v2758
        %v2857 = vpop.f32.mrb[0].mxu0
        %v2858 = vadd.f32 0.0, %v2857
        %v2859 = vpop.f32.mrb[0].mxu0
        %2860 = vmatprep.mubr.f32.mxu0 0.0
        %2861 = vmatmul.mubr.f32.gmra.mrb[0].mxu0 %v2761
        %v2862 = vpop.f32.mrb[0].mxu0
        %v2863 = vadd.f32 0.0, %v2862
        %v2864 = vpop.f32.mrb[0].mxu0
        %2865 = vmatprep.mubr.f32.mxu0 0.0
        %2866 = vmatmul.mubr.f32.gmra.mrb[0].mxu0 %v2764
        %v2867 = vpop.f32.mrb[0].mxu0
        %v2868 = vadd.f32 0.0, %v2867
        %v2869 = vpop.f32.mrb[0].mxu0
        %2870 = vdwg.mxu0
        %v2871 = vsub.f32 %v2734, %v2833
        %v2872 = vsub.f32 %v2735, %v2838
        %v2873 = vsub.f32 %v2736, %v2843
        %v2874 = vsub.f32 %v2737, %v2848
        %v2875 = vsub.f32 %v2738, %v2853
        %v2876 = vsub.f32 %v2739, %v2858
        %v2877 = vsub.f32 %v2740, %v2863
        %v2878 = vsub.f32 %v2741, %v2868
        %v2879 = vmul.f32 %v2871, %v2871
        %v2880 = vmul.f32 %v2872, %v2872
        %v2881 = vmul.f32 %v2873, %v2873
        %v2882 = vmul.f32 %v2874, %v2874
        %v2883 = vmul.f32 %v2875, %v2875
        %v2884 = vmul.f32 %v2876, %v2876
        %v2885 = vmul.f32 %v2877, %v2877
        %v2886 = vmul.f32 %v2878, %v2878
        %v2888 = vsel %vm1292, %v2879, 0
        %v2891 = vsel %vm1292, %v2880, 0
        %v2894 = vsel %vm1292, %v2881, 0
        %v2897 = vsel %vm1292, %v2882, 0
        %v2900 = vsel %vm1292, %v2883, 0
        %v2903 = vsel %vm1292, %v2884, 0
        %v2906 = vsel %vm1292, %v2885, 0
        %v2909 = vsel %vm1292, %v2886, 0
        %2911 = vmatprep.subr.mxu0 0.0
        %2912 = vmatpush1.msra.mxu0 %v2158
        %2913 = vmatprep.subr.mxu0 0.0
        %2914 = vmatpush1.msra.mxu0 %v2159
        %2915 = vmatprep.subr.mxu0 0.0
        %2916 = vmatpush1.msra.mxu0 %v2160
        %2917 = vmatprep.subr.mxu0 0.0
        %2918 = vmatpush1.msra.mxu0 %v2161
        %2919 = vmatprep.subr.mxu0 0.0
        %2920 = vmatpush1.msra.mxu0 0.0
        %2921 = vmatprep.subr.mxu0 0.0
        %2922 = vmatpush1.msra.mxu0 0.0
        %2923 = vmatprep.subr.mxu0 0.0
        %2924 = vmatpush1.msra.mxu0 0.0
        %2925 = vmatprep.subr.mxu0 0.0
        %2926 = vmatpush1.msra.mxu0 0.0
        %2927 = vmatprep.subr.mxu0 0.0
        %2928 = vmatpush1.msra.mxu0 0.0
        %2929 = vmatprep.subr.mxu0 0.0
        %2930 = vmatpush1.msra.mxu0 0.0
        %2931 = vmatprep.subr.mxu0 0.0
        %2932 = vmatpush1.msra.mxu0 0.0
        %2933 = vmatprep.subr.mxu0 0.0
        %2934 = vmatpush1.msra.mxu0 0.0
        %2935 = vmatprep.subr.mxu0 0.0
        %2936 = vmatpush1.msra.mxu0 0.0
        %2937 = vmatprep.subr.mxu0 0.0
        %2938 = vmatpush1.msra.mxu0 0.0
        %2939 = vmatprep.subr.mxu0 0.0
        %2940 = vmatpush1.msra.mxu0 0.0
        %2941 = vmatprep.subr.mxu0 0.0
        %2942 = vmatpush1.msra.mxu0 0.0
        %2943 = vmatprep.subr.mxu0 0.0
        %2944 = vmatpush1.msra.mxu0 0.0
        %2945 = vmatprep.subr.mxu0 0.0
        %2946 = vmatpush1.msra.mxu0 0.0
        %2947 = vmatprep.subr.mxu0 0.0
        %2948 = vmatpush1.msra.mxu0 0.0
        %2949 = vmatprep.subr.mxu0 0.0
        %2950 = vmatpush1.msra.mxu0 0.0
        %2951 = vmatprep.subr.mxu0 0.0
        %2952 = vmatpush1.msra.mxu0 0.0
        %2953 = vmatprep.subr.mxu0 0.0
        %2954 = vmatpush1.msra.mxu0 0.0
        %2955 = vmatprep.subr.mxu0 0.0
        %2956 = vmatpush1.msra.mxu0 0.0
        %2957 = vmatprep.subr.mxu0 0.0
        %2958 = vmatpush1.msra.mxu0 0.0
        %2959 = vmatprep.subr.mxu0 0.0
        %2960 = vmatpush1.msra.mxu0 0.0
        %2961 = vmatprep.subr.mxu0 0.0
        %2962 = vmatpush1.msra.mxu0 0.0
        %2963 = vmatprep.subr.mxu0 0.0
        %2964 = vmatpush1.msra.mxu0 0.0
        %2965 = vmatprep.subr.mxu0 0.0
        %2966 = vmatpush1.msra.mxu0 0.0
        %2967 = vmatprep.subr.mxu0 0.0
        %2968 = vmatpush1.msra.mxu0 0.0
        %2969 = vmatprep.subr.mxu0 0.0
        %2970 = vmatpush1.msra.mxu0 0.0
        %2971 = vmatprep.subr.mxu0 0.0
        %2972 = vmatpush1.msra.mxu0 0.0
        %2973 = vmatprep.subr.mxu0 0.0
        %2974 = vmatpush1.msra.mxu0 0.0
        %2975 = vmatprep.mubr.f32.mxu0 0.0
        %2976 = vmatmul.mubr.f32.gmra.mrb[0].mxu0 %v2888
        %v2977 = vpop.f32.mrb[0].mxu0
        %v2978 = vadd.f32 1e-05, %v2977
        %v2979 = vpop.f32.mrb[0].mxu0
        %2980 = vmatprep.mubr.f32.mxu0 0.0
        %2981 = vmatmul.mubr.f32.gmra.mrb[0].mxu0 %v2891
        %v2982 = vpop.f32.mrb[0].mxu0
        %v2983 = vadd.f32 1e-05, %v2982
        %v2984 = vpop.f32.mrb[0].mxu0
        %2985 = vmatprep.mubr.f32.mxu0 0.0
        %2986 = vmatmul.mubr.f32.gmra.mrb[0].mxu0 %v2894
        %v2987 = vpop.f32.mrb[0].mxu0
        %v2988 = vadd.f32 1e-05, %v2987
        %v2989 = vpop.f32.mrb[0].mxu0
        %2990 = vmatprep.mubr.f32.mxu0 0.0
        %2991 = vmatmul.mubr.f32.gmra.mrb[0].mxu0 %v2897
        %v2992 = vpop.f32.mrb[0].mxu0
        %v2993 = vadd.f32 1e-05, %v2992
        %v2994 = vpop.f32.mrb[0].mxu0
        %2995 = vmatprep.mubr.f32.mxu0 0.0
        %2996 = vmatmul.mubr.f32.gmra.mrb[0].mxu0 %v2900
        %v2997 = vpop.f32.mrb[0].mxu0
        %v2998 = vadd.f32 1e-05, %v2997
        %v2999 = vpop.f32.mrb[0].mxu0
        %3000 = vmatprep.mubr.f32.mxu0 0.0
        %3001 = vmatmul.mubr.f32.gmra.mrb[0].mxu0 %v2903
        %v3002 = vpop.f32.mrb[0].mxu0
        %v3003 = vadd.f32 1e-05, %v3002
        %v3004 = vpop.f32.mrb[0].mxu0
        %3005 = vmatprep.mubr.f32.mxu0 0.0
        %3006 = vmatmul.mubr.f32.gmra.mrb[0].mxu0 %v2906
        %v3007 = vpop.f32.mrb[0].mxu0
        %v3008 = vadd.f32 1e-05, %v3007
        %v3009 = vpop.f32.mrb[0].mxu0
        %3010 = vmatprep.mubr.f32.mxu0 0.0
        %3011 = vmatmul.mubr.f32.gmra.mrb[0].mxu0 %v2909
        %v3012 = vpop.f32.mrb[0].mxu0
        %v3013 = vadd.f32 1e-05, %v3012
        %v3014 = vpop.f32.mrb[0].mxu0
        %3015 = vdwg.mxu0
        %v3016 = vrsqrt.pop %v2978
        %v3017 = vrsqrt.pop %v2983
        %v3018 = vrsqrt.pop %v2988
        %v3019 = vrsqrt.pop %v2993
        %v3020 = vrsqrt.pop %v2998
        %v3021 = vrsqrt.pop %v3003
        %v3022 = vrsqrt.pop %v3008
        %v3023 = vrsqrt.pop %v3013
        %v3024 = vmul.f32 %v2871, %v3016
        %v3025 = vmul.f32 %v2872, %v3017
        %v3026 = vmul.f32 %v2873, %v3018
        %v3027 = vmul.f32 %v2874, %v3019
        %v3028 = vmul.f32 %v2875, %v3020
        %v3029 = vmul.f32 %v2876, %v3021
        %v3030 = vmul.f32 %v2877, %v3022
        %v3031 = vmul.f32 %v2878, %v3023
        %v3032 = vld [vmem:[%s47] sm:$0x1]
        %v3034 = vlaneseq
        %v3035 = vshrl.u32 %v3034, 7
        %v3036 = vsub.s32 0, %v3035
        %v3037 = vrot.slane %v3032, %v3036
        %v3039 = vmul.f32 %v3024, %v3037
        %v3040 = vmul.f32 %v3025, %v3037
        %v3041 = vmul.f32 %v3026, %v3037
        %v3042 = vmul.f32 %v3027, %v3037
        %v3043 = vmul.f32 %v3028, %v3037
        %v3044 = vmul.f32 %v3029, %v3037
        %v3045 = vmul.f32 %v3030, %v3037
        %v3046 = vmul.f32 %v3031, %v3037
        %v3047 = vld [vmem:[%s49] sm:$0x1]
        %v3049 = vlaneseq
        %v3050 = vshrl.u32 %v3049, 7
        %v3051 = vsub.s32 0, %v3050
        %v3052 = vrot.slane %v3047, %v3051
        %v3054 = vadd.f32 %v3039, %v3052
        %v3055 = vadd.f32 %v3040, %v3052
        %v3056 = vadd.f32 %v3041, %v3052
        %v3057 = vadd.f32 %v3042, %v3052
        %v3058 = vadd.f32 %v3043, %v3052
        %v3059 = vadd.f32 %v3044, %v3052
        %v3060 = vadd.f32 %v3045, %v3052
        %v3061 = vadd.f32 %v3046, %v3052
        %v3062 = vpack.c.bf16 %v3055, %v3054
        %v3063 = vpack.c.bf16 %v3057, %v3056
        %v3064 = vpack.c.bf16 %v3059, %v3058
        %v3065 = vpack.c.bf16 %v3061, %v3060
        %v3066 = vld [vmem:[%s51] sm:$0xff]
        %v3067 = vld [vmem:[%s51 + $0x8] sm:$0xf]
        %v3068 = vld [vmem:[%s51 + $0xc] sm:$0xff]
        %v3069 = vld [vmem:[%s51 + $0x14] sm:$0xf]
        %v3070 = vld [vmem:[%s51 + $0x18] sm:$0xff]
        %v3071 = vld [vmem:[%s51 + $0x20] sm:$0xf]
        %v3072 = vld [vmem:[%s51 + $0x24] sm:$0xff]
        %v3073 = vld [vmem:[%s51 + $0x2c] sm:$0xf]
        %v3074 = vld [vmem:[%s53] sm:$0x7]
        %v3076 = vlaneseq
        %v3077 = vshrl.u32 %v3076, 7
        %v3078 = vsub.s32 0, %v3077
        %v3079 = vrot.slane %v3074, %v3078
        %v3080 = vlaneseq
        %v3081 = vshrl.u32 %v3080, 7
        %v3082 = vsub.s32 1, %v3081
        %v3083 = vrot.slane %v3074, %v3082
        %v3084 = vlaneseq
        %v3085 = vshrl.u32 %v3084, 7
        %v3086 = vsub.s32 2, %v3085
        %v3087 = vrot.slane %v3074, %v3086
        %v3099 = vunpack.c.l.b16 %v3066
        %v3100 = vunpack.c.h.b16 %v3066
        %v3101 = vunpack.c.l.b16 %v3067
        %v3102 = vunpack.c.l.b16 %v3068
        %v3103 = vunpack.c.h.b16 %v3068
        %v3104 = vunpack.c.l.b16 %v3069
        %v3105 = vunpack.c.l.b16 %v3070
        %v3106 = vunpack.c.h.b16 %v3070
        %v3107 = vunpack.c.l.b16 %v3071
        %v3108 = vunpack.c.l.b16 %v3072
        %v3109 = vunpack.c.h.b16 %v3072
        %v3110 = vunpack.c.l.b16 %v3073
        %v3111 = vpack.c.b16 %v3102, %v3099
        %v3112 = vpack.c.b16 %v3103, %v3100
        %v3113 = vpack.c.b16 %v3104, %v3101
        %v3114 = vpack.c.b16 %v3108, %v3105
        %v3115 = vpack.c.b16 %v3109, %v3106
        %v3116 = vpack.c.b16 %v3110, %v3107
        %v3124 = vsel %vm1292, %v3062, 0
        %v3127 = vsel %vm1292, %v3063, 0
        %v3130 = vsel %vm1292, %v3064, 0
        %v3133 = vsel %vm1292, %v3065, 0
        %3135 = vmatprep.subr.bf16.mxu0 %v3112
        %3136 = vmatpush1.bf16.msra.mxu0 %v3111
        %3137 = vmatprep.subr.bf16.mxu0 %v3115
        %3138 = vmatpush1.bf16.msra.mxu0 %v3114
        %3139 = vmatprep.subr.bf16.mxu0 0
        %3140 = vmatpush1.bf16.msra.mxu0 0
        %3141 = vmatprep.subr.bf16.mxu0 0
        %3142 = vmatpush1.bf16.msra.mxu0 0
        %3143 = vmatprep.subr.bf16.mxu0 0
        %3144 = vmatpush1.bf16.msra.mxu0 0
        %3145 = vmatprep.subr.bf16.mxu0 0
        %3146 = vmatpush1.bf16.msra.mxu0 0
        %3147 = vmatprep.subr.bf16.mxu0 0
        %3148 = vmatpush1.bf16.msra.mxu0 0
        %3149 = vmatprep.subr.bf16.mxu0 0
        %3150 = vmatpush1.bf16.msra.mxu0 0
        %3151 = vmatprep.subr.bf16.mxu0 0
        %3152 = vmatpush1.bf16.msra.mxu0 0
        %3153 = vmatprep.subr.bf16.mxu0 0
        %3154 = vmatpush1.bf16.msra.mxu0 0
        %3155 = vmatprep.subr.bf16.mxu0 0
        %3156 = vmatpush1.bf16.msra.mxu0 0
        %3157 = vmatprep.subr.bf16.mxu0 0
        %3158 = vmatpush1.bf16.msra.mxu0 0
        %3159 = vmatprep.subr.bf16.mxu0 0
        %3160 = vmatpush1.bf16.msra.mxu0 0
        %3161 = vmatprep.subr.bf16.mxu0 0
        %3162 = vmatpush1.bf16.msra.mxu0 0
        %3163 = vmatprep.subr.bf16.mxu0 0
        %3164 = vmatpush1.bf16.msra.mxu0 0
        %3165 = vmatprep.subr.bf16.mxu0 0
        %3166 = vmatpush1.bf16.msra.mxu0 0
        %3167 = vmatprep.mubr.bf16.mxu0 0
        %3168 = vmatmul.mubr.bf16.gmra.mrb[0].mxu0 %v3124
        %v3169 = vpop.f32.mrb[0].mxu0
        %v3170 = vadd.f32 %v3079, %v3169
        %v3171 = vpop.f32.mrb[0].mxu0
        %v3172 = vadd.f32 %v3083, %v3171
        %v3173 = vpop.f32.mrb[0].mxu0
        %v3174 = vadd.f32 %v3079, %v3173
        %v3175 = vpop.f32.mrb[0].mxu0
        %v3176 = vadd.f32 %v3083, %v3175
        %3177 = vmatprep.mubr.bf16.mxu0 0
        %3178 = vmatmul.mubr.bf16.gmra.mrb[0].mxu0 %v3127
        %v3179 = vpop.f32.mrb[0].mxu0
        %v3180 = vadd.f32 %v3079, %v3179
        %v3181 = vpop.f32.mrb[0].mxu0
        %v3182 = vadd.f32 %v3083, %v3181
        %v3183 = vpop.f32.mrb[0].mxu0
        %v3184 = vadd.f32 %v3079, %v3183
        %v3185 = vpop.f32.mrb[0].mxu0
        %v3186 = vadd.f32 %v3083, %v3185
        %3187 = vmatprep.mubr.bf16.mxu0 0
        %3188 = vmatmul.mubr.bf16.gmra.mrb[0].mxu0 %v3130
        %v3189 = vpop.f32.mrb[0].mxu0
        %v3190 = vadd.f32 %v3079, %v3189
        %v3191 = vpop.f32.mrb[0].mxu0
        %v3192 = vadd.f32 %v3083, %v3191
        %v3193 = vpop.f32.mrb[0].mxu0
        %v3194 = vadd.f32 %v3079, %v3193
        %v3195 = vpop.f32.mrb[0].mxu0
        %v3196 = vadd.f32 %v3083, %v3195
        %3197 = vmatprep.mubr.bf16.mxu0 0
        %3198 = vmatmul.mubr.bf16.gmra.mrb[0].mxu0 %v3133
        %v3199 = vpop.f32.mrb[0].mxu0
        %v3200 = vadd.f32 %v3079, %v3199
        %v3201 = vpop.f32.mrb[0].mxu0
        %v3202 = vadd.f32 %v3083, %v3201
        %v3203 = vpop.f32.mrb[0].mxu0
        %v3204 = vadd.f32 %v3079, %v3203
        %v3205 = vpop.f32.mrb[0].mxu0
        %v3206 = vadd.f32 %v3083, %v3205
        %3207 = vdwg.mxu0
        %3208 = vmatprep.subr.bf16.mxu0 0
        %3209 = vmatpush1.bf16.msra.mxu0 %v3113
        %3210 = vmatprep.subr.bf16.mxu0 0
        %3211 = vmatpush1.bf16.msra.mxu0 %v3116
        %3212 = vmatprep.subr.bf16.mxu0 0
        %3213 = vmatpush1.bf16.msra.mxu0 0
        %3214 = vmatprep.subr.bf16.mxu0 0
        %3215 = vmatpush1.bf16.msra.mxu0 0
        %3216 = vmatprep.subr.bf16.mxu0 0
        %3217 = vmatpush1.bf16.msra.mxu0 0
        %3218 = vmatprep.subr.bf16.mxu0 0
        %3219 = vmatpush1.bf16.msra.mxu0 0
        %3220 = vmatprep.subr.bf16.mxu0 0
        %3221 = vmatpush1.bf16.msra.mxu0 0
        %3222 = vmatprep.subr.bf16.mxu0 0
        %3223 = vmatpush1.bf16.msra.mxu0 0
        %3224 = vmatprep.subr.bf16.mxu0 0
        %3225 = vmatpush1.bf16.msra.mxu0 0
        %3226 = vmatprep.subr.bf16.mxu0 0
        %3227 = vmatpush1.bf16.msra.mxu0 0
        %3228 = vmatprep.subr.bf16.mxu0 0
        %3229 = vmatpush1.bf16.msra.mxu0 0
        %3230 = vmatprep.subr.bf16.mxu0 0
        %3231 = vmatpush1.bf16.msra.mxu0 0
        %3232 = vmatprep.subr.bf16.mxu0 0
        %3233 = vmatpush1.bf16.msra.mxu0 0
        %3234 = vmatprep.subr.bf16.mxu0 0
        %3235 = vmatpush1.bf16.msra.mxu0 0
        %3236 = vmatprep.subr.bf16.mxu0 0
        %3237 = vmatpush1.bf16.msra.mxu0 0
        %3238 = vmatprep.subr.bf16.mxu0 0
        %3239 = vmatpush1.bf16.msra.mxu0 0
        %3240 = vmatprep.mubr.bf16.mxu0 0
        %3241 = vmatmul.mubr.bf16.gmra.mrb[0].mxu0 %v3124
        %v3242 = vpop.f32.mrb[0].mxu0
        %v3243 = vadd.f32 %v3087, %v3242
        %v3244 = vpop.f32.mrb[0].mxu0
        %v3245 = vpop.f32.mrb[0].mxu0
        %v3246 = vadd.f32 %v3087, %v3245
        %v3247 = vpop.f32.mrb[0].mxu0
        %3248 = vmatprep.mubr.bf16.mxu0 0
        %3249 = vmatmul.mubr.bf16.gmra.mrb[0].mxu0 %v3127
        %v3250 = vpop.f32.mrb[0].mxu0
        %v3251 = vadd.f32 %v3087, %v3250
        %v3252 = vpop.f32.mrb[0].mxu0
        %v3253 = vpop.f32.mrb[0].mxu0
        %v3254 = vadd.f32 %v3087, %v3253
        %v3255 = vpop.f32.mrb[0].mxu0
        %3256 = vmatprep.mubr.bf16.mxu0 0
        %3257 = vmatmul.mubr.bf16.gmra.mrb[0].mxu0 %v3130
        %v3258 = vpop.f32.mrb[0].mxu0
        %v3259 = vadd.f32 %v3087, %v3258
        %v3260 = vpop.f32.mrb[0].mxu0
        %v3261 = vpop.f32.mrb[0].mxu0
        %v3262 = vadd.f32 %v3087, %v3261
        %v3263 = vpop.f32.mrb[0].mxu0
        %3264 = vmatprep.mubr.bf16.mxu0 0
        %3265 = vmatmul.mubr.bf16.gmra.mrb[0].mxu0 %v3133
        %v3266 = vpop.f32.mrb[0].mxu0
        %v3267 = vadd.f32 %v3087, %v3266
        %v3268 = vpop.f32.mrb[0].mxu0
        %v3269 = vpop.f32.mrb[0].mxu0
        %v3270 = vadd.f32 %v3087, %v3269
        %v3271 = vpop.f32.mrb[0].mxu0
        %3272 = vdwg.mxu0
        %3273 = vst [vmem:[#allocation3] sm:$0xff] %v3170
        %3274 = vst [vmem:[#allocation3 + $0x8] sm:$0xff] %v3172
        %3275 = vst [vmem:[#allocation3 + $0x10] sm:$0xff] %v3243
        %3276 = vst [vmem:[#allocation3 + $0x18] sm:$0xff] %v3174
        %3277 = vst [vmem:[#allocation3 + $0x20] sm:$0xff] %v3176
        %3278 = vst [vmem:[#allocation3 + $0x28] sm:$0xff] %v3246
        %3279 = vst [vmem:[#allocation3 + $0x30] sm:$0xff] %v3180
        %3280 = vst [vmem:[#allocation3 + $0x38] sm:$0xff] %v3182
        %3281 = vst [vmem:[#allocation3 + $0x40] sm:$0xff] %v3251
        %3282 = vst [vmem:[#allocation3 + $0x48] sm:$0xff] %v3184
        %3283 = vst [vmem:[#allocation3 + $0x50] sm:$0xff] %v3186
        %3284 = vst [vmem:[#allocation3 + $0x58] sm:$0xff] %v3254
        %3285 = vst [vmem:[#allocation3 + $0x60] sm:$0xff] %v3190
        %3286 = vst [vmem:[#allocation3 + $0x68] sm:$0xff] %v3192
        %3287 = vst [vmem:[#allocation3 + $0x70] sm:$0xff] %v3259
        %3288 = vst [vmem:[#allocation3 + $0x78] sm:$0xff] %v3194
        %3289 = vst [vmem:[#allocation3 + $0x80] sm:$0xff] %v3196
        %3290 = vst [vmem:[#allocation3 + $0x88] sm:$0xff] %v3262
        %3291 = vst [vmem:[#allocation3 + $0x90] sm:$0xff] %v3200
        %3292 = vst [vmem:[#allocation3 + $0x98] sm:$0xff] %v3202
        %3293 = vst [vmem:[#allocation3 + $0xa0] sm:$0xff] %v3267
        %3294 = vst [vmem:[#allocation3 + $0xa8] sm:$0xff] %v3204
        %3295 = vst [vmem:[#allocation3 + $0xb0] sm:$0xff] %v3206
        %3296 = vst [vmem:[#allocation3 + $0xb8] sm:$0xff] %v3270
        %v3297 = vld [vmem:[%s938] sm:$0xff]
        %v3298 = vld [vmem:[%s55] sm:$0xff]
        %v3299 = vld [vmem:[%s55 + $0x8] sm:$0xff]
        %v3300 = vld [vmem:[%s55 + $0x10] sm:$0xff]
        %v3301 = vld [vmem:[%s55 + $0x18] sm:$0xff]
        %v3302 = vld [vmem:[%s55 + $0x20] sm:$0xff]
        %v3303 = vld [vmem:[%s55 + $0x28] sm:$0xff]
        %v3304 = vld [vmem:[%s55 + $0x30] sm:$0xff]
        %v3305 = vld [vmem:[%s55 + $0x38] sm:$0xff]
        %v3306 = vld [vmem:[%s55 + $0x40] sm:$0xff]
        %v3307 = vld [vmem:[%s55 + $0x48] sm:$0xff]
        %v3308 = vld [vmem:[%s55 + $0x50] sm:$0xff]
        %v3309 = vld [vmem:[%s55 + $0x58] sm:$0xff]
        %v3310 = vld [vmem:[%s55 + $0x60] sm:$0xff]
        %v3311 = vld [vmem:[%s55 + $0x68] sm:$0xff]
        %v3312 = vld [vmem:[%s55 + $0x70] sm:$0xff]
        %v3313 = vld [vmem:[%s55 + $0x78] sm:$0xff]
        %v3314 = vld [vmem:[%s55 + $0x80] sm:$0xff]
        %v3315 = vld [vmem:[%s55 + $0x88] sm:$0xff]
        %v3316 = vld [vmem:[%s55 + $0x90] sm:$0xff]
        %v3317 = vld [vmem:[%s55 + $0x98] sm:$0xff]
        %v3318 = vld [vmem:[%s55 + $0xa0] sm:$0xff]
        %v3319 = vld [vmem:[%s55 + $0xa8] sm:$0xff]
        %v3320 = vld [vmem:[%s55 + $0xb0] sm:$0xff]
        %v3321 = vld [vmem:[%s55 + $0xb8] sm:$0xff]
        %v3322 = vld [vmem:[%s55 + $0xc0] sm:$0xff]
        %v3323 = vld [vmem:[%s55 + $0xc8] sm:$0xff]
        %v3324 = vld [vmem:[%s55 + $0xd0] sm:$0xff]
        %v3325 = vld [vmem:[%s55 + $0xd8] sm:$0xff]
        %v3326 = vld [vmem:[%s55 + $0xe0] sm:$0xff]
        %v3327 = vld [vmem:[%s55 + $0xe8] sm:$0xff]
        %v3328 = vld [vmem:[%s55 + $0xf0] sm:$0xff]
        %v3329 = vld [vmem:[%s55 + $0xf8] sm:$0xff]
        %v3330 = vld [vmem:[%s55 + $0x100] sm:$0xff]
        %v3331 = vld [vmem:[%s55 + $0x108] sm:$0xff]
        %v3332 = vld [vmem:[%s55 + $0x110] sm:$0xff]
        %v3333 = vld [vmem:[%s55 + $0x118] sm:$0xff]
        %v3334 = vld [vmem:[%s55 + $0x120] sm:$0xff]
        %v3335 = vld [vmem:[%s55 + $0x128] sm:$0xff]
        %v3336 = vld [vmem:[%s55 + $0x130] sm:$0xff]
        %v3337 = vld [vmem:[%s55 + $0x138] sm:$0xff]
        %v3338 = vld [vmem:[%s55 + $0x140] sm:$0xff]
        %v3339 = vld [vmem:[%s55 + $0x148] sm:$0xff]
        %v3340 = vld [vmem:[%s55 + $0x150] sm:$0xff]
        %v3341 = vld [vmem:[%s55 + $0x158] sm:$0xff]
        %v3342 = vld [vmem:[%s55 + $0x160] sm:$0xff]
        %v3343 = vld [vmem:[%s55 + $0x168] sm:$0xff]
        %v3344 = vld [vmem:[%s55 + $0x170] sm:$0xff]
        %v3345 = vld [vmem:[%s55 + $0x178] sm:$0xff]
        %v3346 = vld [vmem:[%s57] sm:$0x7]
        %s3347 = smul.u32 %s78, 8
        %v3348 = vld [vmem:[#allocation3] sm:$0xff]
        %v3349 = vld [vmem:[#allocation3 + $0x8] sm:$0xff]
        %v3350 = vld [vmem:[#allocation3 + $0x10] sm:$0xff]
        %v3351 = vld [vmem:[#allocation2] sm:$0xff]
        %v3353 = vlaneseq
        %v3354 = vshrl.u32 %v3353, 7
        %v3355 = vsub.s32 0, %v3354
        %v3356 = vrot.slane %v3346, %v3355
        %v3357 = vlaneseq
        %v3358 = vshrl.u32 %v3357, 7
        %v3359 = vsub.s32 1, %v3358
        %v3360 = vrot.slane %v3346, %v3359
        %v3361 = vlaneseq
        %v3362 = vshrl.u32 %v3361, 7
        %v3363 = vsub.s32 2, %v3362
        %v3364 = vrot.slane %v3346, %v3363
        %3368 = vmatprep.subr.mxu0 %v3299
        %3369 = vmatpush1.msra.mxu0 %v3298
        %3370 = vmatprep.subr.mxu0 %v3302
        %3371 = vmatpush1.msra.mxu0 %v3301
        %3372 = vmatprep.subr.mxu0 %v3305
        %3373 = vmatpush1.msra.mxu0 %v3304
        %3374 = vmatprep.subr.mxu0 %v3308
        %3375 = vmatpush1.msra.mxu0 %v3307
        %3376 = vmatprep.subr.mxu0 %v3311
        %3377 = vmatpush1.msra.mxu0 %v3310
        %3378 = vmatprep.subr.mxu0 %v3314
        %3379 = vmatpush1.msra.mxu0 %v3313
        %3380 = vmatprep.subr.mxu0 %v3317
        %3381 = vmatpush1.msra.mxu0 %v3316
        %3382 = vmatprep.subr.mxu0 %v3320
        %3383 = vmatpush1.msra.mxu0 %v3319
        %3384 = vmatprep.subr.mxu0 %v3323
        %3385 = vmatpush1.msra.mxu0 %v3322
        %3386 = vmatprep.subr.mxu0 %v3326
        %3387 = vmatpush1.msra.mxu0 %v3325
        %3388 = vmatprep.subr.mxu0 %v3329
        %3389 = vmatpush1.msra.mxu0 %v3328
        %3390 = vmatprep.subr.mxu0 %v3332
        %3391 = vmatpush1.msra.mxu0 %v3331
        %3392 = vmatprep.subr.mxu0 %v3335
        %3393 = vmatpush1.msra.mxu0 %v3334
        %3394 = vmatprep.subr.mxu0 %v3338
        %3395 = vmatpush1.msra.mxu0 %v3337
        %3396 = vmatprep.subr.mxu0 %v3341
        %3397 = vmatpush1.msra.mxu0 %v3340
        %3398 = vmatprep.subr.mxu0 %v3344
        %3399 = vmatpush1.msra.mxu0 %v3343
        %3400 = vmatprep.subr.mxu0 0.0
        %3401 = vmatpush1.msra.mxu0 0.0
        %3402 = vmatprep.subr.mxu0 0.0
        %3403 = vmatpush1.msra.mxu0 0.0
        %3404 = vmatprep.subr.mxu0 0.0
        %3405 = vmatpush1.msra.mxu0 0.0
        %3406 = vmatprep.subr.mxu0 0.0
        %3407 = vmatpush1.msra.mxu0 0.0
        %3408 = vmatprep.subr.mxu0 0.0
        %3409 = vmatpush1.msra.mxu0 0.0
        %3410 = vmatprep.subr.mxu0 0.0
        %3411 = vmatpush1.msra.mxu0 0.0
        %3412 = vmatprep.subr.mxu0 0.0
        %3413 = vmatpush1.msra.mxu0 0.0
        %3414 = vmatprep.subr.mxu0 0.0
        %3415 = vmatpush1.msra.mxu0 0.0
        %3416 = vmatprep.subr.mxu0 0.0
        %3417 = vmatpush1.msra.mxu0 0.0
        %3418 = vmatprep.subr.mxu0 0.0
        %3419 = vmatpush1.msra.mxu0 0.0
        %3420 = vmatprep.subr.mxu0 0.0
        %3421 = vmatpush1.msra.mxu0 0.0
        %3422 = vmatprep.subr.mxu0 0.0
        %3423 = vmatpush1.msra.mxu0 0.0
        %3424 = vmatprep.subr.mxu0 0.0
        %3425 = vmatpush1.msra.mxu0 0.0
        %3426 = vmatprep.subr.mxu0 0.0
        %3427 = vmatpush1.msra.mxu0 0.0
        %3428 = vmatprep.subr.mxu0 0.0
        %3429 = vmatpush1.msra.mxu0 0.0
        %3430 = vmatprep.subr.mxu0 0.0
        %3431 = vmatpush1.msra.mxu0 0.0
        %3432 = vmatprep.mubr.f32.mxu0 0.0
        %3433 = vmatmul.mubr.f32.gmra.mrb[0].mxu0 %v3351
        %v3434 = vpop.f32.mrb[0].mxu0
        %v3435 = vadd.f32 %v3356, %v3434
        %v3436 = vpop.f32.mrb[0].mxu0
        %v3437 = vadd.f32 %v3360, %v3436
        %3438 = vdwg.mxu0
        %3439 = vmatprep.subr.mxu0 0.0
        %3440 = vmatpush1.msra.mxu0 %v3300
        %3441 = vmatprep.subr.mxu0 0.0
        %3442 = vmatpush1.msra.mxu0 %v3303
        %3443 = vmatprep.subr.mxu0 0.0
        %3444 = vmatpush1.msra.mxu0 %v3306
        %3445 = vmatprep.subr.mxu0 0.0
        %3446 = vmatpush1.msra.mxu0 %v3309
        %3447 = vmatprep.subr.mxu0 0.0
        %3448 = vmatpush1.msra.mxu0 %v3312
        %3449 = vmatprep.subr.mxu0 0.0
        %3450 = vmatpush1.msra.mxu0 %v3315
        %3451 = vmatprep.subr.mxu0 0.0
        %3452 = vmatpush1.msra.mxu0 %v3318
        %3453 = vmatprep.subr.mxu0 0.0
        %3454 = vmatpush1.msra.mxu0 %v3321
        %3455 = vmatprep.subr.mxu0 0.0
        %3456 = vmatpush1.msra.mxu0 %v3324
        %3457 = vmatprep.subr.mxu0 0.0
        %3458 = vmatpush1.msra.mxu0 %v3327
        %3459 = vmatprep.subr.mxu0 0.0
        %3460 = vmatpush1.msra.mxu0 %v3330
        %3461 = vmatprep.subr.mxu0 0.0
        %3462 = vmatpush1.msra.mxu0 %v3333
        %3463 = vmatprep.subr.mxu0 0.0
        %3464 = vmatpush1.msra.mxu0 %v3336
        %3465 = vmatprep.subr.mxu0 0.0
        %3466 = vmatpush1.msra.mxu0 %v3339
        %3467 = vmatprep.subr.mxu0 0.0
        %3468 = vmatpush1.msra.mxu0 %v3342
        %3469 = vmatprep.subr.mxu0 0.0
        %3470 = vmatpush1.msra.mxu0 %v3345
        %3471 = vmatprep.subr.mxu0 0.0
        %3472 = vmatpush1.msra.mxu0 0.0
        %3473 = vmatprep.subr.mxu0 0.0
        %3474 = vmatpush1.msra.mxu0 0.0
        %3475 = vmatprep.subr.mxu0 0.0
        %3476 = vmatpush1.msra.mxu0 0.0
        %3477 = vmatprep.subr.mxu0 0.0
        %3478 = vmatpush1.msra.mxu0 0.0
        %3479 = vmatprep.subr.mxu0 0.0
        %3480 = vmatpush1.msra.mxu0 0.0
        %3481 = vmatprep.subr.mxu0 0.0
        %3482 = vmatpush1.msra.mxu0 0.0
        %3483 = vmatprep.subr.mxu0 0.0
        %3484 = vmatpush1.msra.mxu0 0.0
        %3485 = vmatprep.subr.mxu0 0.0
        %3486 = vmatpush1.msra.mxu0 0.0
        %3487 = vmatprep.subr.mxu0 0.0
        %3488 = vmatpush1.msra.mxu0 0.0
        %3489 = vmatprep.subr.mxu0 0.0
        %3490 = vmatpush1.msra.mxu0 0.0
        %3491 = vmatprep.subr.mxu0 0.0
        %3492 = vmatpush1.msra.mxu0 0.0
        %3493 = vmatprep.subr.mxu0 0.0
        %3494 = vmatpush1.msra.mxu0 0.0
        %3495 = vmatprep.subr.mxu0 0.0
        %3496 = vmatpush1.msra.mxu0 0.0
        %3497 = vmatprep.subr.mxu0 0.0
        %3498 = vmatpush1.msra.mxu0 0.0
        %3499 = vmatprep.subr.mxu0 0.0
        %3500 = vmatpush1.msra.mxu0 0.0
        %3501 = vmatprep.subr.mxu0 0.0
        %3502 = vmatpush1.msra.mxu0 0.0
        %3503 = vmatprep.mubr.f32.mxu0 0.0
        %3504 = vmatmul.mubr.f32.gmra.mrb[0].mxu0 %v3351
        %v3505 = vpop.f32.mrb[0].mxu0
        %v3506 = vadd.f32 %v3364, %v3505
        %v3507 = vpop.f32.mrb[0].mxu0
        %3508 = vdwg.mxu0
        %v3509 = vadd.f32 %v3348, %v3435
        %v3510 = vxor.u32 %v3509, 2147483648
        %v3511 = vmul.f32 %v3510, 1.442695
        %v3512 = vpow.pop %v3511
        %v3513 = vadd.f32 %v3512, 1.0
        %v3514 = vrcp.pop %v3513
        %v3515 = vmul.f32 1.0, %v3514
        %v3516 = vadd.f32 %v3349, %v3437
        %v3517 = vxor.u32 %v3516, 2147483648
        %v3518 = vmul.f32 %v3517, 1.442695
        %v3519 = vpow.pop %v3518
        %v3520 = vadd.f32 %v3519, 1.0
        %v3521 = vrcp.pop %v3520
        %v3522 = vmul.f32 1.0, %v3521
        %v3523 = vmul.f32 %v3515, %v3506
        %v3524 = vadd.f32 %v3350, %v3523
        %v3525 = vtanh.pop %v3524
        %v3526 = vsub.f32 1.0, %v3522
        %v3527 = vmul.f32 %v3526, %v3525
        %v3528 = vmul.f32 %v3522, %v3351
        %v3529 = vadd.f32 %v3527, %v3528
        %v3530 = vstv %s3347
        %vm3531 = vcmp.lt.s32.totalorder %v3530, %v3297
        %v3532 = vsel %vm3531, 1, 0
        %3533 = vset.pattern.permute.xlu0 0
        %3534 = vperm.xlu0 %3533, %v3532
        %v3535 = vpop.permute.xlu0 %3534
        %vm3536 = vcmp.eq.s32.totalorder %v3535, 1
        %v3537 = vsel %vm3536, %v3529, %v3351
        %3538 = vst [vmem:[#allocation2] sm:$0xff] %v3537
        %s3539 = sadd.s32 %s3347, 1
        %s3540 = scalar_lea.vmem [#allocation3], 24
        %v3541 = vld [vmem:[%s3540] sm:$0xff]
        %v3542 = vld [vmem:[%s3540 + $0x8] sm:$0xff]
        %v3543 = vld [vmem:[%s3540 + $0x10] sm:$0xff]
        %v3544 = vld [vmem:[#allocation2] sm:$0xff]
        %3545 = vmatprep.subr.mxu0 %v3299
        %3546 = vmatpush1.msra.mxu0 %v3298
        %3547 = vmatprep.subr.mxu0 %v3302
        %3548 = vmatpush1.msra.mxu0 %v3301
        %3549 = vmatprep.subr.mxu0 %v3305
        %3550 = vmatpush1.msra.mxu0 %v3304
        %3551 = vmatprep.subr.mxu0 %v3308
        %3552 = vmatpush1.msra.mxu0 %v3307
        %3553 = vmatprep.subr.mxu0 %v3311
        %3554 = vmatpush1.msra.mxu0 %v3310
        %3555 = vmatprep.subr.mxu0 %v3314
        %3556 = vmatpush1.msra.mxu0 %v3313
        %3557 = vmatprep.subr.mxu0 %v3317
        %3558 = vmatpush1.msra.mxu0 %v3316
        %3559 = vmatprep.subr.mxu0 %v3320
        %3560 = vmatpush1.msra.mxu0 %v3319
        %3561 = vmatprep.subr.mxu0 %v3323
        %3562 = vmatpush1.msra.mxu0 %v3322
        %3563 = vmatprep.subr.mxu0 %v3326
        %3564 = vmatpush1.msra.mxu0 %v3325
        %3565 = vmatprep.subr.mxu0 %v3329
        %3566 = vmatpush1.msra.mxu0 %v3328
        %3567 = vmatprep.subr.mxu0 %v3332
        %3568 = vmatpush1.msra.mxu0 %v3331
        %3569 = vmatprep.subr.mxu0 %v3335
        %3570 = vmatpush1.msra.mxu0 %v3334
        %3571 = vmatprep.subr.mxu0 %v3338
        %3572 = vmatpush1.msra.mxu0 %v3337
        %3573 = vmatprep.subr.mxu0 %v3341
        %3574 = vmatpush1.msra.mxu0 %v3340
        %3575 = vmatprep.subr.mxu0 %v3344
        %3576 = vmatpush1.msra.mxu0 %v3343
        %3577 = vmatprep.subr.mxu0 0.0
        %3578 = vmatpush1.msra.mxu0 0.0
        %3579 = vmatprep.subr.mxu0 0.0
        %3580 = vmatpush1.msra.mxu0 0.0
        %3581 = vmatprep.subr.mxu0 0.0
        %3582 = vmatpush1.msra.mxu0 0.0
        %3583 = vmatprep.subr.mxu0 0.0
        %3584 = vmatpush1.msra.mxu0 0.0
        %3585 = vmatprep.subr.mxu0 0.0
        %3586 = vmatpush1.msra.mxu0 0.0
        %3587 = vmatprep.subr.mxu0 0.0
        %3588 = vmatpush1.msra.mxu0 0.0
        %3589 = vmatprep.subr.mxu0 0.0
        %3590 = vmatpush1.msra.mxu0 0.0
        %3591 = vmatprep.subr.mxu0 0.0
        %3592 = vmatpush1.msra.mxu0 0.0
        %3593 = vmatprep.subr.mxu0 0.0
        %3594 = vmatpush1.msra.mxu0 0.0
        %3595 = vmatprep.subr.mxu0 0.0
        %3596 = vmatpush1.msra.mxu0 0.0
        %3597 = vmatprep.subr.mxu0 0.0
        %3598 = vmatpush1.msra.mxu0 0.0
        %3599 = vmatprep.subr.mxu0 0.0
        %3600 = vmatpush1.msra.mxu0 0.0
        %3601 = vmatprep.subr.mxu0 0.0
        %3602 = vmatpush1.msra.mxu0 0.0
        %3603 = vmatprep.subr.mxu0 0.0
        %3604 = vmatpush1.msra.mxu0 0.0
        %3605 = vmatprep.subr.mxu0 0.0
        %3606 = vmatpush1.msra.mxu0 0.0
        %3607 = vmatprep.subr.mxu0 0.0
        %3608 = vmatpush1.msra.mxu0 0.0
        %3609 = vmatprep.mubr.f32.mxu0 0.0
        %3610 = vmatmul.mubr.f32.gmra.mrb[0].mxu0 %v3544
        %v3611 = vpop.f32.mrb[0].mxu0
        %v3612 = vadd.f32 %v3356, %v3611
        %v3613 = vpop.f32.mrb[0].mxu0
        %v3614 = vadd.f32 %v3360, %v3613
        %3615 = vdwg.mxu0
        %3616 = vmatprep.subr.mxu0 0.0
        %3617 = vmatpush1.msra.mxu0 %v3300
        %3618 = vmatprep.subr.mxu0 0.0
        %3619 = vmatpush1.msra.mxu0 %v3303
        %3620 = vmatprep.subr.mxu0 0.0
        %3621 = vmatpush1.msra.mxu0 %v3306
        %3622 = vmatprep.subr.mxu0 0.0
        %3623 = vmatpush1.msra.mxu0 %v3309
        %3624 = vmatprep.subr.mxu0 0.0
        %3625 = vmatpush1.msra.mxu0 %v3312
        %3626 = vmatprep.subr.mxu0 0.0
        %3627 = vmatpush1.msra.mxu0 %v3315
        %3628 = vmatprep.subr.mxu0 0.0
        %3629 = vmatpush1.msra.mxu0 %v3318
        %3630 = vmatprep.subr.mxu0 0.0
        %3631 = vmatpush1.msra.mxu0 %v3321
        %3632 = vmatprep.subr.mxu0 0.0
        %3633 = vmatpush1.msra.mxu0 %v3324
        %3634 = vmatprep.subr.mxu0 0.0
        %3635 = vmatpush1.msra.mxu0 %v3327
        %3636 = vmatprep.subr.mxu0 0.0
        %3637 = vmatpush1.msra.mxu0 %v3330
        %3638 = vmatprep.subr.mxu0 0.0
        %3639 = vmatpush1.msra.mxu0 %v3333
        %3640 = vmatprep.subr.mxu0 0.0
        %3641 = vmatpush1.msra.mxu0 %v3336
        %3642 = vmatprep.subr.mxu0 0.0
        %3643 = vmatpush1.msra.mxu0 %v3339
        %3644 = vmatprep.subr.mxu0 0.0
        %3645 = vmatpush1.msra.mxu0 %v3342
        %3646 = vmatprep.subr.mxu0 0.0
        %3647 = vmatpush1.msra.mxu0 %v3345
        %3648 = vmatprep.subr.mxu0 0.0
        %3649 = vmatpush1.msra.mxu0 0.0
        %3650 = vmatprep.subr.mxu0 0.0
        %3651 = vmatpush1.msra.mxu0 0.0
        %3652 = vmatprep.subr.mxu0 0.0
        %3653 = vmatpush1.msra.mxu0 0.0
        %3654 = vmatprep.subr.mxu0 0.0
        %3655 = vmatpush1.msra.mxu0 0.0
        %3656 = vmatprep.subr.mxu0 0.0
        %3657 = vmatpush1.msra.mxu0 0.0
        %3658 = vmatprep.subr.mxu0 0.0
        %3659 = vmatpush1.msra.mxu0 0.0
        %3660 = vmatprep.subr.mxu0 0.0
        %3661 = vmatpush1.msra.mxu0 0.0
        %3662 = vmatprep.subr.mxu0 0.0
        %3663 = vmatpush1.msra.mxu0 0.0
        %3664 = vmatprep.subr.mxu0 0.0
        %3665 = vmatpush1.msra.mxu0 0.0
        %3666 = vmatprep.subr.mxu0 0.0
        %3667 = vmatpush1.msra.mxu0 0.0
        %3668 = vmatprep.subr.mxu0 0.0
        %3669 = vmatpush1.msra.mxu0 0.0
        %3670 = vmatprep.subr.mxu0 0.0
        %3671 = vmatpush1.msra.mxu0 0.0
        %3672 = vmatprep.subr.mxu0 0.0
        %3673 = vmatpush1.msra.mxu0 0.0
        %3674 = vmatprep.subr.mxu0 0.0
        %3675 = vmatpush1.msra.mxu0 0.0
        %3676 = vmatprep.subr.mxu0 0.0
        %3677 = vmatpush1.msra.mxu0 0.0
        %3678 = vmatprep.subr.mxu0 0.0
        %3679 = vmatpush1.msra.mxu0 0.0
        %3680 = vmatprep.mubr.f32.mxu0 0.0
        %3681 = vmatmul.mubr.f32.gmra.mrb[0].mxu0 %v3544
        %v3682 = vpop.f32.mrb[0].mxu0
        %v3683 = vadd.f32 %v3364, %v3682
        %v3684 = vpop.f32.mrb[0].mxu0
        %3685 = vdwg.mxu0
        %v3686 = vadd.f32 %v3541, %v3612
        %v3687 = vxor.u32 %v3686, 2147483648
        %v3688 = vmul.f32 %v3687, 1.442695
        %v3689 = vpow.pop %v3688
        %v3690 = vadd.f32 %v3689, 1.0
        %v3691 = vrcp.pop %v3690
        %v3692 = vmul.f32 1.0, %v3691
        %v3693 = vadd.f32 %v3542, %v3614
        %v3694 = vxor.u32 %v3693, 2147483648
        %v3695 = vmul.f32 %v3694, 1.442695
        %v3696 = vpow.pop %v3695
        %v3697 = vadd.f32 %v3696, 1.0
        %v3698 = vrcp.pop %v3697
        %v3699 = vmul.f32 1.0, %v3698
        %v3700 = vmul.f32 %v3692, %v3683
        %v3701 = vadd.f32 %v3543, %v3700
        %v3702 = vtanh.pop %v3701
        %v3703 = vsub.f32 1.0, %v3699
        %v3704 = vmul.f32 %v3703, %v3702
        %v3705 = vmul.f32 %v3699, %v3544
        %v3706 = vadd.f32 %v3704, %v3705
        %v3707 = vstv %s3539
        %vm3708 = vcmp.lt.s32.totalorder %v3707, %v3297
        %v3709 = vsel %vm3708, 1, 0
        %3710 = vset.pattern.permute.xlu0 0
        %3711 = vperm.xlu0 %3710, %v3709
        %v3712 = vpop.permute.xlu0 %3711
        %vm3713 = vcmp.eq.s32.totalorder %v3712, 1
        %v3714 = vsel %vm3713, %v3706, %v3544
        %3715 = vst [vmem:[#allocation2] sm:$0xff] %v3714
        %s3716 = sadd.s32 %s3347, 2
        %s3717 = scalar_lea.vmem [#allocation3], 48
        %v3718 = vld [vmem:[%s3717] sm:$0xff]
        %v3719 = vld [vmem:[%s3717 + $0x8] sm:$0xff]
        %v3720 = vld [vmem:[%s3717 + $0x10] sm:$0xff]
        %v3721 = vld [vmem:[#allocation2] sm:$0xff]
        %3722 = vmatprep.subr.mxu0 %v3299
        %3723 = vmatpush1.msra.mxu0 %v3298
        %3724 = vmatprep.subr.mxu0 %v3302
        %3725 = vmatpush1.msra.mxu0 %v3301
        %3726 = vmatprep.subr.mxu0 %v3305
        %3727 = vmatpush1.msra.mxu0 %v3304
        %3728 = vmatprep.subr.mxu0 %v3308
        %3729 = vmatpush1.msra.mxu0 %v3307
        %3730 = vmatprep.subr.mxu0 %v3311
        %3731 = vmatpush1.msra.mxu0 %v3310
        %3732 = vmatprep.subr.mxu0 %v3314
        %3733 = vmatpush1.msra.mxu0 %v3313
        %3734 = vmatprep.subr.mxu0 %v3317
        %3735 = vmatpush1.msra.mxu0 %v3316
        %3736 = vmatprep.subr.mxu0 %v3320
        %3737 = vmatpush1.msra.mxu0 %v3319
        %3738 = vmatprep.subr.mxu0 %v3323
        %3739 = vmatpush1.msra.mxu0 %v3322
        %3740 = vmatprep.subr.mxu0 %v3326
        %3741 = vmatpush1.msra.mxu0 %v3325
        %3742 = vmatprep.subr.mxu0 %v3329
        %3743 = vmatpush1.msra.mxu0 %v3328
        %3744 = vmatprep.subr.mxu0 %v3332
        %3745 = vmatpush1.msra.mxu0 %v3331
        %3746 = vmatprep.subr.mxu0 %v3335
        %3747 = vmatpush1.msra.mxu0 %v3334
        %3748 = vmatprep.subr.mxu0 %v3338
        %3749 = vmatpush1.msra.mxu0 %v3337
        %3750 = vmatprep.subr.mxu0 %v3341
        %3751 = vmatpush1.msra.mxu0 %v3340
        %3752 = vmatprep.subr.mxu0 %v3344
        %3753 = vmatpush1.msra.mxu0 %v3343
        %3754 = vmatprep.subr.mxu0 0.0
        %3755 = vmatpush1.msra.mxu0 0.0
        %3756 = vmatprep.subr.mxu0 0.0
        %3757 = vmatpush1.msra.mxu0 0.0
        %3758 = vmatprep.subr.mxu0 0.0
        %3759 = vmatpush1.msra.mxu0 0.0
        %3760 = vmatprep.subr.mxu0 0.0
        %3761 = vmatpush1.msra.mxu0 0.0
        %3762 = vmatprep.subr.mxu0 0.0
        %3763 = vmatpush1.msra.mxu0 0.0
        %3764 = vmatprep.subr.mxu0 0.0
        %3765 = vmatpush1.msra.mxu0 0.0
        %3766 = vmatprep.subr.mxu0 0.0
        %3767 = vmatpush1.msra.mxu0 0.0
        %3768 = vmatprep.subr.mxu0 0.0
        %3769 = vmatpush1.msra.mxu0 0.0
        %3770 = vmatprep.subr.mxu0 0.0
        %3771 = vmatpush1.msra.mxu0 0.0
        %3772 = vmatprep.subr.mxu0 0.0
        %3773 = vmatpush1.msra.mxu0 0.0
        %3774 = vmatprep.subr.mxu0 0.0
        %3775 = vmatpush1.msra.mxu0 0.0
        %3776 = vmatprep.subr.mxu0 0.0
        %3777 = vmatpush1.msra.mxu0 0.0
        %3778 = vmatprep.subr.mxu0 0.0
        %3779 = vmatpush1.msra.mxu0 0.0
        %3780 = vmatprep.subr.mxu0 0.0
        %3781 = vmatpush1.msra.mxu0 0.0
        %3782 = vmatprep.subr.mxu0 0.0
        %3783 = vmatpush1.msra.mxu0 0.0
        %3784 = vmatprep.subr.mxu0 0.0
        %3785 = vmatpush1.msra.mxu0 0.0
        %3786 = vmatprep.mubr.f32.mxu0 0.0
        %3787 = vmatmul.mubr.f32.gmra.mrb[0].mxu0 %v3721
        %v3788 = vpop.f32.mrb[0].mxu0
        %v3789 = vadd.f32 %v3356, %v3788
        %v3790 = vpop.f32.mrb[0].mxu0
        %v3791 = vadd.f32 %v3360, %v3790
        %3792 = vdwg.mxu0
        %3793 = vmatprep.subr.mxu0 0.0
        %3794 = vmatpush1.msra.mxu0 %v3300
        %3795 = vmatprep.subr.mxu0 0.0
        %3796 = vmatpush1.msra.mxu0 %v3303
        %3797 = vmatprep.subr.mxu0 0.0
        %3798 = vmatpush1.msra.mxu0 %v3306
        %3799 = vmatprep.subr.mxu0 0.0
        %3800 = vmatpush1.msra.mxu0 %v3309
        %3801 = vmatprep.subr.mxu0 0.0
        %3802 = vmatpush1.msra.mxu0 %v3312
        %3803 = vmatprep.subr.mxu0 0.0
        %3804 = vmatpush1.msra.mxu0 %v3315
        %3805 = vmatprep.subr.mxu0 0.0
        %3806 = vmatpush1.msra.mxu0 %v3318
        %3807 = vmatprep.subr.mxu0 0.0
        %3808 = vmatpush1.msra.mxu0 %v3321
        %3809 = vmatprep.subr.mxu0 0.0
        %3810 = vmatpush1.msra.mxu0 %v3324
        %3811 = vmatprep.subr.mxu0 0.0
        %3812 = vmatpush1.msra.mxu0 %v3327
        %3813 = vmatprep.subr.mxu0 0.0
        %3814 = vmatpush1.msra.mxu0 %v3330
        %3815 = vmatprep.subr.mxu0 0.0
        %3816 = vmatpush1.msra.mxu0 %v3333
        %3817 = vmatprep.subr.mxu0 0.0
        %3818 = vmatpush1.msra.mxu0 %v3336
        %3819 = vmatprep.subr.mxu0 0.0
        %3820 = vmatpush1.msra.mxu0 %v3339
        %3821 = vmatprep.subr.mxu0 0.0
        %3822 = vmatpush1.msra.mxu0 %v3342
        %3823 = vmatprep.subr.mxu0 0.0
        %3824 = vmatpush1.msra.mxu0 %v3345
        %3825 = vmatprep.subr.mxu0 0.0
        %3826 = vmatpush1.msra.mxu0 0.0
        %3827 = vmatprep.subr.mxu0 0.0
        %3828 = vmatpush1.msra.mxu0 0.0
        %3829 = vmatprep.subr.mxu0 0.0
        %3830 = vmatpush1.msra.mxu0 0.0
        %3831 = vmatprep.subr.mxu0 0.0
        %3832 = vmatpush1.msra.mxu0 0.0
        %3833 = vmatprep.subr.mxu0 0.0
        %3834 = vmatpush1.msra.mxu0 0.0
        %3835 = vmatprep.subr.mxu0 0.0
        %3836 = vmatpush1.msra.mxu0 0.0
        %3837 = vmatprep.subr.mxu0 0.0
        %3838 = vmatpush1.msra.mxu0 0.0
        %3839 = vmatprep.subr.mxu0 0.0
        %3840 = vmatpush1.msra.mxu0 0.0
        %3841 = vmatprep.subr.mxu0 0.0
        %3842 = vmatpush1.msra.mxu0 0.0
        %3843 = vmatprep.subr.mxu0 0.0
        %3844 = vmatpush1.msra.mxu0 0.0
        %3845 = vmatprep.subr.mxu0 0.0
        %3846 = vmatpush1.msra.mxu0 0.0
        %3847 = vmatprep.subr.mxu0 0.0
        %3848 = vmatpush1.msra.mxu0 0.0
        %3849 = vmatprep.subr.mxu0 0.0
        %3850 = vmatpush1.msra.mxu0 0.0
        %3851 = vmatprep.subr.mxu0 0.0
        %3852 = vmatpush1.msra.mxu0 0.0
        %3853 = vmatprep.subr.mxu0 0.0
        %3854 = vmatpush1.msra.mxu0 0.0
        %3855 = vmatprep.subr.mxu0 0.0
        %3856 = vmatpush1.msra.mxu0 0.0
        %3857 = vmatprep.mubr.f32.mxu0 0.0
        %3858 = vmatmul.mubr.f32.gmra.mrb[0].mxu0 %v3721
        %v3859 = vpop.f32.mrb[0].mxu0
        %v3860 = vadd.f32 %v3364, %v3859
        %v3861 = vpop.f32.mrb[0].mxu0
        %3862 = vdwg.mxu0
        %v3863 = vadd.f32 %v3718, %v3789
        %v3864 = vxor.u32 %v3863, 2147483648
        %v3865 = vmul.f32 %v3864, 1.442695
        %v3866 = vpow.pop %v3865
        %v3867 = vadd.f32 %v3866, 1.0
        %v3868 = vrcp.pop %v3867
        %v3869 = vmul.f32 1.0, %v3868
        %v3870 = vadd.f32 %v3719, %v3791
        %v3871 = vxor.u32 %v3870, 2147483648
        %v3872 = vmul.f32 %v3871, 1.442695
        %v3873 = vpow.pop %v3872
        %v3874 = vadd.f32 %v3873, 1.0
        %v3875 = vrcp.pop %v3874
        %v3876 = vmul.f32 1.0, %v3875
        %v3877 = vmul.f32 %v3869, %v3860
        %v3878 = vadd.f32 %v3720, %v3877
        %v3879 = vtanh.pop %v3878
        %v3880 = vsub.f32 1.0, %v3876
        %v3881 = vmul.f32 %v3880, %v3879
        %v3882 = vmul.f32 %v3876, %v3721
        %v3883 = vadd.f32 %v3881, %v3882
        %v3884 = vstv %s3716
        %vm3885 = vcmp.lt.s32.totalorder %v3884, %v3297
        %v3886 = vsel %vm3885, 1, 0
        %3887 = vset.pattern.permute.xlu0 0
        %3888 = vperm.xlu0 %3887, %v3886
        %v3889 = vpop.permute.xlu0 %3888
        %vm3890 = vcmp.eq.s32.totalorder %v3889, 1
        %v3891 = vsel %vm3890, %v3883, %v3721
        %3892 = vst [vmem:[#allocation2] sm:$0xff] %v3891
        %s3893 = sadd.s32 %s3347, 3
        %s3894 = scalar_lea.vmem [#allocation3], 72
        %v3895 = vld [vmem:[%s3894] sm:$0xff]
        %v3896 = vld [vmem:[%s3894 + $0x8] sm:$0xff]
        %v3897 = vld [vmem:[%s3894 + $0x10] sm:$0xff]
        %v3898 = vld [vmem:[#allocation2] sm:$0xff]
        %3899 = vmatprep.subr.mxu0 %v3299
        %3900 = vmatpush1.msra.mxu0 %v3298
        %3901 = vmatprep.subr.mxu0 %v3302
        %3902 = vmatpush1.msra.mxu0 %v3301
        %3903 = vmatprep.subr.mxu0 %v3305
        %3904 = vmatpush1.msra.mxu0 %v3304
        %3905 = vmatprep.subr.mxu0 %v3308
        %3906 = vmatpush1.msra.mxu0 %v3307
        %3907 = vmatprep.subr.mxu0 %v3311
        %3908 = vmatpush1.msra.mxu0 %v3310
        %3909 = vmatprep.subr.mxu0 %v3314
        %3910 = vmatpush1.msra.mxu0 %v3313
        %3911 = vmatprep.subr.mxu0 %v3317
        %3912 = vmatpush1.msra.mxu0 %v3316
        %3913 = vmatprep.subr.mxu0 %v3320
        %3914 = vmatpush1.msra.mxu0 %v3319
        %3915 = vmatprep.subr.mxu0 %v3323
        %3916 = vmatpush1.msra.mxu0 %v3322
        %3917 = vmatprep.subr.mxu0 %v3326
        %3918 = vmatpush1.msra.mxu0 %v3325
        %3919 = vmatprep.subr.mxu0 %v3329
        %3920 = vmatpush1.msra.mxu0 %v3328
        %3921 = vmatprep.subr.mxu0 %v3332
        %3922 = vmatpush1.msra.mxu0 %v3331
        %3923 = vmatprep.subr.mxu0 %v3335
        %3924 = vmatpush1.msra.mxu0 %v3334
        %3925 = vmatprep.subr.mxu0 %v3338
        %3926 = vmatpush1.msra.mxu0 %v3337
        %3927 = vmatprep.subr.mxu0 %v3341
        %3928 = vmatpush1.msra.mxu0 %v3340
        %3929 = vmatprep.subr.mxu0 %v3344
        %3930 = vmatpush1.msra.mxu0 %v3343
        %3931 = vmatprep.subr.mxu0 0.0
        %3932 = vmatpush1.msra.mxu0 0.0
        %3933 = vmatprep.subr.mxu0 0.0
        %3934 = vmatpush1.msra.mxu0 0.0
        %3935 = vmatprep.subr.mxu0 0.0
        %3936 = vmatpush1.msra.mxu0 0.0
        %3937 = vmatprep.subr.mxu0 0.0
        %3938 = vmatpush1.msra.mxu0 0.0
        %3939 = vmatprep.subr.mxu0 0.0
        %3940 = vmatpush1.msra.mxu0 0.0
        %3941 = vmatprep.subr.mxu0 0.0
        %3942 = vmatpush1.msra.mxu0 0.0
        %3943 = vmatprep.subr.mxu0 0.0
        %3944 = vmatpush1.msra.mxu0 0.0
        %3945 = vmatprep.subr.mxu0 0.0
        %3946 = vmatpush1.msra.mxu0 0.0
        %3947 = vmatprep.subr.mxu0 0.0
        %3948 = vmatpush1.msra.mxu0 0.0
        %3949 = vmatprep.subr.mxu0 0.0
        %3950 = vmatpush1.msra.mxu0 0.0
        %3951 = vmatprep.subr.mxu0 0.0
        %3952 = vmatpush1.msra.mxu0 0.0
        %3953 = vmatprep.subr.mxu0 0.0
        %3954 = vmatpush1.msra.mxu0 0.0
        %3955 = vmatprep.subr.mxu0 0.0
        %3956 = vmatpush1.msra.mxu0 0.0
        %3957 = vmatprep.subr.mxu0 0.0
        %3958 = vmatpush1.msra.mxu0 0.0
        %3959 = vmatprep.subr.mxu0 0.0
        %3960 = vmatpush1.msra.mxu0 0.0
        %3961 = vmatprep.subr.mxu0 0.0
        %3962 = vmatpush1.msra.mxu0 0.0
        %3963 = vmatprep.mubr.f32.mxu0 0.0
        %3964 = vmatmul.mubr.f32.gmra.mrb[0].mxu0 %v3898
        %v3965 = vpop.f32.mrb[0].mxu0
        %v3966 = vadd.f32 %v3356, %v3965
        %v3967 = vpop.f32.mrb[0].mxu0
        %v3968 = vadd.f32 %v3360, %v3967
        %3969 = vdwg.mxu0
        %3970 = vmatprep.subr.mxu0 0.0
        %3971 = vmatpush1.msra.mxu0 %v3300
        %3972 = vmatprep.subr.mxu0 0.0
        %3973 = vmatpush1.msra.mxu0 %v3303
        %3974 = vmatprep.subr.mxu0 0.0
        %3975 = vmatpush1.msra.mxu0 %v3306
        %3976 = vmatprep.subr.mxu0 0.0
        %3977 = vmatpush1.msra.mxu0 %v3309
        %3978 = vmatprep.subr.mxu0 0.0
        %3979 = vmatpush1.msra.mxu0 %v3312
        %3980 = vmatprep.subr.mxu0 0.0
        %3981 = vmatpush1.msra.mxu0 %v3315
        %3982 = vmatprep.subr.mxu0 0.0
        %3983 = vmatpush1.msra.mxu0 %v3318
        %3984 = vmatprep.subr.mxu0 0.0
        %3985 = vmatpush1.msra.mxu0 %v3321
        %3986 = vmatprep.subr.mxu0 0.0
        %3987 = vmatpush1.msra.mxu0 %v3324
        %3988 = vmatprep.subr.mxu0 0.0
        %3989 = vmatpush1.msra.mxu0 %v3327
        %3990 = vmatprep.subr.mxu0 0.0
        %3991 = vmatpush1.msra.mxu0 %v3330
        %3992 = vmatprep.subr.mxu0 0.0
        %3993 = vmatpush1.msra.mxu0 %v3333
        %3994 = vmatprep.subr.mxu0 0.0
        %3995 = vmatpush1.msra.mxu0 %v3336
        %3996 = vmatprep.subr.mxu0 0.0
        %3997 = vmatpush1.msra.mxu0 %v3339
        %3998 = vmatprep.subr.mxu0 0.0
        %3999 = vmatpush1.msra.mxu0 %v3342
        %4000 = vmatprep.subr.mxu0 0.0
        %4001 = vmatpush1.msra.mxu0 %v3345
        %4002 = vmatprep.subr.mxu0 0.0
        %4003 = vmatpush1.msra.mxu0 0.0
        %4004 = vmatprep.subr.mxu0 0.0
        %4005 = vmatpush1.msra.mxu0 0.0
        %4006 = vmatprep.subr.mxu0 0.0
        %4007 = vmatpush1.msra.mxu0 0.0
        %4008 = vmatprep.subr.mxu0 0.0
        %4009 = vmatpush1.msra.mxu0 0.0
        %4010 = vmatprep.subr.mxu0 0.0
        %4011 = vmatpush1.msra.mxu0 0.0
        %4012 = vmatprep.subr.mxu0 0.0
        %4013 = vmatpush1.msra.mxu0 0.0
        %4014 = vmatprep.subr.mxu0 0.0
        %4015 = vmatpush1.msra.mxu0 0.0
        %4016 = vmatprep.subr.mxu0 0.0
        %4017 = vmatpush1.msra.mxu0 0.0
        %4018 = vmatprep.subr.mxu0 0.0
        %4019 = vmatpush1.msra.mxu0 0.0
        %4020 = vmatprep.subr.mxu0 0.0
        %4021 = vmatpush1.msra.mxu0 0.0
        %4022 = vmatprep.subr.mxu0 0.0
        %4023 = vmatpush1.msra.mxu0 0.0
        %4024 = vmatprep.subr.mxu0 0.0
        %4025 = vmatpush1.msra.mxu0 0.0
        %4026 = vmatprep.subr.mxu0 0.0
        %4027 = vmatpush1.msra.mxu0 0.0
        %4028 = vmatprep.subr.mxu0 0.0
        %4029 = vmatpush1.msra.mxu0 0.0
        %4030 = vmatprep.subr.mxu0 0.0
        %4031 = vmatpush1.msra.mxu0 0.0
        %4032 = vmatprep.subr.mxu0 0.0
        %4033 = vmatpush1.msra.mxu0 0.0
        %4034 = vmatprep.mubr.f32.mxu0 0.0
        %4035 = vmatmul.mubr.f32.gmra.mrb[0].mxu0 %v3898
        %v4036 = vpop.f32.mrb[0].mxu0
        %v4037 = vadd.f32 %v3364, %v4036
        %v4038 = vpop.f32.mrb[0].mxu0
        %4039 = vdwg.mxu0
        %v4040 = vadd.f32 %v3895, %v3966
        %v4041 = vxor.u32 %v4040, 2147483648
        %v4042 = vmul.f32 %v4041, 1.442695
        %v4043 = vpow.pop %v4042
        %v4044 = vadd.f32 %v4043, 1.0
        %v4045 = vrcp.pop %v4044
        %v4046 = vmul.f32 1.0, %v4045
        %v4047 = vadd.f32 %v3896, %v3968
        %v4048 = vxor.u32 %v4047, 2147483648
        %v4049 = vmul.f32 %v4048, 1.442695
        %v4050 = vpow.pop %v4049
        %v4051 = vadd.f32 %v4050, 1.0
        %v4052 = vrcp.pop %v4051
        %v4053 = vmul.f32 1.0, %v4052
        %v4054 = vmul.f32 %v4046, %v4037
        %v4055 = vadd.f32 %v3897, %v4054
        %v4056 = vtanh.pop %v4055
        %v4057 = vsub.f32 1.0, %v4053
        %v4058 = vmul.f32 %v4057, %v4056
        %v4059 = vmul.f32 %v4053, %v3898
        %v4060 = vadd.f32 %v4058, %v4059
        %v4061 = vstv %s3893
        %vm4062 = vcmp.lt.s32.totalorder %v4061, %v3297
        %v4063 = vsel %vm4062, 1, 0
        %4064 = vset.pattern.permute.xlu0 0
        %4065 = vperm.xlu0 %4064, %v4063
        %v4066 = vpop.permute.xlu0 %4065
        %vm4067 = vcmp.eq.s32.totalorder %v4066, 1
        %v4068 = vsel %vm4067, %v4060, %v3898
        %4069 = vst [vmem:[#allocation2] sm:$0xff] %v4068
        %s4070 = sadd.s32 %s3347, 4
        %s4071 = scalar_lea.vmem [#allocation3], 96
        %v4072 = vld [vmem:[%s4071] sm:$0xff]
        %v4073 = vld [vmem:[%s4071 + $0x8] sm:$0xff]
        %v4074 = vld [vmem:[%s4071 + $0x10] sm:$0xff]
        %v4075 = vld [vmem:[#allocation2] sm:$0xff]
        %4076 = vmatprep.subr.mxu0 %v3299
        %4077 = vmatpush1.msra.mxu0 %v3298
        %4078 = vmatprep.subr.mxu0 %v3302
        %4079 = vmatpush1.msra.mxu0 %v3301
        %4080 = vmatprep.subr.mxu0 %v3305
        %4081 = vmatpush1.msra.mxu0 %v3304
        %4082 = vmatprep.subr.mxu0 %v3308
        %4083 = vmatpush1.msra.mxu0 %v3307
        %4084 = vmatprep.subr.mxu0 %v3311
        %4085 = vmatpush1.msra.mxu0 %v3310
        %4086 = vmatprep.subr.mxu0 %v3314
        %4087 = vmatpush1.msra.mxu0 %v3313
        %4088 = vmatprep.subr.mxu0 %v3317
        %4089 = vmatpush1.msra.mxu0 %v3316
        %4090 = vmatprep.subr.mxu0 %v3320
        %4091 = vmatpush1.msra.mxu0 %v3319
        %4092 = vmatprep.subr.mxu0 %v3323
        %4093 = vmatpush1.msra.mxu0 %v3322
        %4094 = vmatprep.subr.mxu0 %v3326
        %4095 = vmatpush1.msra.mxu0 %v3325
        %4096 = vmatprep.subr.mxu0 %v3329
        %4097 = vmatpush1.msra.mxu0 %v3328
        %4098 = vmatprep.subr.mxu0 %v3332
        %4099 = vmatpush1.msra.mxu0 %v3331
        %4100 = vmatprep.subr.mxu0 %v3335
        %4101 = vmatpush1.msra.mxu0 %v3334
        %4102 = vmatprep.subr.mxu0 %v3338
        %4103 = vmatpush1.msra.mxu0 %v3337
        %4104 = vmatprep.subr.mxu0 %v3341
        %4105 = vmatpush1.msra.mxu0 %v3340
        %4106 = vmatprep.subr.mxu0 %v3344
        %4107 = vmatpush1.msra.mxu0 %v3343
        %4108 = vmatprep.subr.mxu0 0.0
        %4109 = vmatpush1.msra.mxu0 0.0
        %4110 = vmatprep.subr.mxu0 0.0
        %4111 = vmatpush1.msra.mxu0 0.0
        %4112 = vmatprep.subr.mxu0 0.0
        %4113 = vmatpush1.msra.mxu0 0.0
        %4114 = vmatprep.subr.mxu0 0.0
        %4115 = vmatpush1.msra.mxu0 0.0
        %4116 = vmatprep.subr.mxu0 0.0
        %4117 = vmatpush1.msra.mxu0 0.0
        %4118 = vmatprep.subr.mxu0 0.0
        %4119 = vmatpush1.msra.mxu0 0.0
        %4120 = vmatprep.subr.mxu0 0.0
        %4121 = vmatpush1.msra.mxu0 0.0
        %4122 = vmatprep.subr.mxu0 0.0
        %4123 = vmatpush1.msra.mxu0 0.0
        %4124 = vmatprep.subr.mxu0 0.0
        %4125 = vmatpush1.msra.mxu0 0.0
        %4126 = vmatprep.subr.mxu0 0.0
        %4127 = vmatpush1.msra.mxu0 0.0
        %4128 = vmatprep.subr.mxu0 0.0
        %4129 = vmatpush1.msra.mxu0 0.0
        %4130 = vmatprep.subr.mxu0 0.0
        %4131 = vmatpush1.msra.mxu0 0.0
        %4132 = vmatprep.subr.mxu0 0.0
        %4133 = vmatpush1.msra.mxu0 0.0
        %4134 = vmatprep.subr.mxu0 0.0
        %4135 = vmatpush1.msra.mxu0 0.0
        %4136 = vmatprep.subr.mxu0 0.0
        %4137 = vmatpush1.msra.mxu0 0.0
        %4138 = vmatprep.subr.mxu0 0.0
        %4139 = vmatpush1.msra.mxu0 0.0
        %4140 = vmatprep.mubr.f32.mxu0 0.0
        %4141 = vmatmul.mubr.f32.gmra.mrb[0].mxu0 %v4075
        %v4142 = vpop.f32.mrb[0].mxu0
        %v4143 = vadd.f32 %v3356, %v4142
        %v4144 = vpop.f32.mrb[0].mxu0
        %v4145 = vadd.f32 %v3360, %v4144
        %4146 = vdwg.mxu0
        %4147 = vmatprep.subr.mxu0 0.0
        %4148 = vmatpush1.msra.mxu0 %v3300
        %4149 = vmatprep.subr.mxu0 0.0
        %4150 = vmatpush1.msra.mxu0 %v3303
        %4151 = vmatprep.subr.mxu0 0.0
        %4152 = vmatpush1.msra.mxu0 %v3306
        %4153 = vmatprep.subr.mxu0 0.0
        %4154 = vmatpush1.msra.mxu0 %v3309
        %4155 = vmatprep.subr.mxu0 0.0
        %4156 = vmatpush1.msra.mxu0 %v3312
        %4157 = vmatprep.subr.mxu0 0.0
        %4158 = vmatpush1.msra.mxu0 %v3315
        %4159 = vmatprep.subr.mxu0 0.0
        %4160 = vmatpush1.msra.mxu0 %v3318
        %4161 = vmatprep.subr.mxu0 0.0
        %4162 = vmatpush1.msra.mxu0 %v3321
        %4163 = vmatprep.subr.mxu0 0.0
        %4164 = vmatpush1.msra.mxu0 %v3324
        %4165 = vmatprep.subr.mxu0 0.0
        %4166 = vmatpush1.msra.mxu0 %v3327
        %4167 = vmatprep.subr.mxu0 0.0
        %4168 = vmatpush1.msra.mxu0 %v3330
        %4169 = vmatprep.subr.mxu0 0.0
        %4170 = vmatpush1.msra.mxu0 %v3333
        %4171 = vmatprep.subr.mxu0 0.0
        %4172 = vmatpush1.msra.mxu0 %v3336
        %4173 = vmatprep.subr.mxu0 0.0
        %4174 = vmatpush1.msra.mxu0 %v3339
        %4175 = vmatprep.subr.mxu0 0.0
        %4176 = vmatpush1.msra.mxu0 %v3342
        %4177 = vmatprep.subr.mxu0 0.0
        %4178 = vmatpush1.msra.mxu0 %v3345
        %4179 = vmatprep.subr.mxu0 0.0
        %4180 = vmatpush1.msra.mxu0 0.0
        %4181 = vmatprep.subr.mxu0 0.0
        %4182 = vmatpush1.msra.mxu0 0.0
        %4183 = vmatprep.subr.mxu0 0.0
        %4184 = vmatpush1.msra.mxu0 0.0
        %4185 = vmatprep.subr.mxu0 0.0
        %4186 = vmatpush1.msra.mxu0 0.0
        %4187 = vmatprep.subr.mxu0 0.0
        %4188 = vmatpush1.msra.mxu0 0.0
        %4189 = vmatprep.subr.mxu0 0.0
        %4190 = vmatpush1.msra.mxu0 0.0
        %4191 = vmatprep.subr.mxu0 0.0
        %4192 = vmatpush1.msra.mxu0 0.0
        %4193 = vmatprep.subr.mxu0 0.0
        %4194 = vmatpush1.msra.mxu0 0.0
        %4195 = vmatprep.subr.mxu0 0.0
        %4196 = vmatpush1.msra.mxu0 0.0
        %4197 = vmatprep.subr.mxu0 0.0
        %4198 = vmatpush1.msra.mxu0 0.0
        %4199 = vmatprep.subr.mxu0 0.0
        %4200 = vmatpush1.msra.mxu0 0.0
        %4201 = vmatprep.subr.mxu0 0.0
        %4202 = vmatpush1.msra.mxu0 0.0
        %4203 = vmatprep.subr.mxu0 0.0
        %4204 = vmatpush1.msra.mxu0 0.0
        %4205 = vmatprep.subr.mxu0 0.0
        %4206 = vmatpush1.msra.mxu0 0.0
        %4207 = vmatprep.subr.mxu0 0.0
        %4208 = vmatpush1.msra.mxu0 0.0
        %4209 = vmatprep.subr.mxu0 0.0
        %4210 = vmatpush1.msra.mxu0 0.0
        %4211 = vmatprep.mubr.f32.mxu0 0.0
        %4212 = vmatmul.mubr.f32.gmra.mrb[0].mxu0 %v4075
        %v4213 = vpop.f32.mrb[0].mxu0
        %v4214 = vadd.f32 %v3364, %v4213
        %v4215 = vpop.f32.mrb[0].mxu0
        %4216 = vdwg.mxu0
        %v4217 = vadd.f32 %v4072, %v4143
        %v4218 = vxor.u32 %v4217, 2147483648
        %v4219 = vmul.f32 %v4218, 1.442695
        %v4220 = vpow.pop %v4219
        %v4221 = vadd.f32 %v4220, 1.0
        %v4222 = vrcp.pop %v4221
        %v4223 = vmul.f32 1.0, %v4222
        %v4224 = vadd.f32 %v4073, %v4145
        %v4225 = vxor.u32 %v4224, 2147483648
        %v4226 = vmul.f32 %v4225, 1.442695
        %v4227 = vpow.pop %v4226
        %v4228 = vadd.f32 %v4227, 1.0
        %v4229 = vrcp.pop %v4228
        %v4230 = vmul.f32 1.0, %v4229
        %v4231 = vmul.f32 %v4223, %v4214
        %v4232 = vadd.f32 %v4074, %v4231
        %v4233 = vtanh.pop %v4232
        %v4234 = vsub.f32 1.0, %v4230
        %v4235 = vmul.f32 %v4234, %v4233
        %v4236 = vmul.f32 %v4230, %v4075
        %v4237 = vadd.f32 %v4235, %v4236
        %v4238 = vstv %s4070
        %vm4239 = vcmp.lt.s32.totalorder %v4238, %v3297
        %v4240 = vsel %vm4239, 1, 0
        %4241 = vset.pattern.permute.xlu0 0
        %4242 = vperm.xlu0 %4241, %v4240
        %v4243 = vpop.permute.xlu0 %4242
        %vm4244 = vcmp.eq.s32.totalorder %v4243, 1
        %v4245 = vsel %vm4244, %v4237, %v4075
        %4246 = vst [vmem:[#allocation2] sm:$0xff] %v4245
        %s4247 = sadd.s32 %s3347, 5
        %s4248 = scalar_lea.vmem [#allocation3], 120
        %v4249 = vld [vmem:[%s4248] sm:$0xff]
        %v4250 = vld [vmem:[%s4248 + $0x8] sm:$0xff]
        %v4251 = vld [vmem:[%s4248 + $0x10] sm:$0xff]
        %v4252 = vld [vmem:[#allocation2] sm:$0xff]
        %4253 = vmatprep.subr.mxu0 %v3299
        %4254 = vmatpush1.msra.mxu0 %v3298
        %4255 = vmatprep.subr.mxu0 %v3302
        %4256 = vmatpush1.msra.mxu0 %v3301
        %4257 = vmatprep.subr.mxu0 %v3305
        %4258 = vmatpush1.msra.mxu0 %v3304
        %4259 = vmatprep.subr.mxu0 %v3308
        %4260 = vmatpush1.msra.mxu0 %v3307
        %4261 = vmatprep.subr.mxu0 %v3311
        %4262 = vmatpush1.msra.mxu0 %v3310
        %4263 = vmatprep.subr.mxu0 %v3314
        %4264 = vmatpush1.msra.mxu0 %v3313
        %4265 = vmatprep.subr.mxu0 %v3317
        %4266 = vmatpush1.msra.mxu0 %v3316
        %4267 = vmatprep.subr.mxu0 %v3320
        %4268 = vmatpush1.msra.mxu0 %v3319
        %4269 = vmatprep.subr.mxu0 %v3323
        %4270 = vmatpush1.msra.mxu0 %v3322
        %4271 = vmatprep.subr.mxu0 %v3326
        %4272 = vmatpush1.msra.mxu0 %v3325
        %4273 = vmatprep.subr.mxu0 %v3329
        %4274 = vmatpush1.msra.mxu0 %v3328
        %4275 = vmatprep.subr.mxu0 %v3332
        %4276 = vmatpush1.msra.mxu0 %v3331
        %4277 = vmatprep.subr.mxu0 %v3335
        %4278 = vmatpush1.msra.mxu0 %v3334
        %4279 = vmatprep.subr.mxu0 %v3338
        %4280 = vmatpush1.msra.mxu0 %v3337
        %4281 = vmatprep.subr.mxu0 %v3341
        %4282 = vmatpush1.msra.mxu0 %v3340
        %4283 = vmatprep.subr.mxu0 %v3344
        %4284 = vmatpush1.msra.mxu0 %v3343
        %4285 = vmatprep.subr.mxu0 0.0
        %4286 = vmatpush1.msra.mxu0 0.0
        %4287 = vmatprep.subr.mxu0 0.0
        %4288 = vmatpush1.msra.mxu0 0.0
        %4289 = vmatprep.subr.mxu0 0.0
        %4290 = vmatpush1.msra.mxu0 0.0
        %4291 = vmatprep.subr.mxu0 0.0
        %4292 = vmatpush1.msra.mxu0 0.0
        %4293 = vmatprep.subr.mxu0 0.0
        %4294 = vmatpush1.msra.mxu0 0.0
        %4295 = vmatprep.subr.mxu0 0.0
        %4296 = vmatpush1.msra.mxu0 0.0
        %4297 = vmatprep.subr.mxu0 0.0
        %4298 = vmatpush1.msra.mxu0 0.0
        %4299 = vmatprep.subr.mxu0 0.0
        %4300 = vmatpush1.msra.mxu0 0.0
        %4301 = vmatprep.subr.mxu0 0.0
        %4302 = vmatpush1.msra.mxu0 0.0
        %4303 = vmatprep.subr.mxu0 0.0
        %4304 = vmatpush1.msra.mxu0 0.0
        %4305 = vmatprep.subr.mxu0 0.0
        %4306 = vmatpush1.msra.mxu0 0.0
        %4307 = vmatprep.subr.mxu0 0.0
        %4308 = vmatpush1.msra.mxu0 0.0
        %4309 = vmatprep.subr.mxu0 0.0
        %4310 = vmatpush1.msra.mxu0 0.0
        %4311 = vmatprep.subr.mxu0 0.0
        %4312 = vmatpush1.msra.mxu0 0.0
        %4313 = vmatprep.subr.mxu0 0.0
        %4314 = vmatpush1.msra.mxu0 0.0
        %4315 = vmatprep.subr.mxu0 0.0
        %4316 = vmatpush1.msra.mxu0 0.0
        %4317 = vmatprep.mubr.f32.mxu0 0.0
        %4318 = vmatmul.mubr.f32.gmra.mrb[0].mxu0 %v4252
        %v4319 = vpop.f32.mrb[0].mxu0
        %v4320 = vadd.f32 %v3356, %v4319
        %v4321 = vpop.f32.mrb[0].mxu0
        %v4322 = vadd.f32 %v3360, %v4321
        %4323 = vdwg.mxu0
        %4324 = vmatprep.subr.mxu0 0.0
        %4325 = vmatpush1.msra.mxu0 %v3300
        %4326 = vmatprep.subr.mxu0 0.0
        %4327 = vmatpush1.msra.mxu0 %v3303
        %4328 = vmatprep.subr.mxu0 0.0
        %4329 = vmatpush1.msra.mxu0 %v3306
        %4330 = vmatprep.subr.mxu0 0.0
        %4331 = vmatpush1.msra.mxu0 %v3309
        %4332 = vmatprep.subr.mxu0 0.0
        %4333 = vmatpush1.msra.mxu0 %v3312
        %4334 = vmatprep.subr.mxu0 0.0
        %4335 = vmatpush1.msra.mxu0 %v3315
        %4336 = vmatprep.subr.mxu0 0.0
        %4337 = vmatpush1.msra.mxu0 %v3318
        %4338 = vmatprep.subr.mxu0 0.0
        %4339 = vmatpush1.msra.mxu0 %v3321
        %4340 = vmatprep.subr.mxu0 0.0
        %4341 = vmatpush1.msra.mxu0 %v3324
        %4342 = vmatprep.subr.mxu0 0.0
        %4343 = vmatpush1.msra.mxu0 %v3327
        %4344 = vmatprep.subr.mxu0 0.0
        %4345 = vmatpush1.msra.mxu0 %v3330
        %4346 = vmatprep.subr.mxu0 0.0
        %4347 = vmatpush1.msra.mxu0 %v3333
        %4348 = vmatprep.subr.mxu0 0.0
        %4349 = vmatpush1.msra.mxu0 %v3336
        %4350 = vmatprep.subr.mxu0 0.0
        %4351 = vmatpush1.msra.mxu0 %v3339
        %4352 = vmatprep.subr.mxu0 0.0
        %4353 = vmatpush1.msra.mxu0 %v3342
        %4354 = vmatprep.subr.mxu0 0.0
        %4355 = vmatpush1.msra.mxu0 %v3345
        %4356 = vmatprep.subr.mxu0 0.0
        %4357 = vmatpush1.msra.mxu0 0.0
        %4358 = vmatprep.subr.mxu0 0.0
        %4359 = vmatpush1.msra.mxu0 0.0
        %4360 = vmatprep.subr.mxu0 0.0
        %4361 = vmatpush1.msra.mxu0 0.0
        %4362 = vmatprep.subr.mxu0 0.0
        %4363 = vmatpush1.msra.mxu0 0.0
        %4364 = vmatprep.subr.mxu0 0.0
        %4365 = vmatpush1.msra.mxu0 0.0
        %4366 = vmatprep.subr.mxu0 0.0
        %4367 = vmatpush1.msra.mxu0 0.0
        %4368 = vmatprep.subr.mxu0 0.0
        %4369 = vmatpush1.msra.mxu0 0.0
        %4370 = vmatprep.subr.mxu0 0.0
        %4371 = vmatpush1.msra.mxu0 0.0
        %4372 = vmatprep.subr.mxu0 0.0
        %4373 = vmatpush1.msra.mxu0 0.0
        %4374 = vmatprep.subr.mxu0 0.0
        %4375 = vmatpush1.msra.mxu0 0.0
        %4376 = vmatprep.subr.mxu0 0.0
        %4377 = vmatpush1.msra.mxu0 0.0
        %4378 = vmatprep.subr.mxu0 0.0
        %4379 = vmatpush1.msra.mxu0 0.0
        %4380 = vmatprep.subr.mxu0 0.0
        %4381 = vmatpush1.msra.mxu0 0.0
        %4382 = vmatprep.subr.mxu0 0.0
        %4383 = vmatpush1.msra.mxu0 0.0
        %4384 = vmatprep.subr.mxu0 0.0
        %4385 = vmatpush1.msra.mxu0 0.0
        %4386 = vmatprep.subr.mxu0 0.0
        %4387 = vmatpush1.msra.mxu0 0.0
        %4388 = vmatprep.mubr.f32.mxu0 0.0
        %4389 = vmatmul.mubr.f32.gmra.mrb[0].mxu0 %v4252
        %v4390 = vpop.f32.mrb[0].mxu0
        %v4391 = vadd.f32 %v3364, %v4390
        %v4392 = vpop.f32.mrb[0].mxu0
        %4393 = vdwg.mxu0
        %v4394 = vadd.f32 %v4249, %v4320
        %v4395 = vxor.u32 %v4394, 2147483648
        %v4396 = vmul.f32 %v4395, 1.442695
        %v4397 = vpow.pop %v4396
        %v4398 = vadd.f32 %v4397, 1.0
        %v4399 = vrcp.pop %v4398
        %v4400 = vmul.f32 1.0, %v4399
        %v4401 = vadd.f32 %v4250, %v4322
        %v4402 = vxor.u32 %v4401, 2147483648
        %v4403 = vmul.f32 %v4402, 1.442695
        %v4404 = vpow.pop %v4403
        %v4405 = vadd.f32 %v4404, 1.0
        %v4406 = vrcp.pop %v4405
        %v4407 = vmul.f32 1.0, %v4406
        %v4408 = vmul.f32 %v4400, %v4391
        %v4409 = vadd.f32 %v4251, %v4408
        %v4410 = vtanh.pop %v4409
        %v4411 = vsub.f32 1.0, %v4407
        %v4412 = vmul.f32 %v4411, %v4410
        %v4413 = vmul.f32 %v4407, %v4252
        %v4414 = vadd.f32 %v4412, %v4413
        %v4415 = vstv %s4247
        %vm4416 = vcmp.lt.s32.totalorder %v4415, %v3297
        %v4417 = vsel %vm4416, 1, 0
        %4418 = vset.pattern.permute.xlu0 0
        %4419 = vperm.xlu0 %4418, %v4417
        %v4420 = vpop.permute.xlu0 %4419
        %vm4421 = vcmp.eq.s32.totalorder %v4420, 1
        %v4422 = vsel %vm4421, %v4414, %v4252
        %4423 = vst [vmem:[#allocation2] sm:$0xff] %v4422
        %s4424 = sadd.s32 %s3347, 6
        %s4425 = scalar_lea.vmem [#allocation3], 144
        %v4426 = vld [vmem:[%s4425] sm:$0xff]
        %v4427 = vld [vmem:[%s4425 + $0x8] sm:$0xff]
        %v4428 = vld [vmem:[%s4425 + $0x10] sm:$0xff]
        %v4429 = vld [vmem:[#allocation2] sm:$0xff]
        %4430 = vmatprep.subr.mxu0 %v3299
        %4431 = vmatpush1.msra.mxu0 %v3298
        %4432 = vmatprep.subr.mxu0 %v3302
        %4433 = vmatpush1.msra.mxu0 %v3301
        %4434 = vmatprep.subr.mxu0 %v3305
        %4435 = vmatpush1.msra.mxu0 %v3304
        %4436 = vmatprep.subr.mxu0 %v3308
        %4437 = vmatpush1.msra.mxu0 %v3307
        %4438 = vmatprep.subr.mxu0 %v3311
        %4439 = vmatpush1.msra.mxu0 %v3310
        %4440 = vmatprep.subr.mxu0 %v3314
        %4441 = vmatpush1.msra.mxu0 %v3313
        %4442 = vmatprep.subr.mxu0 %v3317
        %4443 = vmatpush1.msra.mxu0 %v3316
        %4444 = vmatprep.subr.mxu0 %v3320
        %4445 = vmatpush1.msra.mxu0 %v3319
        %4446 = vmatprep.subr.mxu0 %v3323
        %4447 = vmatpush1.msra.mxu0 %v3322
        %4448 = vmatprep.subr.mxu0 %v3326
        %4449 = vmatpush1.msra.mxu0 %v3325
        %4450 = vmatprep.subr.mxu0 %v3329
        %4451 = vmatpush1.msra.mxu0 %v3328
        %4452 = vmatprep.subr.mxu0 %v3332
        %4453 = vmatpush1.msra.mxu0 %v3331
        %4454 = vmatprep.subr.mxu0 %v3335
        %4455 = vmatpush1.msra.mxu0 %v3334
        %4456 = vmatprep.subr.mxu0 %v3338
        %4457 = vmatpush1.msra.mxu0 %v3337
        %4458 = vmatprep.subr.mxu0 %v3341
        %4459 = vmatpush1.msra.mxu0 %v3340
        %4460 = vmatprep.subr.mxu0 %v3344
        %4461 = vmatpush1.msra.mxu0 %v3343
        %4462 = vmatprep.subr.mxu0 0.0
        %4463 = vmatpush1.msra.mxu0 0.0
        %4464 = vmatprep.subr.mxu0 0.0
        %4465 = vmatpush1.msra.mxu0 0.0
        %4466 = vmatprep.subr.mxu0 0.0
        %4467 = vmatpush1.msra.mxu0 0.0
        %4468 = vmatprep.subr.mxu0 0.0
        %4469 = vmatpush1.msra.mxu0 0.0
        %4470 = vmatprep.subr.mxu0 0.0
        %4471 = vmatpush1.msra.mxu0 0.0
        %4472 = vmatprep.subr.mxu0 0.0
        %4473 = vmatpush1.msra.mxu0 0.0
        %4474 = vmatprep.subr.mxu0 0.0
        %4475 = vmatpush1.msra.mxu0 0.0
        %4476 = vmatprep.subr.mxu0 0.0
        %4477 = vmatpush1.msra.mxu0 0.0
        %4478 = vmatprep.subr.mxu0 0.0
        %4479 = vmatpush1.msra.mxu0 0.0
        %4480 = vmatprep.subr.mxu0 0.0
        %4481 = vmatpush1.msra.mxu0 0.0
        %4482 = vmatprep.subr.mxu0 0.0
        %4483 = vmatpush1.msra.mxu0 0.0
        %4484 = vmatprep.subr.mxu0 0.0
        %4485 = vmatpush1.msra.mxu0 0.0
        %4486 = vmatprep.subr.mxu0 0.0
        %4487 = vmatpush1.msra.mxu0 0.0
        %4488 = vmatprep.subr.mxu0 0.0
        %4489 = vmatpush1.msra.mxu0 0.0
        %4490 = vmatprep.subr.mxu0 0.0
        %4491 = vmatpush1.msra.mxu0 0.0
        %4492 = vmatprep.subr.mxu0 0.0
        %4493 = vmatpush1.msra.mxu0 0.0
        %4494 = vmatprep.mubr.f32.mxu0 0.0
        %4495 = vmatmul.mubr.f32.gmra.mrb[0].mxu0 %v4429
        %v4496 = vpop.f32.mrb[0].mxu0
        %v4497 = vadd.f32 %v3356, %v4496
        %v4498 = vpop.f32.mrb[0].mxu0
        %v4499 = vadd.f32 %v3360, %v4498
        %4500 = vdwg.mxu0
        %4501 = vmatprep.subr.mxu0 0.0
        %4502 = vmatpush1.msra.mxu0 %v3300
        %4503 = vmatprep.subr.mxu0 0.0
        %4504 = vmatpush1.msra.mxu0 %v3303
        %4505 = vmatprep.subr.mxu0 0.0
        %4506 = vmatpush1.msra.mxu0 %v3306
        %4507 = vmatprep.subr.mxu0 0.0
        %4508 = vmatpush1.msra.mxu0 %v3309
        %4509 = vmatprep.subr.mxu0 0.0
        %4510 = vmatpush1.msra.mxu0 %v3312
        %4511 = vmatprep.subr.mxu0 0.0
        %4512 = vmatpush1.msra.mxu0 %v3315
        %4513 = vmatprep.subr.mxu0 0.0
        %4514 = vmatpush1.msra.mxu0 %v3318
        %4515 = vmatprep.subr.mxu0 0.0
        %4516 = vmatpush1.msra.mxu0 %v3321
        %4517 = vmatprep.subr.mxu0 0.0
        %4518 = vmatpush1.msra.mxu0 %v3324
        %4519 = vmatprep.subr.mxu0 0.0
        %4520 = vmatpush1.msra.mxu0 %v3327
        %4521 = vmatprep.subr.mxu0 0.0
        %4522 = vmatpush1.msra.mxu0 %v3330
        %4523 = vmatprep.subr.mxu0 0.0
        %4524 = vmatpush1.msra.mxu0 %v3333
        %4525 = vmatprep.subr.mxu0 0.0
        %4526 = vmatpush1.msra.mxu0 %v3336
        %4527 = vmatprep.subr.mxu0 0.0
        %4528 = vmatpush1.msra.mxu0 %v3339
        %4529 = vmatprep.subr.mxu0 0.0
        %4530 = vmatpush1.msra.mxu0 %v3342
        %4531 = vmatprep.subr.mxu0 0.0
        %4532 = vmatpush1.msra.mxu0 %v3345
        %4533 = vmatprep.subr.mxu0 0.0
        %4534 = vmatpush1.msra.mxu0 0.0
        %4535 = vmatprep.subr.mxu0 0.0
        %4536 = vmatpush1.msra.mxu0 0.0
        %4537 = vmatprep.subr.mxu0 0.0
        %4538 = vmatpush1.msra.mxu0 0.0
        %4539 = vmatprep.subr.mxu0 0.0
        %4540 = vmatpush1.msra.mxu0 0.0
        %4541 = vmatprep.subr.mxu0 0.0
        %4542 = vmatpush1.msra.mxu0 0.0
        %4543 = vmatprep.subr.mxu0 0.0
        %4544 = vmatpush1.msra.mxu0 0.0
        %4545 = vmatprep.subr.mxu0 0.0
        %4546 = vmatpush1.msra.mxu0 0.0
        %4547 = vmatprep.subr.mxu0 0.0
        %4548 = vmatpush1.msra.mxu0 0.0
        %4549 = vmatprep.subr.mxu0 0.0
        %4550 = vmatpush1.msra.mxu0 0.0
        %4551 = vmatprep.subr.mxu0 0.0
        %4552 = vmatpush1.msra.mxu0 0.0
        %4553 = vmatprep.subr.mxu0 0.0
        %4554 = vmatpush1.msra.mxu0 0.0
        %4555 = vmatprep.subr.mxu0 0.0
        %4556 = vmatpush1.msra.mxu0 0.0
        %4557 = vmatprep.subr.mxu0 0.0
        %4558 = vmatpush1.msra.mxu0 0.0
        %4559 = vmatprep.subr.mxu0 0.0
        %4560 = vmatpush1.msra.mxu0 0.0
        %4561 = vmatprep.subr.mxu0 0.0
        %4562 = vmatpush1.msra.mxu0 0.0
        %4563 = vmatprep.subr.mxu0 0.0
        %4564 = vmatpush1.msra.mxu0 0.0
        %4565 = vmatprep.mubr.f32.mxu0 0.0
        %4566 = vmatmul.mubr.f32.gmra.mrb[0].mxu0 %v4429
        %v4567 = vpop.f32.mrb[0].mxu0
        %v4568 = vadd.f32 %v3364, %v4567
        %v4569 = vpop.f32.mrb[0].mxu0
        %4570 = vdwg.mxu0
        %v4571 = vadd.f32 %v4426, %v4497
        %v4572 = vxor.u32 %v4571, 2147483648
        %v4573 = vmul.f32 %v4572, 1.442695
        %v4574 = vpow.pop %v4573
        %v4575 = vadd.f32 %v4574, 1.0
        %v4576 = vrcp.pop %v4575
        %v4577 = vmul.f32 1.0, %v4576
        %v4578 = vadd.f32 %v4427, %v4499
        %v4579 = vxor.u32 %v4578, 2147483648
        %v4580 = vmul.f32 %v4579, 1.442695
        %v4581 = vpow.pop %v4580
        %v4582 = vadd.f32 %v4581, 1.0
        %v4583 = vrcp.pop %v4582
        %v4584 = vmul.f32 1.0, %v4583
        %v4585 = vmul.f32 %v4577, %v4568
        %v4586 = vadd.f32 %v4428, %v4585
        %v4587 = vtanh.pop %v4586
        %v4588 = vsub.f32 1.0, %v4584
        %v4589 = vmul.f32 %v4588, %v4587
        %v4590 = vmul.f32 %v4584, %v4429
        %v4591 = vadd.f32 %v4589, %v4590
        %v4592 = vstv %s4424
        %vm4593 = vcmp.lt.s32.totalorder %v4592, %v3297
        %v4594 = vsel %vm4593, 1, 0
        %4595 = vset.pattern.permute.xlu0 0
        %4596 = vperm.xlu0 %4595, %v4594
        %v4597 = vpop.permute.xlu0 %4596
        %vm4598 = vcmp.eq.s32.totalorder %v4597, 1
        %v4599 = vsel %vm4598, %v4591, %v4429
        %4600 = vst [vmem:[#allocation2] sm:$0xff] %v4599
        %s4601 = sadd.s32 %s3347, 7
        %s4602 = scalar_lea.vmem [#allocation3], 168
        %v4603 = vld [vmem:[%s4602] sm:$0xff]
        %v4604 = vld [vmem:[%s4602 + $0x8] sm:$0xff]
        %v4605 = vld [vmem:[%s4602 + $0x10] sm:$0xff]
        %v4606 = vld [vmem:[#allocation2] sm:$0xff]
        %4607 = vmatprep.subr.mxu0 %v3299
        %4608 = vmatpush1.msra.mxu0 %v3298
        %4609 = vmatprep.subr.mxu0 %v3302
        %4610 = vmatpush1.msra.mxu0 %v3301
        %4611 = vmatprep.subr.mxu0 %v3305
        %4612 = vmatpush1.msra.mxu0 %v3304
        %4613 = vmatprep.subr.mxu0 %v3308
        %4614 = vmatpush1.msra.mxu0 %v3307
        %4615 = vmatprep.subr.mxu0 %v3311
        %4616 = vmatpush1.msra.mxu0 %v3310
        %4617 = vmatprep.subr.mxu0 %v3314
        %4618 = vmatpush1.msra.mxu0 %v3313
        %4619 = vmatprep.subr.mxu0 %v3317
        %4620 = vmatpush1.msra.mxu0 %v3316
        %4621 = vmatprep.subr.mxu0 %v3320
        %4622 = vmatpush1.msra.mxu0 %v3319
        %4623 = vmatprep.subr.mxu0 %v3323
        %4624 = vmatpush1.msra.mxu0 %v3322
        %4625 = vmatprep.subr.mxu0 %v3326
        %4626 = vmatpush1.msra.mxu0 %v3325
        %4627 = vmatprep.subr.mxu0 %v3329
        %4628 = vmatpush1.msra.mxu0 %v3328
        %4629 = vmatprep.subr.mxu0 %v3332
        %4630 = vmatpush1.msra.mxu0 %v3331
        %4631 = vmatprep.subr.mxu0 %v3335
        %4632 = vmatpush1.msra.mxu0 %v3334
        %4633 = vmatprep.subr.mxu0 %v3338
        %4634 = vmatpush1.msra.mxu0 %v3337
        %4635 = vmatprep.subr.mxu0 %v3341
        %4636 = vmatpush1.msra.mxu0 %v3340
        %4637 = vmatprep.subr.mxu0 %v3344
        %4638 = vmatpush1.msra.mxu0 %v3343
        %4639 = vmatprep.subr.mxu0 0.0
        %4640 = vmatpush1.msra.mxu0 0.0
        %4641 = vmatprep.subr.mxu0 0.0
        %4642 = vmatpush1.msra.mxu0 0.0
        %4643 = vmatprep.subr.mxu0 0.0
        %4644 = vmatpush1.msra.mxu0 0.0
        %4645 = vmatprep.subr.mxu0 0.0
        %4646 = vmatpush1.msra.mxu0 0.0
        %4647 = vmatprep.subr.mxu0 0.0
        %4648 = vmatpush1.msra.mxu0 0.0
        %4649 = vmatprep.subr.mxu0 0.0
        %4650 = vmatpush1.msra.mxu0 0.0
        %4651 = vmatprep.subr.mxu0 0.0
        %4652 = vmatpush1.msra.mxu0 0.0
        %4653 = vmatprep.subr.mxu0 0.0
        %4654 = vmatpush1.msra.mxu0 0.0
        %4655 = vmatprep.subr.mxu0 0.0
        %4656 = vmatpush1.msra.mxu0 0.0
        %4657 = vmatprep.subr.mxu0 0.0
        %4658 = vmatpush1.msra.mxu0 0.0
        %4659 = vmatprep.subr.mxu0 0.0
        %4660 = vmatpush1.msra.mxu0 0.0
        %4661 = vmatprep.subr.mxu0 0.0
        %4662 = vmatpush1.msra.mxu0 0.0
        %4663 = vmatprep.subr.mxu0 0.0
        %4664 = vmatpush1.msra.mxu0 0.0
        %4665 = vmatprep.subr.mxu0 0.0
        %4666 = vmatpush1.msra.mxu0 0.0
        %4667 = vmatprep.subr.mxu0 0.0
        %4668 = vmatpush1.msra.mxu0 0.0
        %4669 = vmatprep.subr.mxu0 0.0
        %4670 = vmatpush1.msra.mxu0 0.0
        %4671 = vmatprep.mubr.f32.mxu0 0.0
        %4672 = vmatmul.mubr.f32.gmra.mrb[0].mxu0 %v4606
        %v4673 = vpop.f32.mrb[0].mxu0
        %v4674 = vadd.f32 %v3356, %v4673
        %v4675 = vpop.f32.mrb[0].mxu0
        %v4676 = vadd.f32 %v3360, %v4675
        %4677 = vdwg.mxu0
        %4678 = vmatprep.subr.mxu0 0.0
        %4679 = vmatpush1.msra.mxu0 %v3300
        %4680 = vmatprep.subr.mxu0 0.0
        %4681 = vmatpush1.msra.mxu0 %v3303
        %4682 = vmatprep.subr.mxu0 0.0
        %4683 = vmatpush1.msra.mxu0 %v3306
        %4684 = vmatprep.subr.mxu0 0.0
        %4685 = vmatpush1.msra.mxu0 %v3309
        %4686 = vmatprep.subr.mxu0 0.0
        %4687 = vmatpush1.msra.mxu0 %v3312
        %4688 = vmatprep.subr.mxu0 0.0
        %4689 = vmatpush1.msra.mxu0 %v3315
        %4690 = vmatprep.subr.mxu0 0.0
        %4691 = vmatpush1.msra.mxu0 %v3318
        %4692 = vmatprep.subr.mxu0 0.0
        %4693 = vmatpush1.msra.mxu0 %v3321
        %4694 = vmatprep.subr.mxu0 0.0
        %4695 = vmatpush1.msra.mxu0 %v3324
        %4696 = vmatprep.subr.mxu0 0.0
        %4697 = vmatpush1.msra.mxu0 %v3327
        %4698 = vmatprep.subr.mxu0 0.0
        %4699 = vmatpush1.msra.mxu0 %v3330
        %4700 = vmatprep.subr.mxu0 0.0
        %4701 = vmatpush1.msra.mxu0 %v3333
        %4702 = vmatprep.subr.mxu0 0.0
        %4703 = vmatpush1.msra.mxu0 %v3336
        %4704 = vmatprep.subr.mxu0 0.0
        %4705 = vmatpush1.msra.mxu0 %v3339
        %4706 = vmatprep.subr.mxu0 0.0
        %4707 = vmatpush1.msra.mxu0 %v3342
        %4708 = vmatprep.subr.mxu0 0.0
        %4709 = vmatpush1.msra.mxu0 %v3345
        %4710 = vmatprep.subr.mxu0 0.0
        %4711 = vmatpush1.msra.mxu0 0.0
        %4712 = vmatprep.subr.mxu0 0.0
        %4713 = vmatpush1.msra.mxu0 0.0
        %4714 = vmatprep.subr.mxu0 0.0
        %4715 = vmatpush1.msra.mxu0 0.0
        %4716 = vmatprep.subr.mxu0 0.0
        %4717 = vmatpush1.msra.mxu0 0.0
        %4718 = vmatprep.subr.mxu0 0.0
        %4719 = vmatpush1.msra.mxu0 0.0
        %4720 = vmatprep.subr.mxu0 0.0
        %4721 = vmatpush1.msra.mxu0 0.0
        %4722 = vmatprep.subr.mxu0 0.0
        %4723 = vmatpush1.msra.mxu0 0.0
        %4724 = vmatprep.subr.mxu0 0.0
        %4725 = vmatpush1.msra.mxu0 0.0
        %4726 = vmatprep.subr.mxu0 0.0
        %4727 = vmatpush1.msra.mxu0 0.0
        %4728 = vmatprep.subr.mxu0 0.0
        %4729 = vmatpush1.msra.mxu0 0.0
        %4730 = vmatprep.subr.mxu0 0.0
        %4731 = vmatpush1.msra.mxu0 0.0
        %4732 = vmatprep.subr.mxu0 0.0
        %4733 = vmatpush1.msra.mxu0 0.0
        %4734 = vmatprep.subr.mxu0 0.0
        %4735 = vmatpush1.msra.mxu0 0.0
        %4736 = vmatprep.subr.mxu0 0.0
        %4737 = vmatpush1.msra.mxu0 0.0
        %4738 = vmatprep.subr.mxu0 0.0
        %4739 = vmatpush1.msra.mxu0 0.0
        %4740 = vmatprep.subr.mxu0 0.0
        %4741 = vmatpush1.msra.mxu0 0.0
        %4742 = vmatprep.mubr.f32.mxu0 0.0
        %4743 = vmatmul.mubr.f32.gmra.mrb[0].mxu0 %v4606
        %v4744 = vpop.f32.mrb[0].mxu0
        %v4745 = vadd.f32 %v3364, %v4744
        %v4746 = vpop.f32.mrb[0].mxu0
        %4747 = vdwg.mxu0
        %v4748 = vadd.f32 %v4603, %v4674
        %v4749 = vxor.u32 %v4748, 2147483648
        %v4750 = vmul.f32 %v4749, 1.442695
        %v4751 = vpow.pop %v4750
        %v4752 = vadd.f32 %v4751, 1.0
        %v4753 = vrcp.pop %v4752
        %v4754 = vmul.f32 1.0, %v4753
        %v4755 = vadd.f32 %v4604, %v4676
        %v4756 = vxor.u32 %v4755, 2147483648
        %v4757 = vmul.f32 %v4756, 1.442695
        %v4758 = vpow.pop %v4757
        %v4759 = vadd.f32 %v4758, 1.0
        %v4760 = vrcp.pop %v4759
        %v4761 = vmul.f32 1.0, %v4760
        %v4762 = vmul.f32 %v4754, %v4745
        %v4763 = vadd.f32 %v4605, %v4762
        %v4764 = vtanh.pop %v4763
        %v4765 = vsub.f32 1.0, %v4761
        %v4766 = vmul.f32 %v4765, %v4764
        %v4767 = vmul.f32 %v4761, %v4606
        %v4768 = vadd.f32 %v4766, %v4767
        %v4769 = vstv %s4601
        %vm4770 = vcmp.lt.s32.totalorder %v4769, %v3297
        %v4771 = vsel %vm4770, 1, 0
        %4772 = vset.pattern.permute.xlu0 0
        %4773 = vperm.xlu0 %4772, %v4771
        %v4774 = vpop.permute.xlu0 %4773
        %vm4775 = vcmp.eq.s32.totalorder %v4774, 1
        %v4776 = vsel %vm4775, %v4768, %v4606
        %4777 = vst [vmem:[#allocation2] sm:$0xff] %v4776
        // Predicated region
        $region141: #{tabformer_inference.1} parent=135 // pred_check
          %p4778 = pneg %p940
        $region142: #{tabformer_inference.1} parent=135 // pred_check_branch
          %4780 = sbr.rel (%p4778) target = $region144
        $region143: #{tabformer_inference.1} parent=135 // pred_region
          %v4781 = vld [vmem:[#allocation2] sm:$0xff]
          %v4782 = vmul.f32 %v4781, %v4781
          %4783 = vadd.xlane.f32.xlu0 %v4782
          %v4784 = vpop.xlane.xlu0 %4783
          %v4785 = vadd.f32 %v4784, 1e-09
          %v4786 = vrsqrt.pop %v4785
          %v4787 = vmul.f32 %v4781, %v4786
          %4788 = vst [vmem:[%s926] sm:$0xff] %v4787
        $region144: #{tabformer_inference.1} parent=135 // pred_fallthru
          _
        %s4789 = sand.u32 %s714, 1
        %s4790 = scalar_lea.sflag [#allocation5], %s4789
        %s4791 = sand.u32 %s714, 1
        %s4792 = smul.addr %s4791, 8
        %s4793 = scalar_lea.vmem [#allocation4], %s4792
        // Predicated region
        $region145: #{tabformer_inference.1} parent=135 // pred_check
          %p4794 = pneg %p724
        $region146: #{tabformer_inference.1} parent=135 // pred_check_branch
          %4796 = sbr.rel (%p4794) target = $region148
        $region147: #{tabformer_inference.1} parent=135 // pred_region
          %s4798 = ssub.s32 128, 128
          %4799 = vsyncadd %s4790, %s4798
          %s4800 = smul.addr %s77, 128
          %s4801 = scalar_lea.hbm %s59, %s4800
          %s4803 = sshll.u32 %s4793, 4
          %s4804 = int_to_ptr.vmem [resolvable:$true] %s4803
          %4806 = dma.vmem_to_hbm [thread:$0]  %s4804, 128, %s4801, %s4790
        $region148: #{tabformer_inference.1} parent=135 // pred_fallthru
          _
      $region136: #{tabformer_inference.1} parent=5 // pred_fallthru
        _
      %p4807 = scmp.le.s32.totalorder 2, %s68
      // Predicated region
      $region149: #{tabformer_inference.1} parent=5 // pred_check
        %p4808 = pneg %p4807
      $region150: #{tabformer_inference.1} parent=5 // pred_check_branch
        %4810 = sbr.rel (%p4808) target = $region152
      $region151: #{tabformer_inference.1} parent=5 // pred_region
        %s4811 = ssub.s32 %s68, 2
        // Predicated region
        $region153: #{tabformer_inference.1} parent=151 // pred_check
          %p4812 = pneg %p730
        $region154: #{tabformer_inference.1} parent=151 // pred_check_branch
          %4814 = sbr.rel (%p4812) target = $region156
        $region155: #{tabformer_inference.1} parent=151 // pred_region
          %s4815 = sand.u32 %s715, 1
          %s4816 = scalar_lea.sflag [#allocation5], %s4815
          %s4817 = sand.u32 %s715, 1
          %s4818 = smul.addr %s4817, 8
          %s4819 = scalar_lea.vmem [#allocation4], %s4818
          %4820 = dma.done %s4816, 128
        $region156: #{tabformer_inference.1} parent=151 // pred_fallthru
          _
      $region152: #{tabformer_inference.1} parent=5 // pred_fallthru
        _
    $region6: #{tabformer_inference.1} parent=1 // loop_footer
      %s72 = sadd.s32 1, %s68
    $region7: #{tabformer_inference.1} parent=1 // loop_footer_branch
      %67 = sbr.rel target = $region3
    $region8: #{tabformer_inference.1} parent=1 // loop_exit
      _
    %4821 = vsyncpa [#allocation5], 1
    %s4822 = scalar_lea.sflag [#allocation5], 1
    %4823 = vsyncpa %s4822, 1

</llo_original>
